<compile_context>
chip_gen: v7x
topology: tpu7x:2x2x1
jax: 0.10.0
libtpu: 0.0.40
codegen_flags: <defaults>
</compile_context>

<pallas_src>
import jax
import jax.numpy as jnp
from jax.experimental import pallas as pl

# ----------------------------- model config ---------------------------------
EMBED_DIM = 32
NUM_HEADS = 4
HEAD_DIM = EMBED_DIM // NUM_HEADS
FFN_DIM = 64
SEQ_LEN = 8     # tgt_len
SRC_LEN = 8     # encoder src_len
BATCH = 2
LN_EPS = 1e-5


def _fs(shape):
    """Full-array BlockSpec (block == whole array, single grid step)."""
    nd = len(shape)
    return pl.BlockSpec(shape, lambda i, _nd=nd: (0,) * _nd)


# ------------------------- fused decoder-layer kernel ------------------------
def _decoder_layer_kernel(
    x_ref, enc_ref,
    wqkv_ref, bqkv_ref, wout_ref, fc1w_ref, fc1b_ref, bvec_ref,
    out_ref, attn_ref,
):
    f32 = jnp.float32
    B, T, S, H, dh, D = BATCH, SEQ_LEN, SRC_LEN, NUM_HEADS, HEAD_DIM, EMBED_DIM

    # Causal additive mask built on the VPU (no HBM-materialized bias input).
    r = jax.lax.broadcasted_iota(jnp.int32, (T, T), 0)
    c = jax.lax.broadcasted_iota(jnp.int32, (T, T), 1)
    causal = jnp.where(r >= c, 0.0, -1e9).astype(f32)

    # b_vec rows: 0: sa_bo, 1: ea_bo, 2: fc2_b, 3+2i / 4+2i: LN_i gamma / beta
    def layer_norm(v, idx):
        g = bvec_ref[3 + 2 * idx]            # (1, D)
        b = bvec_ref[4 + 2 * idx]            # (1, D)
        mu = jnp.mean(v, axis=-1, keepdims=True)
        var = jnp.mean((v - mu) * (v - mu), axis=-1, keepdims=True)
        return (v - mu) * jax.lax.rsqrt(var + LN_EPS) * g + b

    def attention(q_src, kv_src, blk, kv_len, bias, need_avg):
        # One fused, lane-dense (M, D) @ (D, 3D) QKV projection per operand
        # (batch folded into M; q weights/bias pre-scaled by head_dim**-0.5).
        qkv_q = jnp.dot(q_src, wqkv_ref[blk],
                        preferred_element_type=f32) + bqkv_ref[blk]       # (M, 3D)
        if kv_src is q_src:                     # self-attention: share projection
            qkv_kv = qkv_q
        else:
            qkv_kv = jnp.dot(kv_src, wqkv_ref[blk],
                             preferred_element_type=f32) + bqkv_ref[blk]  # (Mkv, 3D)

        outs, avgs = [], []
        for b in range(B):
            q_b = qkv_q[b * T:(b + 1) * T, :]
            kv_b = qkv_kv[b * kv_len:(b + 1) * kv_len, :]
            head_outs = []
            p_avg = jnp.zeros((T, kv_len), f32) if need_avg else None
            for h in range(H):
                # dh-aligned static lane slices — stay inside one (8,128) tile.
                qh = q_b[:, h * dh:(h + 1) * dh]                      # (T, dh)
                kh = kv_b[:, D + h * dh:D + (h + 1) * dh]             # (kv, dh)
                vh = kv_b[:, 2 * D + h * dh:2 * D + (h + 1) * dh]     # (kv, dh)
                s = jax.lax.dot_general(qh, kh, (((1,), (1,)), ((), ())),
                                        preferred_element_type=f32)  # (T, kv)
                if bias is not None:
                    s = s + bias
                m = jnp.max(s, axis=-1, keepdims=True)
                e = jnp.exp(s - m)
                p = e / jnp.sum(e, axis=-1, keepdims=True)   # exact softmax
                if need_avg:
                    p_avg = p_avg + p * (1.0 / H)
                head_outs.append(jnp.dot(p, vh, preferred_element_type=f32))
            outs.append(jnp.concatenate(head_outs, axis=1))           # (T, D)
            if need_avg:
                avgs.append(p_avg)

        o_concat = jnp.concatenate(outs, axis=0)                      # (M, D)
        # Fused output projection: single (M, D) @ (D, D) dot.
        wo = wout_ref[pl.ds(blk * D, D), :]
        out = jnp.dot(o_concat, wo, preferred_element_type=f32) + bvec_ref[blk]
        attn_avg = jnp.concatenate(avgs, axis=0) if need_avg else None
        return out, attn_avg

    x = x_ref[...].astype(f32)          # (B*T, D)
    enc = enc_ref[...].astype(f32)      # (B*S, D)

    # --- self-attention (causal) + residual + LayerNorm (post-norm) ---
    sa_out, _ = attention(x, x, 0, T, causal, need_avg=False)
    x = layer_norm(x + sa_out, 0)

    # --- encoder-decoder attention (+ head-averaged weights) + residual + LN ---
    ea_out, attn_avg = attention(x, enc, 1, S, None, need_avg=True)
    attn_ref[...] = attn_avg.astype(attn_ref.dtype)
    x = layer_norm(x + ea_out, 1)

    # --- FFN: fc1 -> relu -> fc2 on the full (B*T, D) slab, + residual + LN ---
    h = jnp.maximum(
        jnp.dot(x, fc1w_ref[...], preferred_element_type=f32) + fc1b_ref[...], 0.0)
    fc2_w = wout_ref[pl.ds(2 * D, FFN_DIM), :]
    y = jnp.dot(h, fc2_w, preferred_element_type=f32) + bvec_ref[2]
    x = layer_norm(x + y, 2)

    out_ref[...] = x.astype(out_ref.dtype)


# ------------------------------ param packing --------------------------------
def pack_params(params):
    """Pack raw fairseq-style params into 6 lane-dense slabs (once, outside jit).

    w_qkv (2, D, 3D): per-block [q|k|v] column-fused projection, q pre-scaled.
    b_qkv (2, 1, 3D): matching biases.
    w_out (2D+F, D):  row-stacked [self Wo^T ; enc Wo^T ; fc2].
    fc1_w (D, F), fc1_b (1, F).
    b_vec (9, 1, D):  [sa_bo, ea_bo, fc2_b, LN0 g, LN0 b, LN1 g, LN1 b, LN2 g, LN2 b].
    """
    D, F = EMBED_DIM, FFN_DIM
    scale = HEAD_DIM ** -0.5

    def qkv(p):
        w = jnp.concatenate([p["wq_t"] * scale, p["wk_t"], p["wv_t"]], axis=1)
        b = jnp.concatenate([p["bq"] * scale, p["bk"], p["bv"]]).reshape(1, 3 * D)
        return w, b

    sa_w, sa_b = qkv(params["self_attn"])
    ea_w, ea_b = qkv(params["encoder_attn"])

    w_qkv = jnp.stack([sa_w, ea_w])                                   # (2, D, 3D)
    b_qkv = jnp.stack([sa_b, ea_b])                                   # (2, 1, 3D)
    w_out = jnp.concatenate([params["self_attn"]["wo_t"],
                             params["encoder_attn"]["wo_t"],
                             params["fc2_w_t"]], axis=0)              # (2D+F, D)
    b_vec = jnp.stack([
        params["self_attn"]["bo"], params["encoder_attn"]["bo"], params["fc2_b"],
        params["self_attn_ln_g"], params["self_attn_ln_b"],
        params["encoder_attn_ln_g"], params["encoder_attn_ln_b"],
        params["final_ln_g"], params["final_ln_b"],
    ]).reshape(9, 1, D)

    return dict(w_qkv=w_qkv, b_qkv=b_qkv, w_out=w_out,
                fc1_w=params["fc1_w_t"], fc1_b=params["fc1_b"].reshape(1, F),
                b_vec=b_vec)


# ------------------------ TransformerDecoderLayer fwd ------------------------
def transformer_decoder_layer_forward(x, encoder_out, packed):
    """x:(T,B,D), encoder_out:(S,B,D). Post-norm (normalize_before=False).
    Returns (x, attn, moe_states, l_aux) like the PyTorch module."""
    T, B, D = x.shape
    S = encoder_out.shape[0]

    # Batch folded into the matmul M dimension: (T,B,D) -> (B*T, D) slabs.
    x_flat = jnp.transpose(x, (1, 0, 2)).reshape(B * T, D)
    enc_flat = jnp.transpose(encoder_out, (1, 0, 2)).reshape(B * S, D)

    args = (x_flat, enc_flat,
            packed["w_qkv"], packed["b_qkv"], packed["w_out"],
            packed["fc1_w"], packed["fc1_b"], packed["b_vec"])

    out_flat, attn_flat = pl.pallas_call(
        _decoder_layer_kernel,
        out_shape=(jax.ShapeDtypeStruct((B * T, D), x.dtype),
                   jax.ShapeDtypeStruct((B * T, S), jnp.float32)),
        grid=(1,),
        in_specs=[_fs(a.shape) for a in args],
        out_specs=(_fs((B * T, D)), _fs((B * T, S))),
    )(*args)

    out = jnp.transpose(out_flat.reshape(B, T, D), (1, 0, 2))   # back to (T, B, D)
    attn = attn_flat.reshape(B, T, S)
    moe_states = None   # not a MoE layer
    l_aux = None
    return out, attn, moe_states, l_aux


# ------------------------------ reference (jnp) -------------------------------
def _ref_mha(query, kv, p, bias, H):
    T, B, D = query.shape
    S = kv.shape[0]
    dh = D // H
    q = query.reshape(T * B, D) @ p["wq_t"] + p["bq"]
    k = kv.reshape(S * B, D) @ p["wk_t"] + p["bk"]
    v = kv.reshape(S * B, D) @ p["wv_t"] + p["bv"]
    q = q.reshape(T, B * H, dh).transpose(1, 0, 2) * (dh ** -0.5)
    k = k.reshape(S, B * H, dh).transpose(1, 0, 2)
    v = v.reshape(S, B * H, dh).transpose(1, 0, 2)
    s = jnp.einsum("bqd,bkd->bqk", q, k)
    if bias is not None:
        s = s + bias[None]
    pr = jax.nn.softmax(s, axis=-1)
    o = jnp.einsum("bqk,bkd->bqd", pr, v)
    o = o.transpose(1, 0, 2).reshape(T * B, D) @ p["wo_t"] + p["bo"]
    attn_avg = pr.reshape(B, H, T, S).mean(axis=1)
    return o.reshape(T, B, D), attn_avg


def _ref_ln(x, g, b):
    mu = x.mean(-1, keepdims=True)
    var = ((x - mu) ** 2).mean(-1, keepdims=True)
    return (x - mu) * jax.lax.rsqrt(var + LN_EPS) * g + b


def _ref_forward(x, enc, params):
    T, B, D = x.shape
    causal = jnp.where(jnp.arange(T)[:, None] >= jnp.arange(T)[None, :], 0.0, -1e9)
    r = x
    sa, _ = _ref_mha(x, x, params["self_attn"], causal, NUM_HEADS)
    x = _ref_ln(r + sa, params["self_attn_ln_g"], params["self_attn_ln_b"])
    r = x
    ea, attn = _ref_mha(x, enc, params["encoder_attn"], None, NUM_HEADS)
    x = _ref_ln(r + ea, params["encoder_attn_ln_g"], params["encoder_attn_ln_b"])
    r = x
    h = jnp.maximum(x.reshape(T * B, D) @ params["fc1_w_t"] + params["fc1_b"], 0.0)
    x = _ref_ln(r + (h @ params["fc2_w_t"] + params["fc2_b"]).reshape(T, B, D),
                params["final_ln_g"], params["final_ln_b"])
    return x, attn


# ------------------------------ param init -----------------------------------
def init_params(key):
    def lin(k, din, dout, scale=0.02):
        kw, kb = jax.random.split(k)
        w_t = jax.random.normal(kw, (din, dout), jnp.float32) * scale
        b = jax.random.normal(kb, (dout,), jnp.float32) * scale
        return w_t, b

    keys = jax.random.split(key, 16)

    def attn_params(ks):
        wq_t, bq = lin(ks[0], EMBED_DIM, EMBED_DIM)
        wk_t, bk = lin(ks[1], EMBED_DIM, EMBED_DIM)
        wv_t, bv = lin(ks[2], EMBED_DIM, EMBED_DIM)
        wo_t, bo = lin(ks[3], EMBED_DIM, EMBED_DIM)
        return dict(wq_t=wq_t, bq=bq, wk_t=wk_t, bk=bk,
                    wv_t=wv_t, bv=bv, wo_t=wo_t, bo=bo)

    fc1_w_t, fc1_b = lin(keys[8], EMBED_DIM, FFN_DIM)
    fc2_w_t, fc2_b = lin(keys[9], FFN_DIM, EMBED_DIM)

    ones = jnp.ones((EMBED_DIM,), jnp.float32)
    zeros = jnp.zeros((EMBED_DIM,), jnp.float32)
    return dict(
        self_attn=attn_params(keys[0:4]),
        encoder_attn=attn_params(keys[4:8]),
        self_attn_ln_g=ones, self_attn_ln_b=zeros,
        encoder_attn_ln_g=ones, encoder_attn_ln_b=zeros,
        final_ln_g=ones, final_ln_b=zeros,
        fc1_w_t=fc1_w_t, fc1_b=fc1_b, fc2_w_t=fc2_w_t, fc2_b=fc2_b,
    )


# --------------------------------- main ---------------------------------------
if __name__ == "__main__":
    key = jax.random.PRNGKey(0)
    k_x, k_enc, k_p = jax.random.split(key, 3)

    x = jax.random.normal(k_x, (SEQ_LEN, BATCH, EMBED_DIM), jnp.float32)
    encoder_out = jax.random.normal(k_enc, (SRC_LEN, BATCH, EMBED_DIM), jnp.float32)
    params = init_params(k_p)
    packed = pack_params(params)   # one-time weight packing (outside jit)

    fwd = jax.jit(transformer_decoder_layer_forward)
    out, attn, moe_states, l_aux = fwd(x, encoder_out, packed)
    out = jax.block_until_ready(out)
    attn = jax.block_until_ready(attn)

    # sanity check against a pure-jnp reference of the same math
    ref_out, ref_attn = _ref_forward(x, encoder_out, params)
    assert out.shape == (SEQ_LEN, BATCH, EMBED_DIM)
    assert attn.shape == (BATCH, SEQ_LEN, SRC_LEN)
    # Softmax denominator is now exact (no approx reciprocal): attention rows sum
    # to 1 and tolerance is tightened vs. the previous 2e-3.  Remaining slack only
    # covers default-precision XLA matmuls in the reference vs. f32-accumulated
    # MXU dots in the kernel.
    assert jnp.allclose(attn.sum(-1), 1.0, atol=1e-5), "attn rows not normalized"
    assert jnp.allclose(out, ref_out, atol=1e-3, rtol=1e-3), "output mismatch vs reference"
    assert jnp.allclose(attn, ref_attn, atol=1e-3, rtol=1e-3), "attn mismatch vs reference"

    print("KERNEL_OK")
</pallas_src>

<mosaic_0001>
module attributes {stable_mosaic.version = 11 : i64} {
  func.func @_decoder_layer_kernel(%arg0: i32, %arg1: memref<16x32xf32, #tpu.memory_space<vmem>>, %arg2: memref<16x32xf32, #tpu.memory_space<vmem>>, %arg3: memref<2x32x96xf32, #tpu.memory_space<vmem>>, %arg4: memref<2x1x96xf32, #tpu.memory_space<vmem>>, %arg5: memref<128x32xf32, #tpu.memory_space<vmem>>, %arg6: memref<32x64xf32, #tpu.memory_space<vmem>>, %arg7: memref<1x64xf32, #tpu.memory_space<vmem>>, %arg8: memref<9x1x32xf32, #tpu.memory_space<vmem>>, %arg9: memref<16x32xf32, #tpu.memory_space<vmem>>, %arg10: memref<16x8xf32, #tpu.memory_space<vmem>>) attributes {dimension_semantics = [#tpu.dimension_semantics<arbitrary>], iteration_bounds = array<i64: 1>, scalar_prefetch = 0 : i64, scratch_operands = 0 : i64, tpu.core_type = #tpu.core_type<tc>, window_params = [{pipeline_mode = #tpu.pipeline_mode<synchronous>, transform_indices = @transform_0, window_bounds = array<i64: 16, 32>}, {pipeline_mode = #tpu.pipeline_mode<synchronous>, transform_indices = @transform_1, window_bounds = array<i64: 16, 32>}, {pipeline_mode = #tpu.pipeline_mode<synchronous>, transform_indices = @transform_2, window_bounds = array<i64: 2, 32, 96>}, {pipeline_mode = #tpu.pipeline_mode<synchronous>, transform_indices = @transform_3, window_bounds = array<i64: 2, 1, 96>}, {pipeline_mode = #tpu.pipeline_mode<synchronous>, transform_indices = @transform_4, window_bounds = array<i64: 128, 32>}, {pipeline_mode = #tpu.pipeline_mode<synchronous>, transform_indices = @transform_5, window_bounds = array<i64: 32, 64>}, {pipeline_mode = #tpu.pipeline_mode<synchronous>, transform_indices = @transform_6, window_bounds = array<i64: 1, 64>}, {pipeline_mode = #tpu.pipeline_mode<synchronous>, transform_indices = @transform_7, window_bounds = array<i64: 9, 1, 32>}, {pipeline_mode = #tpu.pipeline_mode<synchronous>, transform_indices = @transform_8, window_bounds = array<i64: 16, 32>}, {pipeline_mode = #tpu.pipeline_mode<synchronous>, transform_indices = @transform_9, window_bounds = array<i64: 16, 8>}]} {
    %0 = tpu.iota {dimensions = array<i32: 0>} : vector<8x8xi32>
    %1 = tpu.iota {dimensions = array<i32: 1>} : vector<8x8xi32>
    %2 = arith.cmpi sge, %0, %1 : vector<8x8xi32>
    %cst = arith.constant 0.000000e+00 : f32
    %cst_0 = arith.constant -1.000000e+09 : f32
    %3 = vector.broadcast %cst : f32 to vector<8x8xf32>
    %4 = vector.broadcast %cst_0 : f32 to vector<8x8xf32>
    %5 = arith.select %2, %3, %4 : vector<8x8xi1>, vector<8x8xf32>
    %c0 = arith.constant 0 : index
    %c0_1 = arith.constant 0 : index
    %6 = vector.load %arg1[%c0, %c0_1] : memref<16x32xf32, #tpu.memory_space<vmem>>, vector<16x32xf32>
    %c0_2 = arith.constant 0 : index
    %c0_3 = arith.constant 0 : index
    %7 = vector.load %arg2[%c0_2, %c0_3] : memref<16x32xf32, #tpu.memory_space<vmem>>, vector<16x32xf32>
    %c0_4 = arith.constant 0 : index
    %c0_5 = arith.constant 0 : index
    %c0_6 = arith.constant 0 : index
    %8 = vector.load %arg3[%c0_4, %c0_5, %c0_6] : memref<2x32x96xf32, #tpu.memory_space<vmem>>, vector<1x32x96xf32>
    %9 = vector.shape_cast %8 : vector<1x32x96xf32> to vector<32x96xf32>
    %cst_7 = arith.constant dense<0.000000e+00> : vector<16x96xf32>
    %10 = tpu.matmul %6, %9, %cst_7 {dimension_numbers = #tpu.dot_dimension_numbers<[1], [0], [0], [1], [0, 0, 1, 1], [], []>} : vector<16x32xf32>, vector<32x96xf32>, vector<16x96xf32> -> vector<16x96xf32>
    %c0_8 = arith.constant 0 : index
    %c0_9 = arith.constant 0 : index
    %c0_10 = arith.constant 0 : index
    %11 = vector.load %arg4[%c0_8, %c0_9, %c0_10] : memref<2x1x96xf32, #tpu.memory_space<vmem>>, vector<1x1x96xf32>
    %12 = vector.shape_cast %11 : vector<1x1x96xf32> to vector<1x96xf32>
    %13 = vector.broadcast %12 : vector<1x96xf32> to vector<16x96xf32>
    %14 = arith.addf %10, %13 : vector<16x96xf32>
    %15 = vector.extract_strided_slice %14 {offsets = [0, 0], sizes = [8, 96], strides = [1, 1]} : vector<16x96xf32> to vector<8x96xf32>
    %16 = vector.extract_strided_slice %14 {offsets = [0, 0], sizes = [8, 96], strides = [1, 1]} : vector<16x96xf32> to vector<8x96xf32>
    %17 = vector.extract_strided_slice %15 {offsets = [0, 0], sizes = [8, 8], strides = [1, 1]} : vector<8x96xf32> to vector<8x8xf32>
    %18 = vector.extract_strided_slice %16 {offsets = [0, 32], sizes = [8, 8], strides = [1, 1]} : vector<8x96xf32> to vector<8x8xf32>
    %19 = vector.extract_strided_slice %16 {offsets = [0, 64], sizes = [8, 8], strides = [1, 1]} : vector<8x96xf32> to vector<8x8xf32>
    %cst_11 = arith.constant dense<0.000000e+00> : vector<8x8xf32>
    %20 = tpu.matmul %17, %18, %cst_11 {dimension_numbers = #tpu.dot_dimension_numbers<[1], [1], [0], [0], [0, 0, 1, 0], [], []>} : vector<8x8xf32>, vector<8x8xf32>, vector<8x8xf32> -> vector<8x8xf32>
    %21 = arith.addf %20, %5 : vector<8x8xf32>
    %cst_12 = arith.constant dense<0xFF800000> : vector<8xf32>
    %22 = vector.multi_reduction <maximumf>, %21, %cst_12 [1] : vector<8x8xf32> to vector<8xf32>
    %23 = vector.shape_cast %22 : vector<8xf32> to vector<8x1xf32>
    %24 = vector.broadcast %23 : vector<8x1xf32> to vector<8x8xf32>
    %25 = arith.subf %21, %24 : vector<8x8xf32>
    %26 = math.exp %25 : vector<8x8xf32>
    %cst_13 = arith.constant dense<0.000000e+00> : vector<8xf32>
    %27 = vector.multi_reduction <add>, %26, %cst_13 [1] : vector<8x8xf32> to vector<8xf32>
    %28 = vector.shape_cast %27 : vector<8xf32> to vector<8x1xf32>
    %29 = vector.broadcast %28 : vector<8x1xf32> to vector<8x8xf32>
    %30 = arith.divf %26, %29 : vector<8x8xf32>
    %cst_14 = arith.constant dense<0.000000e+00> : vector<8x8xf32>
    %31 = tpu.matmul %30, %19, %cst_14 {dimension_numbers = #tpu.dot_dimension_numbers<[1], [0], [0], [1], [0, 0, 1, 1], [], []>} : vector<8x8xf32>, vector<8x8xf32>, vector<8x8xf32> -> vector<8x8xf32>
    %32 = vector.extract_strided_slice %15 {offsets = [0, 8], sizes = [8, 8], strides = [1, 1]} : vector<8x96xf32> to vector<8x8xf32>
    %33 = vector.extract_strided_slice %16 {offsets = [0, 40], sizes = [8, 8], strides = [1, 1]} : vector<8x96xf32> to vector<8x8xf32>
    %34 = vector.extract_strided_slice %16 {offsets = [0, 72], sizes = [8, 8], strides = [1, 1]} : vector<8x96xf32> to vector<8x8xf32>
    %cst_15 = arith.constant dense<0.000000e+00> : vector<8x8xf32>
    %35 = tpu.matmul %32, %33, %cst_15 {dimension_numbers = #tpu.dot_dimension_numbers<[1], [1], [0], [0], [0, 0, 1, 0], [], []>} : vector<8x8xf32>, vector<8x8xf32>, vector<8x8xf32> -> vector<8x8xf32>
    %36 = arith.addf %35, %5 : vector<8x8xf32>
    %cst_16 = arith.constant dense<0xFF800000> : vector<8xf32>
    %37 = vector.multi_reduction <maximumf>, %36, %cst_16 [1] : vector<8x8xf32> to vector<8xf32>
    %38 = vector.shape_cast %37 : vector<8xf32> to vector<8x1xf32>
    %39 = vector.broadcast %38 : vector<8x1xf32> to vector<8x8xf32>
    %40 = arith.subf %36, %39 : vector<8x8xf32>
    %41 = math.exp %40 : vector<8x8xf32>
    %cst_17 = arith.constant dense<0.000000e+00> : vector<8xf32>
    %42 = vector.multi_reduction <add>, %41, %cst_17 [1] : vector<8x8xf32> to vector<8xf32>
    %43 = vector.shape_cast %42 : vector<8xf32> to vector<8x1xf32>
    %44 = vector.broadcast %43 : vector<8x1xf32> to vector<8x8xf32>
    %45 = arith.divf %41, %44 : vector<8x8xf32>
    %cst_18 = arith.constant dense<0.000000e+00> : vector<8x8xf32>
    %46 = tpu.matmul %45, %34, %cst_18 {dimension_numbers = #tpu.dot_dimension_numbers<[1], [0], [0], [1], [0, 0, 1, 1], [], []>} : vector<8x8xf32>, vector<8x8xf32>, vector<8x8xf32> -> vector<8x8xf32>
    %47 = vector.extract_strided_slice %15 {offsets = [0, 16], sizes = [8, 8], strides = [1, 1]} : vector<8x96xf32> to vector<8x8xf32>
    %48 = vector.extract_strided_slice %16 {offsets = [0, 48], sizes = [8, 8], strides = [1, 1]} : vector<8x96xf32> to vector<8x8xf32>
    %49 = vector.extract_strided_slice %16 {offsets = [0, 80], sizes = [8, 8], strides = [1, 1]} : vector<8x96xf32> to vector<8x8xf32>
    %cst_19 = arith.constant dense<0.000000e+00> : vector<8x8xf32>
    %50 = tpu.matmul %47, %48, %cst_19 {dimension_numbers = #tpu.dot_dimension_numbers<[1], [1], [0], [0], [0, 0, 1, 0], [], []>} : vector<8x8xf32>, vector<8x8xf32>, vector<8x8xf32> -> vector<8x8xf32>
    %51 = arith.addf %50, %5 : vector<8x8xf32>
    %cst_20 = arith.constant dense<0xFF800000> : vector<8xf32>
    %52 = vector.multi_reduction <maximumf>, %51, %cst_20 [1] : vector<8x8xf32> to vector<8xf32>
    %53 = vector.shape_cast %52 : vector<8xf32> to vector<8x1xf32>
    %54 = vector.broadcast %53 : vector<8x1xf32> to vector<8x8xf32>
    %55 = arith.subf %51, %54 : vector<8x8xf32>
    %56 = math.exp %55 : vector<8x8xf32>
    %cst_21 = arith.constant dense<0.000000e+00> : vector<8xf32>
    %57 = vector.multi_reduction <add>, %56, %cst_21 [1] : vector<8x8xf32> to vector<8xf32>
    %58 = vector.shape_cast %57 : vector<8xf32> to vector<8x1xf32>
    %59 = vector.broadcast %58 : vector<8x1xf32> to vector<8x8xf32>
    %60 = arith.divf %56, %59 : vector<8x8xf32>
    %cst_22 = arith.constant dense<0.000000e+00> : vector<8x8xf32>
    %61 = tpu.matmul %60, %49, %cst_22 {dimension_numbers = #tpu.dot_dimension_numbers<[1], [0], [0], [1], [0, 0, 1, 1], [], []>} : vector<8x8xf32>, vector<8x8xf32>, vector<8x8xf32> -> vector<8x8xf32>
    %62 = vector.extract_strided_slice %15 {offsets = [0, 24], sizes = [8, 8], strides = [1, 1]} : vector<8x96xf32> to vector<8x8xf32>
    %63 = vector.extract_strided_slice %16 {offsets = [0, 56], sizes = [8, 8], strides = [1, 1]} : vector<8x96xf32> to vector<8x8xf32>
    %64 = vector.extract_strided_slice %16 {offsets = [0, 88], sizes = [8, 8], strides = [1, 1]} : vector<8x96xf32> to vector<8x8xf32>
    %cst_23 = arith.constant dense<0.000000e+00> : vector<8x8xf32>
    %65 = tpu.matmul %62, %63, %cst_23 {dimension_numbers = #tpu.dot_dimension_numbers<[1], [1], [0], [0], [0, 0, 1, 0], [], []>} : vector<8x8xf32>, vector<8x8xf32>, vector<8x8xf32> -> vector<8x8xf32>
    %66 = arith.addf %65, %5 : vector<8x8xf32>
    %cst_24 = arith.constant dense<0xFF800000> : vector<8xf32>
    %67 = vector.multi_reduction <maximumf>, %66, %cst_24 [1] : vector<8x8xf32> to vector<8xf32>
    %68 = vector.shape_cast %67 : vector<8xf32> to vector<8x1xf32>
    %69 = vector.broadcast %68 : vector<8x1xf32> to vector<8x8xf32>
    %70 = arith.subf %66, %69 : vector<8x8xf32>
    %71 = math.exp %70 : vector<8x8xf32>
    %cst_25 = arith.constant dense<0.000000e+00> : vector<8xf32>
    %72 = vector.multi_reduction <add>, %71, %cst_25 [1] : vector<8x8xf32> to vector<8xf32>
    %73 = vector.shape_cast %72 : vector<8xf32> to vector<8x1xf32>
    %74 = vector.broadcast %73 : vector<8x1xf32> to vector<8x8xf32>
    %75 = arith.divf %71, %74 : vector<8x8xf32>
    %cst_26 = arith.constant dense<0.000000e+00> : vector<8x8xf32>
    %76 = tpu.matmul %75, %64, %cst_26 {dimension_numbers = #tpu.dot_dimension_numbers<[1], [0], [0], [1], [0, 0, 1, 1], [], []>} : vector<8x8xf32>, vector<8x8xf32>, vector<8x8xf32> -> vector<8x8xf32>
    %77 = tpu.concatenate %31, %46, %61, %76 in 1 : vector<8x8xf32>, vector<8x8xf32>, vector<8x8xf32>, vector<8x8xf32> -> vector<8x32xf32>
    %78 = vector.extract_strided_slice %14 {offsets = [8, 0], sizes = [8, 96], strides = [1, 1]} : vector<16x96xf32> to vector<8x96xf32>
    %79 = vector.extract_strided_slice %14 {offsets = [8, 0], sizes = [8, 96], strides = [1, 1]} : vector<16x96xf32> to vector<8x96xf32>
    %80 = vector.extract_strided_slice %78 {offsets = [0, 0], sizes = [8, 8], strides = [1, 1]} : vector<8x96xf32> to vector<8x8xf32>
    %81 = vector.extract_strided_slice %79 {offsets = [0, 32], sizes = [8, 8], strides = [1, 1]} : vector<8x96xf32> to vector<8x8xf32>
    %82 = vector.extract_strided_slice %79 {offsets = [0, 64], sizes = [8, 8], strides = [1, 1]} : vector<8x96xf32> to vector<8x8xf32>
    %cst_27 = arith.constant dense<0.000000e+00> : vector<8x8xf32>
    %83 = tpu.matmul %80, %81, %cst_27 {dimension_numbers = #tpu.dot_dimension_numbers<[1], [1], [0], [0], [0, 0, 1, 0], [], []>} : vector<8x8xf32>, vector<8x8xf32>, vector<8x8xf32> -> vector<8x8xf32>
    %84 = arith.addf %83, %5 : vector<8x8xf32>
    %cst_28 = arith.constant dense<0xFF800000> : vector<8xf32>
    %85 = vector.multi_reduction <maximumf>, %84, %cst_28 [1] : vector<8x8xf32> to vector<8xf32>
    %86 = vector.shape_cast %85 : vector<8xf32> to vector<8x1xf32>
    %87 = vector.broadcast %86 : vector<8x1xf32> to vector<8x8xf32>
    %88 = arith.subf %84, %87 : vector<8x8xf32>
    %89 = math.exp %88 : vector<8x8xf32>
    %cst_29 = arith.constant dense<0.000000e+00> : vector<8xf32>
    %90 = vector.multi_reduction <add>, %89, %cst_29 [1] : vector<8x8xf32> to vector<8xf32>
    %91 = vector.shape_cast %90 : vector<8xf32> to vector<8x1xf32>
    %92 = vector.broadcast %91 : vector<8x1xf32> to vector<8x8xf32>
    %93 = arith.divf %89, %92 : vector<8x8xf32>
    %cst_30 = arith.constant dense<0.000000e+00> : vector<8x8xf32>
    %94 = tpu.matmul %93, %82, %cst_30 {dimension_numbers = #tpu.dot_dimension_numbers<[1], [0], [0], [1], [0, 0, 1, 1], [], []>} : vector<8x8xf32>, vector<8x8xf32>, vector<8x8xf32> -> vector<8x8xf32>
    %95 = vector.extract_strided_slice %78 {offsets = [0, 8], sizes = [8, 8], strides = [1, 1]} : vector<8x96xf32> to vector<8x8xf32>
    %96 = vector.extract_strided_slice %79 {offsets = [0, 40], sizes = [8, 8], strides = [1, 1]} : vector<8x96xf32> to vector<8x8xf32>
    %97 = vector.extract_strided_slice %79 {offsets = [0, 72], sizes = [8, 8], strides = [1, 1]} : vector<8x96xf32> to vector<8x8xf32>
    %cst_31 = arith.constant dense<0.000000e+00> : vector<8x8xf32>
    %98 = tpu.matmul %95, %96, %cst_31 {dimension_numbers = #tpu.dot_dimension_numbers<[1], [1], [0], [0], [0, 0, 1, 0], [], []>} : vector<8x8xf32>, vector<8x8xf32>, vector<8x8xf32> -> vector<8x8xf32>
    %99 = arith.addf %98, %5 : vector<8x8xf32>
    %cst_32 = arith.constant dense<0xFF800000> : vector<8xf32>
    %100 = vector.multi_reduction <maximumf>, %99, %cst_32 [1] : vector<8x8xf32> to vector<8xf32>
    %101 = vector.shape_cast %100 : vector<8xf32> to vector<8x1xf32>
    %102 = vector.broadcast %101 : vector<8x1xf32> to vector<8x8xf32>
    %103 = arith.subf %99, %102 : vector<8x8xf32>
    %104 = math.exp %103 : vector<8x8xf32>
    %cst_33 = arith.constant dense<0.000000e+00> : vector<8xf32>
    %105 = vector.multi_reduction <add>, %104, %cst_33 [1] : vector<8x8xf32> to vector<8xf32>
    %106 = vector.shape_cast %105 : vector<8xf32> to vector<8x1xf32>
    %107 = vector.broadcast %106 : vector<8x1xf32> to vector<8x8xf32>
    %108 = arith.divf %104, %107 : vector<8x8xf32>
    %cst_34 = arith.constant dense<0.000000e+00> : vector<8x8xf32>
    %109 = tpu.matmul %108, %97, %cst_34 {dimension_numbers = #tpu.dot_dimension_numbers<[1], [0], [0], [1], [0, 0, 1, 1], [], []>} : vector<8x8xf32>, vector<8x8xf32>, vector<8x8xf32> -> vector<8x8xf32>
    %110 = vector.extract_strided_slice %78 {offsets = [0, 16], sizes = [8, 8], strides = [1, 1]} : vector<8x96xf32> to vector<8x8xf32>
    %111 = vector.extract_strided_slice %79 {offsets = [0, 48], sizes = [8, 8], strides = [1, 1]} : vector<8x96xf32> to vector<8x8xf32>
    %112 = vector.extract_strided_slice %79 {offsets = [0, 80], sizes = [8, 8], strides = [1, 1]} : vector<8x96xf32> to vector<8x8xf32>
    %cst_35 = arith.constant dense<0.000000e+00> : vector<8x8xf32>
    %113 = tpu.matmul %110, %111, %cst_35 {dimension_numbers = #tpu.dot_dimension_numbers<[1], [1], [0], [0], [0, 0, 1, 0], [], []>} : vector<8x8xf32>, vector<8x8xf32>, vector<8x8xf32> -> vector<8x8xf32>
    %114 = arith.addf %113, %5 : vector<8x8xf32>
    %cst_36 = arith.constant dense<0xFF800000> : vector<8xf32>
    %115 = vector.multi_reduction <maximumf>, %114, %cst_36 [1] : vector<8x8xf32> to vector<8xf32>
    %116 = vector.shape_cast %115 : vector<8xf32> to vector<8x1xf32>
    %117 = vector.broadcast %116 : vector<8x1xf32> to vector<8x8xf32>
    %118 = arith.subf %114, %117 : vector<8x8xf32>
    %119 = math.exp %118 : vector<8x8xf32>
    %cst_37 = arith.constant dense<0.000000e+00> : vector<8xf32>
    %120 = vector.multi_reduction <add>, %119, %cst_37 [1] : vector<8x8xf32> to vector<8xf32>
    %121 = vector.shape_cast %120 : vector<8xf32> to vector<8x1xf32>
    %122 = vector.broadcast %121 : vector<8x1xf32> to vector<8x8xf32>
    %123 = arith.divf %119, %122 : vector<8x8xf32>
    %cst_38 = arith.constant dense<0.000000e+00> : vector<8x8xf32>
    %124 = tpu.matmul %123, %112, %cst_38 {dimension_numbers = #tpu.dot_dimension_numbers<[1], [0], [0], [1], [0, 0, 1, 1], [], []>} : vector<8x8xf32>, vector<8x8xf32>, vector<8x8xf32> -> vector<8x8xf32>
    %125 = vector.extract_strided_slice %78 {offsets = [0, 24], sizes = [8, 8], strides = [1, 1]} : vector<8x96xf32> to vector<8x8xf32>
    %126 = vector.extract_strided_slice %79 {offsets = [0, 56], sizes = [8, 8], strides = [1, 1]} : vector<8x96xf32> to vector<8x8xf32>
    %127 = vector.extract_strided_slice %79 {offsets = [0, 88], sizes = [8, 8], strides = [1, 1]} : vector<8x96xf32> to vector<8x8xf32>
    %cst_39 = arith.constant dense<0.000000e+00> : vector<8x8xf32>
    %128 = tpu.matmul %125, %126, %cst_39 {dimension_numbers = #tpu.dot_dimension_numbers<[1], [1], [0], [0], [0, 0, 1, 0], [], []>} : vector<8x8xf32>, vector<8x8xf32>, vector<8x8xf32> -> vector<8x8xf32>
    %129 = arith.addf %128, %5 : vector<8x8xf32>
    %cst_40 = arith.constant dense<0xFF800000> : vector<8xf32>
    %130 = vector.multi_reduction <maximumf>, %129, %cst_40 [1] : vector<8x8xf32> to vector<8xf32>
    %131 = vector.shape_cast %130 : vector<8xf32> to vector<8x1xf32>
    %132 = vector.broadcast %131 : vector<8x1xf32> to vector<8x8xf32>
    %133 = arith.subf %129, %132 : vector<8x8xf32>
    %134 = math.exp %133 : vector<8x8xf32>
    %cst_41 = arith.constant dense<0.000000e+00> : vector<8xf32>
    %135 = vector.multi_reduction <add>, %134, %cst_41 [1] : vector<8x8xf32> to vector<8xf32>
    %136 = vector.shape_cast %135 : vector<8xf32> to vector<8x1xf32>
    %137 = vector.broadcast %136 : vector<8x1xf32> to vector<8x8xf32>
    %138 = arith.divf %134, %137 : vector<8x8xf32>
    %cst_42 = arith.constant dense<0.000000e+00> : vector<8x8xf32>
    %139 = tpu.matmul %138, %127, %cst_42 {dimension_numbers = #tpu.dot_dimension_numbers<[1], [0], [0], [1], [0, 0, 1, 1], [], []>} : vector<8x8xf32>, vector<8x8xf32>, vector<8x8xf32> -> vector<8x8xf32>
    %140 = tpu.concatenate %94, %109, %124, %139 in 1 : vector<8x8xf32>, vector<8x8xf32>, vector<8x8xf32>, vector<8x8xf32> -> vector<8x32xf32>
    %141 = tpu.concatenate %77, %140 in 0 : vector<8x32xf32>, vector<8x32xf32> -> vector<16x32xf32>
    %c0_43 = arith.constant 0 : index
    %c0_44 = arith.constant 0 : index
    %142 = vector.load %arg5[%c0_43, %c0_44] : memref<128x32xf32, #tpu.memory_space<vmem>>, vector<32x32xf32>
    %cst_45 = arith.constant dense<0.000000e+00> : vector<16x32xf32>
    %143 = tpu.matmul %141, %142, %cst_45 {dimension_numbers = #tpu.dot_dimension_numbers<[1], [0], [0], [1], [0, 0, 1, 1], [], []>} : vector<16x32xf32>, vector<32x32xf32>, vector<16x32xf32> -> vector<16x32xf32>
    %c0_46 = arith.constant 0 : index
    %c0_47 = arith.constant 0 : index
    %c0_48 = arith.constant 0 : index
    %144 = vector.load %arg8[%c0_46, %c0_47, %c0_48] : memref<9x1x32xf32, #tpu.memory_space<vmem>>, vector<1x1x32xf32>
    %145 = vector.shape_cast %144 : vector<1x1x32xf32> to vector<1x32xf32>
    %146 = vector.broadcast %145 : vector<1x32xf32> to vector<16x32xf32>
    %147 = arith.addf %143, %146 : vector<16x32xf32>
    %148 = arith.addf %6, %147 : vector<16x32xf32>
    %c3 = arith.constant 3 : index
    %c0_49 = arith.constant 0 : index
    %c0_50 = arith.constant 0 : index
    %149 = vector.load %arg8[%c3, %c0_49, %c0_50] : memref<9x1x32xf32, #tpu.memory_space<vmem>>, vector<1x1x32xf32>
    %150 = vector.shape_cast %149 : vector<1x1x32xf32> to vector<1x32xf32>
    %c4 = arith.constant 4 : index
    %c0_51 = arith.constant 0 : index
    %c0_52 = arith.constant 0 : index
    %151 = vector.load %arg8[%c4, %c0_51, %c0_52] : memref<9x1x32xf32, #tpu.memory_space<vmem>>, vector<1x1x32xf32>
    %152 = vector.shape_cast %151 : vector<1x1x32xf32> to vector<1x32xf32>
    %cst_53 = arith.constant dense<0.000000e+00> : vector<16xf32>
    %153 = vector.multi_reduction <add>, %148, %cst_53 [1] : vector<16x32xf32> to vector<16xf32>
    %154 = vector.shape_cast %153 : vector<16xf32> to vector<16x1xf32>
    %cst_54 = arith.constant 3.200000e+01 : f32
    %155 = vector.broadcast %cst_54 : f32 to vector<16x1xf32>
    %156 = arith.divf %154, %155 : vector<16x1xf32>
    %157 = vector.broadcast %156 : vector<16x1xf32> to vector<16x32xf32>
    %158 = arith.subf %148, %157 : vector<16x32xf32>
    %159 = vector.broadcast %156 : vector<16x1xf32> to vector<16x32xf32>
    %160 = arith.subf %148, %159 : vector<16x32xf32>
    %161 = arith.mulf %158, %160 : vector<16x32xf32>
    %cst_55 = arith.constant dense<0.000000e+00> : vector<16xf32>
    %162 = vector.multi_reduction <add>, %161, %cst_55 [1] : vector<16x32xf32> to vector<16xf32>
    %163 = vector.shape_cast %162 : vector<16xf32> to vector<16x1xf32>
    %cst_56 = arith.constant 3.200000e+01 : f32
    %164 = vector.broadcast %cst_56 : f32 to vector<16x1xf32>
    %165 = arith.divf %163, %164 : vector<16x1xf32>
    %166 = vector.broadcast %156 : vector<16x1xf32> to vector<16x32xf32>
    %167 = arith.subf %148, %166 : vector<16x32xf32>
    %cst_57 = arith.constant 9.99999974E-6 : f32
    %168 = vector.broadcast %cst_57 : f32 to vector<16x1xf32>
    %169 = arith.addf %165, %168 : vector<16x1xf32>
    %170 = math.rsqrt %169 : vector<16x1xf32>
    %171 = vector.broadcast %170 : vector<16x1xf32> to vector<16x32xf32>
    %172 = arith.mulf %167, %171 : vector<16x32xf32>
    %173 = vector.broadcast %150 : vector<1x32xf32> to vector<16x32xf32>
    %174 = arith.mulf %172, %173 : vector<16x32xf32>
    %175 = vector.broadcast %152 : vector<1x32xf32> to vector<16x32xf32>
    %176 = arith.addf %174, %175 : vector<16x32xf32>
    %c1 = arith.constant 1 : index
    %c0_58 = arith.constant 0 : index
    %c0_59 = arith.constant 0 : index
    %177 = vector.load %arg3[%c1, %c0_58, %c0_59] : memref<2x32x96xf32, #tpu.memory_space<vmem>>, vector<1x32x96xf32>
    %178 = vector.shape_cast %177 : vector<1x32x96xf32> to vector<32x96xf32>
    %cst_60 = arith.constant dense<0.000000e+00> : vector<16x96xf32>
    %179 = tpu.matmul %176, %178, %cst_60 {dimension_numbers = #tpu.dot_dimension_numbers<[1], [0], [0], [1], [0, 0, 1, 1], [], []>} : vector<16x32xf32>, vector<32x96xf32>, vector<16x96xf32> -> vector<16x96xf32>
    %c1_61 = arith.constant 1 : index
    %c0_62 = arith.constant 0 : index
    %c0_63 = arith.constant 0 : index
    %180 = vector.load %arg4[%c1_61, %c0_62, %c0_63] : memref<2x1x96xf32, #tpu.memory_space<vmem>>, vector<1x1x96xf32>
    %181 = vector.shape_cast %180 : vector<1x1x96xf32> to vector<1x96xf32>
    %182 = vector.broadcast %181 : vector<1x96xf32> to vector<16x96xf32>
    %183 = arith.addf %179, %182 : vector<16x96xf32>
    %c1_64 = arith.constant 1 : index
    %c0_65 = arith.constant 0 : index
    %c0_66 = arith.constant 0 : index
    %184 = vector.load %arg3[%c1_64, %c0_65, %c0_66] : memref<2x32x96xf32, #tpu.memory_space<vmem>>, vector<1x32x96xf32>
    %185 = vector.shape_cast %184 : vector<1x32x96xf32> to vector<32x96xf32>
    %cst_67 = arith.constant dense<0.000000e+00> : vector<16x96xf32>
    %186 = tpu.matmul %7, %185, %cst_67 {dimension_numbers = #tpu.dot_dimension_numbers<[1], [0], [0], [1], [0, 0, 1, 1], [], []>} : vector<16x32xf32>, vector<32x96xf32>, vector<16x96xf32> -> vector<16x96xf32>
    %c1_68 = arith.constant 1 : index
    %c0_69 = arith.constant 0 : index
    %c0_70 = arith.constant 0 : index
    %187 = vector.load %arg4[%c1_68, %c0_69, %c0_70] : memref<2x1x96xf32, #tpu.memory_space<vmem>>, vector<1x1x96xf32>
    %188 = vector.shape_cast %187 : vector<1x1x96xf32> to vector<1x96xf32>
    %189 = vector.broadcast %188 : vector<1x96xf32> to vector<16x96xf32>
    %190 = arith.addf %186, %189 : vector<16x96xf32>
    %191 = vector.extract_strided_slice %183 {offsets = [0, 0], sizes = [8, 96], strides = [1, 1]} : vector<16x96xf32> to vector<8x96xf32>
    %192 = vector.extract_strided_slice %190 {offsets = [0, 0], sizes = [8, 96], strides = [1, 1]} : vector<16x96xf32> to vector<8x96xf32>
    %cst_71 = arith.constant 0.000000e+00 : f32
    %193 = vector.broadcast %cst_71 : f32 to vector<8x8xf32>
    %194 = vector.extract_strided_slice %191 {offsets = [0, 0], sizes = [8, 8], strides = [1, 1]} : vector<8x96xf32> to vector<8x8xf32>
    %195 = vector.extract_strided_slice %192 {offsets = [0, 32], sizes = [8, 8], strides = [1, 1]} : vector<8x96xf32> to vector<8x8xf32>
    %196 = vector.extract_strided_slice %192 {offsets = [0, 64], sizes = [8, 8], strides = [1, 1]} : vector<8x96xf32> to vector<8x8xf32>
    %cst_72 = arith.constant dense<0.000000e+00> : vector<8x8xf32>
    %197 = tpu.matmul %194, %195, %cst_72 {dimension_numbers = #tpu.dot_dimension_numbers<[1], [1], [0], [0], [0, 0, 1, 0], [], []>} : vector<8x8xf32>, vector<8x8xf32>, vector<8x8xf32> -> vector<8x8xf32>
    %cst_73 = arith.constant dense<0xFF800000> : vector<8xf32>
    %198 = vector.multi_reduction <maximumf>, %197, %cst_73 [1] : vector<8x8xf32> to vector<8xf32>
    %199 = vector.shape_cast %198 : vector<8xf32> to vector<8x1xf32>
    %200 = vector.broadcast %199 : vector<8x1xf32> to vector<8x8xf32>
    %201 = arith.subf %197, %200 : vector<8x8xf32>
    %202 = math.exp %201 : vector<8x8xf32>
    %cst_74 = arith.constant dense<0.000000e+00> : vector<8xf32>
    %203 = vector.multi_reduction <add>, %202, %cst_74 [1] : vector<8x8xf32> to vector<8xf32>
    %204 = vector.shape_cast %203 : vector<8xf32> to vector<8x1xf32>
    %205 = vector.broadcast %204 : vector<8x1xf32> to vector<8x8xf32>
    %206 = arith.divf %202, %205 : vector<8x8xf32>
    %cst_75 = arith.constant 2.500000e-01 : f32
    %207 = vector.broadcast %cst_75 : f32 to vector<8x8xf32>
    %208 = arith.mulf %206, %207 : vector<8x8xf32>
    %209 = arith.addf %193, %208 : vector<8x8xf32>
    %cst_76 = arith.constant dense<0.000000e+00> : vector<8x8xf32>
    %210 = tpu.matmul %206, %196, %cst_76 {dimension_numbers = #tpu.dot_dimension_numbers<[1], [0], [0], [1], [0, 0, 1, 1], [], []>} : vector<8x8xf32>, vector<8x8xf32>, vector<8x8xf32> -> vector<8x8xf32>
    %211 = vector.extract_strided_slice %191 {offsets = [0, 8], sizes = [8, 8], strides = [1, 1]} : vector<8x96xf32> to vector<8x8xf32>
    %212 = vector.extract_strided_slice %192 {offsets = [0, 40], sizes = [8, 8], strides = [1, 1]} : vector<8x96xf32> to vector<8x8xf32>
    %213 = vector.extract_strided_slice %192 {offsets = [0, 72], sizes = [8, 8], strides = [1, 1]} : vector<8x96xf32> to vector<8x8xf32>
    %cst_77 = arith.constant dense<0.000000e+00> : vector<8x8xf32>
    %214 = tpu.matmul %211, %212, %cst_77 {dimension_numbers = #tpu.dot_dimension_numbers<[1], [1], [0], [0], [0, 0, 1, 0], [], []>} : vector<8x8xf32>, vector<8x8xf32>, vector<8x8xf32> -> vector<8x8xf32>
    %cst_78 = arith.constant dense<0xFF800000> : vector<8xf32>
    %215 = vector.multi_reduction <maximumf>, %214, %cst_78 [1] : vector<8x8xf32> to vector<8xf32>
    %216 = vector.shape_cast %215 : vector<8xf32> to vector<8x1xf32>
    %217 = vector.broadcast %216 : vector<8x1xf32> to vector<8x8xf32>
    %218 = arith.subf %214, %217 : vector<8x8xf32>
    %219 = math.exp %218 : vector<8x8xf32>
    %cst_79 = arith.constant dense<0.000000e+00> : vector<8xf32>
    %220 = vector.multi_reduction <add>, %219, %cst_79 [1] : vector<8x8xf32> to vector<8xf32>
    %221 = vector.shape_cast %220 : vector<8xf32> to vector<8x1xf32>
    %222 = vector.broadcast %221 : vector<8x1xf32> to vector<8x8xf32>
    %223 = arith.divf %219, %222 : vector<8x8xf32>
    %cst_80 = arith.constant 2.500000e-01 : f32
    %224 = vector.broadcast %cst_80 : f32 to vector<8x8xf32>
    %225 = arith.mulf %223, %224 : vector<8x8xf32>
    %226 = arith.addf %209, %225 : vector<8x8xf32>
    %cst_81 = arith.constant dense<0.000000e+00> : vector<8x8xf32>
    %227 = tpu.matmul %223, %213, %cst_81 {dimension_numbers = #tpu.dot_dimension_numbers<[1], [0], [0], [1], [0, 0, 1, 1], [], []>} : vector<8x8xf32>, vector<8x8xf32>, vector<8x8xf32> -> vector<8x8xf32>
    %228 = vector.extract_strided_slice %191 {offsets = [0, 16], sizes = [8, 8], strides = [1, 1]} : vector<8x96xf32> to vector<8x8xf32>
    %229 = vector.extract_strided_slice %192 {offsets = [0, 48], sizes = [8, 8], strides = [1, 1]} : vector<8x96xf32> to vector<8x8xf32>
    %230 = vector.extract_strided_slice %192 {offsets = [0, 80], sizes = [8, 8], strides = [1, 1]} : vector<8x96xf32> to vector<8x8xf32>
    %cst_82 = arith.constant dense<0.000000e+00> : vector<8x8xf32>
    %231 = tpu.matmul %228, %229, %cst_82 {dimension_numbers = #tpu.dot_dimension_numbers<[1], [1], [0], [0], [0, 0, 1, 0], [], []>} : vector<8x8xf32>, vector<8x8xf32>, vector<8x8xf32> -> vector<8x8xf32>
    %cst_83 = arith.constant dense<0xFF800000> : vector<8xf32>
    %232 = vector.multi_reduction <maximumf>, %231, %cst_83 [1] : vector<8x8xf32> to vector<8xf32>
    %233 = vector.shape_cast %232 : vector<8xf32> to vector<8x1xf32>
    %234 = vector.broadcast %233 : vector<8x1xf32> to vector<8x8xf32>
    %235 = arith.subf %231, %234 : vector<8x8xf32>
    %236 = math.exp %235 : vector<8x8xf32>
    %cst_84 = arith.constant dense<0.000000e+00> : vector<8xf32>
    %237 = vector.multi_reduction <add>, %236, %cst_84 [1] : vector<8x8xf32> to vector<8xf32>
    %238 = vector.shape_cast %237 : vector<8xf32> to vector<8x1xf32>
    %239 = vector.broadcast %238 : vector<8x1xf32> to vector<8x8xf32>
    %240 = arith.divf %236, %239 : vector<8x8xf32>
    %cst_85 = arith.constant 2.500000e-01 : f32
    %241 = vector.broadcast %cst_85 : f32 to vector<8x8xf32>
    %242 = arith.mulf %240, %241 : vector<8x8xf32>
    %243 = arith.addf %226, %242 : vector<8x8xf32>
    %cst_86 = arith.constant dense<0.000000e+00> : vector<8x8xf32>
    %244 = tpu.matmul %240, %230, %cst_86 {dimension_numbers = #tpu.dot_dimension_numbers<[1], [0], [0], [1], [0, 0, 1, 1], [], []>} : vector<8x8xf32>, vector<8x8xf32>, vector<8x8xf32> -> vector<8x8xf32>
    %245 = vector.extract_strided_slice %191 {offsets = [0, 24], sizes = [8, 8], strides = [1, 1]} : vector<8x96xf32> to vector<8x8xf32>
    %246 = vector.extract_strided_slice %192 {offsets = [0, 56], sizes = [8, 8], strides = [1, 1]} : vector<8x96xf32> to vector<8x8xf32>
    %247 = vector.extract_strided_slice %192 {offsets = [0, 88], sizes = [8, 8], strides = [1, 1]} : vector<8x96xf32> to vector<8x8xf32>
    %cst_87 = arith.constant dense<0.000000e+00> : vector<8x8xf32>
    %248 = tpu.matmul %245, %246, %cst_87 {dimension_numbers = #tpu.dot_dimension_numbers<[1], [1], [0], [0], [0, 0, 1, 0], [], []>} : vector<8x8xf32>, vector<8x8xf32>, vector<8x8xf32> -> vector<8x8xf32>
    %cst_88 = arith.constant dense<0xFF800000> : vector<8xf32>
    %249 = vector.multi_reduction <maximumf>, %248, %cst_88 [1] : vector<8x8xf32> to vector<8xf32>
    %250 = vector.shape_cast %249 : vector<8xf32> to vector<8x1xf32>
    %251 = vector.broadcast %250 : vector<8x1xf32> to vector<8x8xf32>
    %252 = arith.subf %248, %251 : vector<8x8xf32>
    %253 = math.exp %252 : vector<8x8xf32>
    %cst_89 = arith.constant dense<0.000000e+00> : vector<8xf32>
    %254 = vector.multi_reduction <add>, %253, %cst_89 [1] : vector<8x8xf32> to vector<8xf32>
    %255 = vector.shape_cast %254 : vector<8xf32> to vector<8x1xf32>
    %256 = vector.broadcast %255 : vector<8x1xf32> to vector<8x8xf32>
    %257 = arith.divf %253, %256 : vector<8x8xf32>
    %cst_90 = arith.constant 2.500000e-01 : f32
    %258 = vector.broadcast %cst_90 : f32 to vector<8x8xf32>
    %259 = arith.mulf %257, %258 : vector<8x8xf32>
    %260 = arith.addf %243, %259 : vector<8x8xf32>
    %cst_91 = arith.constant dense<0.000000e+00> : vector<8x8xf32>
    %261 = tpu.matmul %257, %247, %cst_91 {dimension_numbers = #tpu.dot_dimension_numbers<[1], [0], [0], [1], [0, 0, 1, 1], [], []>} : vector<8x8xf32>, vector<8x8xf32>, vector<8x8xf32> -> vector<8x8xf32>
    %262 = tpu.concatenate %210, %227, %244, %261 in 1 : vector<8x8xf32>, vector<8x8xf32>, vector<8x8xf32>, vector<8x8xf32> -> vector<8x32xf32>
    %263 = vector.extract_strided_slice %183 {offsets = [8, 0], sizes = [8, 96], strides = [1, 1]} : vector<16x96xf32> to vector<8x96xf32>
    %264 = vector.extract_strided_slice %190 {offsets = [8, 0], sizes = [8, 96], strides = [1, 1]} : vector<16x96xf32> to vector<8x96xf32>
    %cst_92 = arith.constant 0.000000e+00 : f32
    %265 = vector.broadcast %cst_92 : f32 to vector<8x8xf32>
    %266 = vector.extract_strided_slice %263 {offsets = [0, 0], sizes = [8, 8], strides = [1, 1]} : vector<8x96xf32> to vector<8x8xf32>
    %267 = vector.extract_strided_slice %264 {offsets = [0, 32], sizes = [8, 8], strides = [1, 1]} : vector<8x96xf32> to vector<8x8xf32>
    %268 = vector.extract_strided_slice %264 {offsets = [0, 64], sizes = [8, 8], strides = [1, 1]} : vector<8x96xf32> to vector<8x8xf32>
    %cst_93 = arith.constant dense<0.000000e+00> : vector<8x8xf32>
    %269 = tpu.matmul %266, %267, %cst_93 {dimension_numbers = #tpu.dot_dimension_numbers<[1], [1], [0], [0], [0, 0, 1, 0], [], []>} : vector<8x8xf32>, vector<8x8xf32>, vector<8x8xf32> -> vector<8x8xf32>
    %cst_94 = arith.constant dense<0xFF800000> : vector<8xf32>
    %270 = vector.multi_reduction <maximumf>, %269, %cst_94 [1] : vector<8x8xf32> to vector<8xf32>
    %271 = vector.shape_cast %270 : vector<8xf32> to vector<8x1xf32>
    %272 = vector.broadcast %271 : vector<8x1xf32> to vector<8x8xf32>
    %273 = arith.subf %269, %272 : vector<8x8xf32>
    %274 = math.exp %273 : vector<8x8xf32>
    %cst_95 = arith.constant dense<0.000000e+00> : vector<8xf32>
    %275 = vector.multi_reduction <add>, %274, %cst_95 [1] : vector<8x8xf32> to vector<8xf32>
    %276 = vector.shape_cast %275 : vector<8xf32> to vector<8x1xf32>
    %277 = vector.broadcast %276 : vector<8x1xf32> to vector<8x8xf32>
    %278 = arith.divf %274, %277 : vector<8x8xf32>
    %cst_96 = arith.constant 2.500000e-01 : f32
    %279 = vector.broadcast %cst_96 : f32 to vector<8x8xf32>
    %280 = arith.mulf %278, %279 : vector<8x8xf32>
    %281 = arith.addf %265, %280 : vector<8x8xf32>
    %cst_97 = arith.constant dense<0.000000e+00> : vector<8x8xf32>
    %282 = tpu.matmul %278, %268, %cst_97 {dimension_numbers = #tpu.dot_dimension_numbers<[1], [0], [0], [1], [0, 0, 1, 1], [], []>} : vector<8x8xf32>, vector<8x8xf32>, vector<8x8xf32> -> vector<8x8xf32>
    %283 = vector.extract_strided_slice %263 {offsets = [0, 8], sizes = [8, 8], strides = [1, 1]} : vector<8x96xf32> to vector<8x8xf32>
    %284 = vector.extract_strided_slice %264 {offsets = [0, 40], sizes = [8, 8], strides = [1, 1]} : vector<8x96xf32> to vector<8x8xf32>
    %285 = vector.extract_strided_slice %264 {offsets = [0, 72], sizes = [8, 8], strides = [1, 1]} : vector<8x96xf32> to vector<8x8xf32>
    %cst_98 = arith.constant dense<0.000000e+00> : vector<8x8xf32>
    %286 = tpu.matmul %283, %284, %cst_98 {dimension_numbers = #tpu.dot_dimension_numbers<[1], [1], [0], [0], [0, 0, 1, 0], [], []>} : vector<8x8xf32>, vector<8x8xf32>, vector<8x8xf32> -> vector<8x8xf32>
    %cst_99 = arith.constant dense<0xFF800000> : vector<8xf32>
    %287 = vector.multi_reduction <maximumf>, %286, %cst_99 [1] : vector<8x8xf32> to vector<8xf32>
    %288 = vector.shape_cast %287 : vector<8xf32> to vector<8x1xf32>
    %289 = vector.broadcast %288 : vector<8x1xf32> to vector<8x8xf32>
    %290 = arith.subf %286, %289 : vector<8x8xf32>
    %291 = math.exp %290 : vector<8x8xf32>
    %cst_100 = arith.constant dense<0.000000e+00> : vector<8xf32>
    %292 = vector.multi_reduction <add>, %291, %cst_100 [1] : vector<8x8xf32> to vector<8xf32>
    %293 = vector.shape_cast %292 : vector<8xf32> to vector<8x1xf32>
    %294 = vector.broadcast %293 : vector<8x1xf32> to vector<8x8xf32>
    %295 = arith.divf %291, %294 : vector<8x8xf32>
    %cst_101 = arith.constant 2.500000e-01 : f32
    %296 = vector.broadcast %cst_101 : f32 to vector<8x8xf32>
    %297 = arith.mulf %295, %296 : vector<8x8xf32>
    %298 = arith.addf %281, %297 : vector<8x8xf32>
    %cst_102 = arith.constant dense<0.000000e+00> : vector<8x8xf32>
    %299 = tpu.matmul %295, %285, %cst_102 {dimension_numbers = #tpu.dot_dimension_numbers<[1], [0], [0], [1], [0, 0, 1, 1], [], []>} : vector<8x8xf32>, vector<8x8xf32>, vector<8x8xf32> -> vector<8x8xf32>
    %300 = vector.extract_strided_slice %263 {offsets = [0, 16], sizes = [8, 8], strides = [1, 1]} : vector<8x96xf32> to vector<8x8xf32>
    %301 = vector.extract_strided_slice %264 {offsets = [0, 48], sizes = [8, 8], strides = [1, 1]} : vector<8x96xf32> to vector<8x8xf32>
    %302 = vector.extract_strided_slice %264 {offsets = [0, 80], sizes = [8, 8], strides = [1, 1]} : vector<8x96xf32> to vector<8x8xf32>
    %cst_103 = arith.constant dense<0.000000e+00> : vector<8x8xf32>
    %303 = tpu.matmul %300, %301, %cst_103 {dimension_numbers = #tpu.dot_dimension_numbers<[1], [1], [0], [0], [0, 0, 1, 0], [], []>} : vector<8x8xf32>, vector<8x8xf32>, vector<8x8xf32> -> vector<8x8xf32>
    %cst_104 = arith.constant dense<0xFF800000> : vector<8xf32>
    %304 = vector.multi_reduction <maximumf>, %303, %cst_104 [1] : vector<8x8xf32> to vector<8xf32>
    %305 = vector.shape_cast %304 : vector<8xf32> to vector<8x1xf32>
    %306 = vector.broadcast %305 : vector<8x1xf32> to vector<8x8xf32>
    %307 = arith.subf %303, %306 : vector<8x8xf32>
    %308 = math.exp %307 : vector<8x8xf32>
    %cst_105 = arith.constant dense<0.000000e+00> : vector<8xf32>
    %309 = vector.multi_reduction <add>, %308, %cst_105 [1] : vector<8x8xf32> to vector<8xf32>
    %310 = vector.shape_cast %309 : vector<8xf32> to vector<8x1xf32>
    %311 = vector.broadcast %310 : vector<8x1xf32> to vector<8x8xf32>
    %312 = arith.divf %308, %311 : vector<8x8xf32>
    %cst_106 = arith.constant 2.500000e-01 : f32
    %313 = vector.broadcast %cst_106 : f32 to vector<8x8xf32>
    %314 = arith.mulf %312, %313 : vector<8x8xf32>
    %315 = arith.addf %298, %314 : vector<8x8xf32>
    %cst_107 = arith.constant dense<0.000000e+00> : vector<8x8xf32>
    %316 = tpu.matmul %312, %302, %cst_107 {dimension_numbers = #tpu.dot_dimension_numbers<[1], [0], [0], [1], [0, 0, 1, 1], [], []>} : vector<8x8xf32>, vector<8x8xf32>, vector<8x8xf32> -> vector<8x8xf32>
    %317 = vector.extract_strided_slice %263 {offsets = [0, 24], sizes = [8, 8], strides = [1, 1]} : vector<8x96xf32> to vector<8x8xf32>
    %318 = vector.extract_strided_slice %264 {offsets = [0, 56], sizes = [8, 8], strides = [1, 1]} : vector<8x96xf32> to vector<8x8xf32>
    %319 = vector.extract_strided_slice %264 {offsets = [0, 88], sizes = [8, 8], strides = [1, 1]} : vector<8x96xf32> to vector<8x8xf32>
    %cst_108 = arith.constant dense<0.000000e+00> : vector<8x8xf32>
    %320 = tpu.matmul %317, %318, %cst_108 {dimension_numbers = #tpu.dot_dimension_numbers<[1], [1], [0], [0], [0, 0, 1, 0], [], []>} : vector<8x8xf32>, vector<8x8xf32>, vector<8x8xf32> -> vector<8x8xf32>
    %cst_109 = arith.constant dense<0xFF800000> : vector<8xf32>
    %321 = vector.multi_reduction <maximumf>, %320, %cst_109 [1] : vector<8x8xf32> to vector<8xf32>
    %322 = vector.shape_cast %321 : vector<8xf32> to vector<8x1xf32>
    %323 = vector.broadcast %322 : vector<8x1xf32> to vector<8x8xf32>
    %324 = arith.subf %320, %323 : vector<8x8xf32>
    %325 = math.exp %324 : vector<8x8xf32>
    %cst_110 = arith.constant dense<0.000000e+00> : vector<8xf32>
    %326 = vector.multi_reduction <add>, %325, %cst_110 [1] : vector<8x8xf32> to vector<8xf32>
    %327 = vector.shape_cast %326 : vector<8xf32> to vector<8x1xf32>
    %328 = vector.broadcast %327 : vector<8x1xf32> to vector<8x8xf32>
    %329 = arith.divf %325, %328 : vector<8x8xf32>
    %cst_111 = arith.constant 2.500000e-01 : f32
    %330 = vector.broadcast %cst_111 : f32 to vector<8x8xf32>
    %331 = arith.mulf %329, %330 : vector<8x8xf32>
    %332 = arith.addf %315, %331 : vector<8x8xf32>
    %cst_112 = arith.constant dense<0.000000e+00> : vector<8x8xf32>
    %333 = tpu.matmul %329, %319, %cst_112 {dimension_numbers = #tpu.dot_dimension_numbers<[1], [0], [0], [1], [0, 0, 1, 1], [], []>} : vector<8x8xf32>, vector<8x8xf32>, vector<8x8xf32> -> vector<8x8xf32>
    %334 = tpu.concatenate %282, %299, %316, %333 in 1 : vector<8x8xf32>, vector<8x8xf32>, vector<8x8xf32>, vector<8x8xf32> -> vector<8x32xf32>
    %335 = tpu.concatenate %262, %334 in 0 : vector<8x32xf32>, vector<8x32xf32> -> vector<16x32xf32>
    %c32 = arith.constant 32 : index
    %c0_113 = arith.constant 0 : index
    %336 = vector.load %arg5[%c32, %c0_113] : memref<128x32xf32, #tpu.memory_space<vmem>>, vector<32x32xf32>
    %cst_114 = arith.constant dense<0.000000e+00> : vector<16x32xf32>
    %337 = tpu.matmul %335, %336, %cst_114 {dimension_numbers = #tpu.dot_dimension_numbers<[1], [0], [0], [1], [0, 0, 1, 1], [], []>} : vector<16x32xf32>, vector<32x32xf32>, vector<16x32xf32> -> vector<16x32xf32>
    %c1_115 = arith.constant 1 : index
    %c0_116 = arith.constant 0 : index
    %c0_117 = arith.constant 0 : index
    %338 = vector.load %arg8[%c1_115, %c0_116, %c0_117] : memref<9x1x32xf32, #tpu.memory_space<vmem>>, vector<1x1x32xf32>
    %339 = vector.shape_cast %338 : vector<1x1x32xf32> to vector<1x32xf32>
    %340 = vector.broadcast %339 : vector<1x32xf32> to vector<16x32xf32>
    %341 = arith.addf %337, %340 : vector<16x32xf32>
    %342 = tpu.concatenate %260, %332 in 0 : vector<8x8xf32>, vector<8x8xf32> -> vector<16x8xf32>
    %c0_118 = arith.constant 0 : index
    %c0_119 = arith.constant 0 : index
    %343 = vector.load %arg10[%c0_118, %c0_119] : memref<16x8xf32, #tpu.memory_space<vmem>>, vector<16x8xf32>
    tpu.vector_store %arg10[%c0_118, %c0_119], %342 {strides = array<i32>} : memref<16x8xf32, #tpu.memory_space<vmem>>, vector<16x8xf32>,
    %344 = arith.addf %176, %341 : vector<16x32xf32>
    %c5 = arith.constant 5 : index
    %c0_120 = arith.constant 0 : index
    %c0_121 = arith.constant 0 : index
    %345 = vector.load %arg8[%c5, %c0_120, %c0_121] : memref<9x1x32xf32, #tpu.memory_space<vmem>>, vector<1x1x32xf32>
    %346 = vector.shape_cast %345 : vector<1x1x32xf32> to vector<1x32xf32>
    %c6 = arith.constant 6 : index
    %c0_122 = arith.constant 0 : index
    %c0_123 = arith.constant 0 : index
    %347 = vector.load %arg8[%c6, %c0_122, %c0_123] : memref<9x1x32xf32, #tpu.memory_space<vmem>>, vector<1x1x32xf32>
    %348 = vector.shape_cast %347 : vector<1x1x32xf32> to vector<1x32xf32>
    %cst_124 = arith.constant dense<0.000000e+00> : vector<16xf32>
    %349 = vector.multi_reduction <add>, %344, %cst_124 [1] : vector<16x32xf32> to vector<16xf32>
    %350 = vector.shape_cast %349 : vector<16xf32> to vector<16x1xf32>
    %cst_125 = arith.constant 3.200000e+01 : f32
    %351 = vector.broadcast %cst_125 : f32 to vector<16x1xf32>
    %352 = arith.divf %350, %351 : vector<16x1xf32>
    %353 = vector.broadcast %352 : vector<16x1xf32> to vector<16x32xf32>
    %354 = arith.subf %344, %353 : vector<16x32xf32>
    %355 = vector.broadcast %352 : vector<16x1xf32> to vector<16x32xf32>
    %356 = arith.subf %344, %355 : vector<16x32xf32>
    %357 = arith.mulf %354, %356 : vector<16x32xf32>
    %cst_126 = arith.constant dense<0.000000e+00> : vector<16xf32>
    %358 = vector.multi_reduction <add>, %357, %cst_126 [1] : vector<16x32xf32> to vector<16xf32>
    %359 = vector.shape_cast %358 : vector<16xf32> to vector<16x1xf32>
    %cst_127 = arith.constant 3.200000e+01 : f32
    %360 = vector.broadcast %cst_127 : f32 to vector<16x1xf32>
    %361 = arith.divf %359, %360 : vector<16x1xf32>
    %362 = vector.broadcast %352 : vector<16x1xf32> to vector<16x32xf32>
    %363 = arith.subf %344, %362 : vector<16x32xf32>
    %cst_128 = arith.constant 9.99999974E-6 : f32
    %364 = vector.broadcast %cst_128 : f32 to vector<16x1xf32>
    %365 = arith.addf %361, %364 : vector<16x1xf32>
    %366 = math.rsqrt %365 : vector<16x1xf32>
    %367 = vector.broadcast %366 : vector<16x1xf32> to vector<16x32xf32>
    %368 = arith.mulf %363, %367 : vector<16x32xf32>
    %369 = vector.broadcast %346 : vector<1x32xf32> to vector<16x32xf32>
    %370 = arith.mulf %368, %369 : vector<16x32xf32>
    %371 = vector.broadcast %348 : vector<1x32xf32> to vector<16x32xf32>
    %372 = arith.addf %370, %371 : vector<16x32xf32>
    %c0_129 = arith.constant 0 : index
    %c0_130 = arith.constant 0 : index
    %373 = vector.load %arg6[%c0_129, %c0_130] : memref<32x64xf32, #tpu.memory_space<vmem>>, vector<32x64xf32>
    %cst_131 = arith.constant dense<0.000000e+00> : vector<16x64xf32>
    %374 = tpu.matmul %372, %373, %cst_131 {dimension_numbers = #tpu.dot_dimension_numbers<[1], [0], [0], [1], [0, 0, 1, 1], [], []>} : vector<16x32xf32>, vector<32x64xf32>, vector<16x64xf32> -> vector<16x64xf32>
    %c0_132 = arith.constant 0 : index
    %c0_133 = arith.constant 0 : index
    %375 = vector.load %arg7[%c0_132, %c0_133] : memref<1x64xf32, #tpu.memory_space<vmem>>, vector<1x64xf32>
    %376 = vector.broadcast %375 : vector<1x64xf32> to vector<16x64xf32>
    %377 = arith.addf %374, %376 : vector<16x64xf32>
    %cst_134 = arith.constant 0.000000e+00 : f32
    %378 = vector.broadcast %cst_134 : f32 to vector<16x64xf32>
    %379 = arith.maximumf %377, %378 : vector<16x64xf32>
    %c64 = arith.constant 64 : index
    %c0_135 = arith.constant 0 : index
    %380 = vector.load %arg5[%c64, %c0_135] : memref<128x32xf32, #tpu.memory_space<vmem>>, vector<64x32xf32>
    %cst_136 = arith.constant dense<0.000000e+00> : vector<16x32xf32>
    %381 = tpu.matmul %379, %380, %cst_136 {dimension_numbers = #tpu.dot_dimension_numbers<[1], [0], [0], [1], [0, 0, 1, 1], [], []>} : vector<16x64xf32>, vector<64x32xf32>, vector<16x32xf32> -> vector<16x32xf32>
    %c2 = arith.constant 2 : index
    %c0_137 = arith.constant 0 : index
    %c0_138 = arith.constant 0 : index
    %382 = vector.load %arg8[%c2, %c0_137, %c0_138] : memref<9x1x32xf32, #tpu.memory_space<vmem>>, vector<1x1x32xf32>
    %383 = vector.shape_cast %382 : vector<1x1x32xf32> to vector<1x32xf32>
    %384 = vector.broadcast %383 : vector<1x32xf32> to vector<16x32xf32>
    %385 = arith.addf %381, %384 : vector<16x32xf32>
    %386 = arith.addf %372, %385 : vector<16x32xf32>
    %c7 = arith.constant 7 : index
    %c0_139 = arith.constant 0 : index
    %c0_140 = arith.constant 0 : index
    %387 = vector.load %arg8[%c7, %c0_139, %c0_140] : memref<9x1x32xf32, #tpu.memory_space<vmem>>, vector<1x1x32xf32>
    %388 = vector.shape_cast %387 : vector<1x1x32xf32> to vector<1x32xf32>
    %c8 = arith.constant 8 : index
    %c0_141 = arith.constant 0 : index
    %c0_142 = arith.constant 0 : index
    %389 = vector.load %arg8[%c8, %c0_141, %c0_142] : memref<9x1x32xf32, #tpu.memory_space<vmem>>, vector<1x1x32xf32>
    %390 = vector.shape_cast %389 : vector<1x1x32xf32> to vector<1x32xf32>
    %cst_143 = arith.constant dense<0.000000e+00> : vector<16xf32>
    %391 = vector.multi_reduction <add>, %386, %cst_143 [1] : vector<16x32xf32> to vector<16xf32>
    %392 = vector.shape_cast %391 : vector<16xf32> to vector<16x1xf32>
    %cst_144 = arith.constant 3.200000e+01 : f32
    %393 = vector.broadcast %cst_144 : f32 to vector<16x1xf32>
    %394 = arith.divf %392, %393 : vector<16x1xf32>
    %395 = vector.broadcast %394 : vector<16x1xf32> to vector<16x32xf32>
    %396 = arith.subf %386, %395 : vector<16x32xf32>
    %397 = vector.broadcast %394 : vector<16x1xf32> to vector<16x32xf32>
    %398 = arith.subf %386, %397 : vector<16x32xf32>
    %399 = arith.mulf %396, %398 : vector<16x32xf32>
    %cst_145 = arith.constant dense<0.000000e+00> : vector<16xf32>
    %400 = vector.multi_reduction <add>, %399, %cst_145 [1] : vector<16x32xf32> to vector<16xf32>
    %401 = vector.shape_cast %400 : vector<16xf32> to vector<16x1xf32>
    %cst_146 = arith.constant 3.200000e+01 : f32
    %402 = vector.broadcast %cst_146 : f32 to vector<16x1xf32>
    %403 = arith.divf %401, %402 : vector<16x1xf32>
    %404 = vector.broadcast %394 : vector<16x1xf32> to vector<16x32xf32>
    %405 = arith.subf %386, %404 : vector<16x32xf32>
    %cst_147 = arith.constant 9.99999974E-6 : f32
    %406 = vector.broadcast %cst_147 : f32 to vector<16x1xf32>
    %407 = arith.addf %403, %406 : vector<16x1xf32>
    %408 = math.rsqrt %407 : vector<16x1xf32>
    %409 = vector.broadcast %408 : vector<16x1xf32> to vector<16x32xf32>
    %410 = arith.mulf %405, %409 : vector<16x32xf32>
    %411 = vector.broadcast %388 : vector<1x32xf32> to vector<16x32xf32>
    %412 = arith.mulf %410, %411 : vector<16x32xf32>
    %413 = vector.broadcast %390 : vector<1x32xf32> to vector<16x32xf32>
    %414 = arith.addf %412, %413 : vector<16x32xf32>
    %c0_148 = arith.constant 0 : index
    %c0_149 = arith.constant 0 : index
    %415 = vector.load %arg9[%c0_148, %c0_149] : memref<16x32xf32, #tpu.memory_space<vmem>>, vector<16x32xf32>
    tpu.vector_store %arg9[%c0_148, %c0_149], %414 {strides = array<i32>} : memref<16x32xf32, #tpu.memory_space<vmem>>, vector<16x32xf32>,
    return
  }
  func.func @transform_0(%arg0: i32) -> (i32, i32) {
    %c0_i32 = arith.constant 0 : i32
    %c0_i32_0 = arith.constant 0 : i32
    %c0_i32_1 = arith.constant 0 : i32
    return %c0_i32, %c0_i32_0 : i32, i32
  }
  func.func @transform_1(%arg0: i32) -> (i32, i32) {
    %c0_i32 = arith.constant 0 : i32
    %c0_i32_0 = arith.constant 0 : i32
    %c0_i32_1 = arith.constant 0 : i32
    return %c0_i32, %c0_i32_0 : i32, i32
  }
  func.func @transform_2(%arg0: i32) -> (i32, i32, i32) {
    %c0_i32 = arith.constant 0 : i32
    %c0_i32_0 = arith.constant 0 : i32
    %c0_i32_1 = arith.constant 0 : i32
    %c0_i32_2 = arith.constant 0 : i32
    return %c0_i32, %c0_i32_0, %c0_i32_1 : i32, i32, i32
  }
  func.func @transform_3(%arg0: i32) -> (i32, i32, i32) {
    %c0_i32 = arith.constant 0 : i32
    %c0_i32_0 = arith.constant 0 : i32
    %c0_i32_1 = arith.constant 0 : i32
    %c0_i32_2 = arith.constant 0 : i32
    return %c0_i32, %c0_i32_0, %c0_i32_1 : i32, i32, i32
  }
  func.func @transform_4(%arg0: i32) -> (i32, i32) {
    %c0_i32 = arith.constant 0 : i32
    %c0_i32_0 = arith.constant 0 : i32
    %c0_i32_1 = arith.constant 0 : i32
    return %c0_i32, %c0_i32_0 : i32, i32
  }
  func.func @transform_5(%arg0: i32) -> (i32, i32) {
    %c0_i32 = arith.constant 0 : i32
    %c0_i32_0 = arith.constant 0 : i32
    %c0_i32_1 = arith.constant 0 : i32
    return %c0_i32, %c0_i32_0 : i32, i32
  }
  func.func @transform_6(%arg0: i32) -> (i32, i32) {
    %c0_i32 = arith.constant 0 : i32
    %c0_i32_0 = arith.constant 0 : i32
    %c0_i32_1 = arith.constant 0 : i32
    return %c0_i32, %c0_i32_0 : i32, i32
  }
  func.func @transform_7(%arg0: i32) -> (i32, i32, i32) {
    %c0_i32 = arith.constant 0 : i32
    %c0_i32_0 = arith.constant 0 : i32
    %c0_i32_1 = arith.constant 0 : i32
    %c0_i32_2 = arith.constant 0 : i32
    return %c0_i32, %c0_i32_0, %c0_i32_1 : i32, i32, i32
  }
  func.func @transform_8(%arg0: i32) -> (i32, i32) {
    %c0_i32 = arith.constant 0 : i32
    %c0_i32_0 = arith.constant 0 : i32
    %c0_i32_1 = arith.constant 0 : i32
    return %c0_i32, %c0_i32_0 : i32, i32
  }
  func.func @transform_9(%arg0: i32) -> (i32, i32) {
    %c0_i32 = arith.constant 0 : i32
    %c0_i32_0 = arith.constant 0 : i32
    %c0_i32_1 = arith.constant 0 : i32
    return %c0_i32, %c0_i32_0 : i32, i32
  }
}

</mosaic_0001>

<llo_original>
// kernel: transformer_decoder_layer_forward.1
$region0: #{transformer_decoder_layer_forward.1}
  #allocation0 [shape = 'u32[]', space=smem, size = 0x4, offset = 0x4, fixed_abs, tag = 'smem constant byte address 0x4 - core index']
  #allocation1 [shape = 'u32[144,128]{1,0:T(1,128)}', space=vmem, size = 0x12000, scoped, tag = 'internal scratch']
  %s0 = inlined_call_operand.vmem [shape: f32[16,32], index: 0, kind: input, shape index: {}]
  %s1 = inlined_call_operand.vmem [shape: f32[16,32], index: 1, kind: input, shape index: {}]
  %s2 = inlined_call_operand.vmem [shape: f32[2,32,96], index: 2, kind: input, shape index: {}]
  %s3 = inlined_call_operand.vmem [shape: f32[2,1,96], index: 3, kind: input, shape index: {}]
  %s4 = inlined_call_operand.vmem [shape: f32[128,32], index: 4, kind: input, shape index: {}]
  %s5 = inlined_call_operand.vmem [shape: f32[32,64], index: 5, kind: input, shape index: {}]
  %s6 = inlined_call_operand.vmem [shape: f32[1,64], index: 6, kind: input, shape index: {}]
  %s7 = inlined_call_operand.vmem [shape: f32[9,1,32], index: 7, kind: input, shape index: {}]
  %s8 = inlined_call_operand.vmem [shape: f32[16,32], index: 8, kind: output, shape index: {0}]
  %s9 = inlined_call_operand.hbm [shape: f32[16,8], index: 9, kind: output, shape index: {1}]
  %10 = xla_tuple %s8, %s9
  %s11 = sld [smem:[#allocation0]]
  $region50: #{transformer_decoder_layer_forward.1} parent=0
    _
  %s13 = ssub.s32 1, %s11
  %s14 = scalar_select 0, %s13, %s11
  $region1: #{transformer_decoder_layer_forward.1} parent=0
    #allocation2 [shape = 'u8[8192]{0}', space=vmem, size = 0x2000, scoped, tag = 'output window, operand 1, single buffered']
    #allocation3 [shape = 's32[1]{0}', space=sflag, size = 0x4, scoped, tag = 'scoped memory for transformer_decoder_layer_forward.1']
    %15 = vsyncpa [#allocation3], 0
    // Predicated region
    $region2: #{transformer_decoder_layer_forward.1} parent=1 // pred_check
      _
    $region3: #{transformer_decoder_layer_forward.1} parent=1 // pred_check_branch
      %17 = sbr.rel (0) target = $region5
    $region4: #{transformer_decoder_layer_forward.1} parent=1 // pred_region
      _
    $region5: #{transformer_decoder_layer_forward.1} parent=1 // pred_fallthru
      _
    // Predicated region
    $region6: #{transformer_decoder_layer_forward.1} parent=1 // pred_check
      _
    $region7: #{transformer_decoder_layer_forward.1} parent=1 // pred_check_branch
      %19 = sbr.rel (0) target = $region9
    $region8: #{transformer_decoder_layer_forward.1} parent=1 // pred_region
      _
    $region9: #{transformer_decoder_layer_forward.1} parent=1 // pred_fallthru
      _
    // Predicated region
    $region10: #{transformer_decoder_layer_forward.1} parent=1 // pred_check
      _
    $region11: #{transformer_decoder_layer_forward.1} parent=1 // pred_check_branch
      %21 = sbr.rel (0) target = $region13
    $region12: #{transformer_decoder_layer_forward.1} parent=1 // pred_region
      _
    $region13: #{transformer_decoder_layer_forward.1} parent=1 // pred_fallthru
      _
    // Predicated region
    $region14: #{transformer_decoder_layer_forward.1} parent=1 // pred_check
      _
    $region15: #{transformer_decoder_layer_forward.1} parent=1 // pred_check_branch
      %23 = sbr.rel (0) target = $region17
    $region16: #{transformer_decoder_layer_forward.1} parent=1 // pred_region
      _
    $region17: #{transformer_decoder_layer_forward.1} parent=1 // pred_fallthru
      _
    // Predicated region
    $region18: #{transformer_decoder_layer_forward.1} parent=1 // pred_check
      _
    $region19: #{transformer_decoder_layer_forward.1} parent=1 // pred_check_branch
      %25 = sbr.rel (0) target = $region21
    $region20: #{transformer_decoder_layer_forward.1} parent=1 // pred_region
      _
    $region21: #{transformer_decoder_layer_forward.1} parent=1 // pred_fallthru
      _
    // Predicated region
    $region22: #{transformer_decoder_layer_forward.1} parent=1 // pred_check
      _
    $region23: #{transformer_decoder_layer_forward.1} parent=1 // pred_check_branch
      %27 = sbr.rel (0) target = $region25
    $region24: #{transformer_decoder_layer_forward.1} parent=1 // pred_region
      _
    $region25: #{transformer_decoder_layer_forward.1} parent=1 // pred_fallthru
      _
    // Predicated region
    $region26: #{transformer_decoder_layer_forward.1} parent=1 // pred_check
      _
    $region27: #{transformer_decoder_layer_forward.1} parent=1 // pred_check_branch
      %29 = sbr.rel (0) target = $region29
    $region28: #{transformer_decoder_layer_forward.1} parent=1 // pred_region
      _
    $region29: #{transformer_decoder_layer_forward.1} parent=1 // pred_fallthru
      _
    // Predicated region
    $region30: #{transformer_decoder_layer_forward.1} parent=1 // pred_check
      _
    $region31: #{transformer_decoder_layer_forward.1} parent=1 // pred_check_branch
      %31 = sbr.rel (0) target = $region33
    $region32: #{transformer_decoder_layer_forward.1} parent=1 // pred_region
      _
    $region33: #{transformer_decoder_layer_forward.1} parent=1 // pred_fallthru
      _
    %v32 = vlaneseq
    %v33 = vshrl.u32 %v32, 7
    %v34 = vlaneseq
    %v35 = vand.u32 %v34, 127
    %vm36 = vcmp.ge.s32.totalorder %v33, %v35
    %v37 = vsel %vm36, 0.0, -1e+09
    %v38 = vld [vmem:[%s0] sm:$0xff]
    %v39 = vld [vmem:[%s0 + $0x8] sm:$0xff]
    %v40 = vld [vmem:[%s1] sm:$0xff]
    %v41 = vld [vmem:[%s1 + $0x8] sm:$0xff]
    %v42 = vld [vmem:[%s2] sm:$0xff]
    %v43 = vld [vmem:[%s2 + $0x8] sm:$0xff]
    %v44 = vld [vmem:[%s2 + $0x10] sm:$0xff]
    %v45 = vld [vmem:[%s2 + $0x18] sm:$0xff]
    %v46 = vld [vmem:[%s3] sm:$0x1]
    %v48 = vlaneseq
    %v49 = vshrl.u32 %v48, 7
    %v50 = vsub.s32 0, %v49
    %v51 = vrot.slane %v46, %v50
    %vm53 = vcmask 261120
    %v55 = vsel %vm53, %v38, 0
    %v58 = vsel %vm53, %v39, 0
    %60 = vmatprep.subr.mxu0 0.0
    %61 = vmatpush1.msra.mxu0 %v42
    %62 = vmatprep.subr.mxu0 0.0
    %63 = vmatpush1.msra.mxu0 %v43
    %64 = vmatprep.subr.mxu0 0.0
    %65 = vmatpush1.msra.mxu0 %v44
    %66 = vmatprep.subr.mxu0 0.0
    %67 = vmatpush1.msra.mxu0 %v45
    %68 = vmatprep.subr.mxu0 0.0
    %69 = vmatpush1.msra.mxu0 0.0
    %70 = vmatprep.subr.mxu0 0.0
    %71 = vmatpush1.msra.mxu0 0.0
    %72 = vmatprep.subr.mxu0 0.0
    %73 = vmatpush1.msra.mxu0 0.0
    %74 = vmatprep.subr.mxu0 0.0
    %75 = vmatpush1.msra.mxu0 0.0
    %76 = vmatprep.subr.mxu0 0.0
    %77 = vmatpush1.msra.mxu0 0.0
    %78 = vmatprep.subr.mxu0 0.0
    %79 = vmatpush1.msra.mxu0 0.0
    %80 = vmatprep.subr.mxu0 0.0
    %81 = vmatpush1.msra.mxu0 0.0
    %82 = vmatprep.subr.mxu0 0.0
    %83 = vmatpush1.msra.mxu0 0.0
    %84 = vmatprep.subr.mxu0 0.0
    %85 = vmatpush1.msra.mxu0 0.0
    %86 = vmatprep.subr.mxu0 0.0
    %87 = vmatpush1.msra.mxu0 0.0
    %88 = vmatprep.subr.mxu0 0.0
    %89 = vmatpush1.msra.mxu0 0.0
    %90 = vmatprep.subr.mxu0 0.0
    %91 = vmatpush1.msra.mxu0 0.0
    %92 = vmatprep.subr.mxu0 0.0
    %93 = vmatpush1.msra.mxu0 0.0
    %94 = vmatprep.subr.mxu0 0.0
    %95 = vmatpush1.msra.mxu0 0.0
    %96 = vmatprep.subr.mxu0 0.0
    %97 = vmatpush1.msra.mxu0 0.0
    %98 = vmatprep.subr.mxu0 0.0
    %99 = vmatpush1.msra.mxu0 0.0
    %100 = vmatprep.subr.mxu0 0.0
    %101 = vmatpush1.msra.mxu0 0.0
    %102 = vmatprep.subr.mxu0 0.0
    %103 = vmatpush1.msra.mxu0 0.0
    %104 = vmatprep.subr.mxu0 0.0
    %105 = vmatpush1.msra.mxu0 0.0
    %106 = vmatprep.subr.mxu0 0.0
    %107 = vmatpush1.msra.mxu0 0.0
    %108 = vmatprep.subr.mxu0 0.0
    %109 = vmatpush1.msra.mxu0 0.0
    %110 = vmatprep.subr.mxu0 0.0
    %111 = vmatpush1.msra.mxu0 0.0
    %112 = vmatprep.subr.mxu0 0.0
    %113 = vmatpush1.msra.mxu0 0.0
    %114 = vmatprep.subr.mxu0 0.0
    %115 = vmatpush1.msra.mxu0 0.0
    %116 = vmatprep.subr.mxu0 0.0
    %117 = vmatpush1.msra.mxu0 0.0
    %118 = vmatprep.subr.mxu0 0.0
    %119 = vmatpush1.msra.mxu0 0.0
    %120 = vmatprep.subr.mxu0 0.0
    %121 = vmatpush1.msra.mxu0 0.0
    %122 = vmatprep.subr.mxu0 0.0
    %123 = vmatpush1.msra.mxu0 0.0
    %124 = vmatprep.mubr.f32.mxu0 0.0
    %125 = vmatmul.mubr.f32.gmra.mrb[0].mxu0 %v55
    %v126 = vpop.f32.mrb[0].mxu0
    %v127 = vadd.f32 %v51, %v126
    %v128 = vpop.f32.mrb[0].mxu0
    %129 = vmatprep.mubr.f32.mxu0 0.0
    %130 = vmatmul.mubr.f32.gmra.mrb[0].mxu0 %v58
    %v131 = vpop.f32.mrb[0].mxu0
    %v132 = vadd.f32 %v51, %v131
    %v133 = vpop.f32.mrb[0].mxu0
    %134 = vdwg.mxu0
    %136 = vrot.lane.b32.xlu0 %v127, 96
    %v137 = vpop.permute.xlu0 %136
    %vm138 = vcmask 64512
    %v139 = vsel %vm138, %v127, 0
    %v141 = vsel %vm138, %v137, 0
    %143 = vmatprep.subr.mxu0 0.0
    %144 = vmatpush1.xpose.msra.mxu0 %v141
    %145 = vmatprep.subr.mxu0 0.0
    %146 = vmatpush1.xpose.msra.mxu0 0.0
    %147 = vmatprep.subr.mxu0 0.0
    %148 = vmatpush1.xpose.msra.mxu0 0.0
    %149 = vmatprep.subr.mxu0 0.0
    %150 = vmatpush1.xpose.msra.mxu0 0.0
    %151 = vmatprep.subr.mxu0 0.0
    %152 = vmatpush1.xpose.msra.mxu0 0.0
    %153 = vmatprep.subr.mxu0 0.0
    %154 = vmatpush1.xpose.msra.mxu0 0.0
    %155 = vmatprep.subr.mxu0 0.0
    %156 = vmatpush1.xpose.msra.mxu0 0.0
    %157 = vmatprep.subr.mxu0 0.0
    %158 = vmatpush1.xpose.msra.mxu0 0.0
    %159 = vmatprep.subr.mxu0 0.0
    %160 = vmatpush1.xpose.msra.mxu0 0.0
    %161 = vmatprep.subr.mxu0 0.0
    %162 = vmatpush1.xpose.msra.mxu0 0.0
    %163 = vmatprep.subr.mxu0 0.0
    %164 = vmatpush1.xpose.msra.mxu0 0.0
    %165 = vmatprep.subr.mxu0 0.0
    %166 = vmatpush1.xpose.msra.mxu0 0.0
    %167 = vmatprep.subr.mxu0 0.0
    %168 = vmatpush1.xpose.msra.mxu0 0.0
    %169 = vmatprep.subr.mxu0 0.0
    %170 = vmatpush1.xpose.msra.mxu0 0.0
    %171 = vmatprep.subr.mxu0 0.0
    %172 = vmatpush1.xpose.msra.mxu0 0.0
    %173 = vmatprep.subr.mxu0 0.0
    %174 = vmatpush1.xpose.msra.mxu0 0.0
    %175 = vmatprep.subr.mxu0 0.0
    %176 = vmatpush1.xpose.msra.mxu0 0.0
    %177 = vmatprep.subr.mxu0 0.0
    %178 = vmatpush1.xpose.msra.mxu0 0.0
    %179 = vmatprep.subr.mxu0 0.0
    %180 = vmatpush1.xpose.msra.mxu0 0.0
    %181 = vmatprep.subr.mxu0 0.0
    %182 = vmatpush1.xpose.msra.mxu0 0.0
    %183 = vmatprep.subr.mxu0 0.0
    %184 = vmatpush1.xpose.msra.mxu0 0.0
    %185 = vmatprep.subr.mxu0 0.0
    %186 = vmatpush1.xpose.msra.mxu0 0.0
    %187 = vmatprep.subr.mxu0 0.0
    %188 = vmatpush1.xpose.msra.mxu0 0.0
    %189 = vmatprep.subr.mxu0 0.0
    %190 = vmatpush1.xpose.msra.mxu0 0.0
    %191 = vmatprep.subr.mxu0 0.0
    %192 = vmatpush1.xpose.msra.mxu0 0.0
    %193 = vmatprep.subr.mxu0 0.0
    %194 = vmatpush1.xpose.msra.mxu0 0.0
    %195 = vmatprep.subr.mxu0 0.0
    %196 = vmatpush1.xpose.msra.mxu0 0.0
    %197 = vmatprep.subr.mxu0 0.0
    %198 = vmatpush1.xpose.msra.mxu0 0.0
    %199 = vmatprep.subr.mxu0 0.0
    %200 = vmatpush1.xpose.msra.mxu0 0.0
    %201 = vmatprep.subr.mxu0 0.0
    %202 = vmatpush1.xpose.msra.mxu0 0.0
    %203 = vmatprep.subr.mxu0 0.0
    %204 = vmatpush1.xpose.msra.mxu0 0.0
    %205 = vmatprep.subr.mxu0 0.0
    %206 = vmatpush1.xpose.msra.mxu0 0.0
    %207 = vmatprep.mubr.f32.mxu0 0.0
    %208 = vmatmul.mubr.f32.gmra.mrb[0].mxu0 %v139
    %v209 = vpop.f32.mrb[0].mxu0
    %v210 = vadd.f32 %v37, %v209
    %v211 = vpop.f32.mrb[0].mxu0
    %212 = vdwg.mxu0
    %v213 = vsel %vm138, %v210, -inf
    %214 = vmax.xlane.f32.xlu0 %v213
    %v215 = vpop.xlane.xlu0 %214
    %v216 = vsub.f32 %v210, %v215
    %v217 = vmul.f32 %v216, 1.442695
    %v218 = vpow.pop %v217
    %v219 = vsel %vm138, %v218, 0.0
    %220 = vadd.xlane.f32.xlu0 %v219
    %v221 = vpop.xlane.xlu0 %220
    %v222 = vrcp.pop %v221
    %v223 = vmul.f32 %v218, %v222
    %224 = vrot.lane.b32.xlu0 %v127, 64
    %v225 = vpop.permute.xlu0 %224
    %v228 = vsel %vm138, %v223, 0
    %230 = vmatprep.subr.mxu0 0.0
    %231 = vmatpush1.msra.mxu0 %v225
    %232 = vmatprep.subr.mxu0 0.0
    %233 = vmatpush1.msra.mxu0 0.0
    %234 = vmatprep.subr.mxu0 0.0
    %235 = vmatpush1.msra.mxu0 0.0
    %236 = vmatprep.subr.mxu0 0.0
    %237 = vmatpush1.msra.mxu0 0.0
    %238 = vmatprep.subr.mxu0 0.0
    %239 = vmatpush1.msra.mxu0 0.0
    %240 = vmatprep.subr.mxu0 0.0
    %241 = vmatpush1.msra.mxu0 0.0
    %242 = vmatprep.subr.mxu0 0.0
    %243 = vmatpush1.msra.mxu0 0.0
    %244 = vmatprep.subr.mxu0 0.0
    %245 = vmatpush1.msra.mxu0 0.0
    %246 = vmatprep.subr.mxu0 0.0
    %247 = vmatpush1.msra.mxu0 0.0
    %248 = vmatprep.subr.mxu0 0.0
    %249 = vmatpush1.msra.mxu0 0.0
    %250 = vmatprep.subr.mxu0 0.0
    %251 = vmatpush1.msra.mxu0 0.0
    %252 = vmatprep.subr.mxu0 0.0
    %253 = vmatpush1.msra.mxu0 0.0
    %254 = vmatprep.subr.mxu0 0.0
    %255 = vmatpush1.msra.mxu0 0.0
    %256 = vmatprep.subr.mxu0 0.0
    %257 = vmatpush1.msra.mxu0 0.0
    %258 = vmatprep.subr.mxu0 0.0
    %259 = vmatpush1.msra.mxu0 0.0
    %260 = vmatprep.subr.mxu0 0.0
    %261 = vmatpush1.msra.mxu0 0.0
    %262 = vmatprep.subr.mxu0 0.0
    %263 = vmatpush1.msra.mxu0 0.0
    %264 = vmatprep.subr.mxu0 0.0
    %265 = vmatpush1.msra.mxu0 0.0
    %266 = vmatprep.subr.mxu0 0.0
    %267 = vmatpush1.msra.mxu0 0.0
    %268 = vmatprep.subr.mxu0 0.0
    %269 = vmatpush1.msra.mxu0 0.0
    %270 = vmatprep.subr.mxu0 0.0
    %271 = vmatpush1.msra.mxu0 0.0
    %272 = vmatprep.subr.mxu0 0.0
    %273 = vmatpush1.msra.mxu0 0.0
    %274 = vmatprep.subr.mxu0 0.0
    %275 = vmatpush1.msra.mxu0 0.0
    %276 = vmatprep.subr.mxu0 0.0
    %277 = vmatpush1.msra.mxu0 0.0
    %278 = vmatprep.subr.mxu0 0.0
    %279 = vmatpush1.msra.mxu0 0.0
    %280 = vmatprep.subr.mxu0 0.0
    %281 = vmatpush1.msra.mxu0 0.0
    %282 = vmatprep.subr.mxu0 0.0
    %283 = vmatpush1.msra.mxu0 0.0
    %284 = vmatprep.subr.mxu0 0.0
    %285 = vmatpush1.msra.mxu0 0.0
    %286 = vmatprep.subr.mxu0 0.0
    %287 = vmatpush1.msra.mxu0 0.0
    %288 = vmatprep.subr.mxu0 0.0
    %289 = vmatpush1.msra.mxu0 0.0
    %290 = vmatprep.subr.mxu0 0.0
    %291 = vmatpush1.msra.mxu0 0.0
    %292 = vmatprep.subr.mxu0 0.0
    %293 = vmatpush1.msra.mxu0 0.0
    %294 = vmatprep.mubr.f32.mxu0 0.0
    %295 = vmatmul.mubr.f32.gmra.mrb[0].mxu0 %v228
    %v296 = vpop.f32.mrb[0].mxu0
    %v297 = vadd.f32 0.0, %v296
    %v298 = vpop.f32.mrb[0].mxu0
    %299 = vdwg.mxu0
    %300 = vrot.lane.b32.xlu0 %v127, 120
    %v301 = vpop.permute.xlu0 %300
    %302 = vrot.lane.b32.xlu0 %v127, 88
    %v303 = vpop.permute.xlu0 %302
    %v304 = vsel %vm138, %v301, 0
    %v306 = vsel %vm138, %v303, 0
    %308 = vmatprep.subr.mxu0 0.0
    %309 = vmatpush1.xpose.msra.mxu0 %v306
    %310 = vmatprep.subr.mxu0 0.0
    %311 = vmatpush1.xpose.msra.mxu0 0.0
    %312 = vmatprep.subr.mxu0 0.0
    %313 = vmatpush1.xpose.msra.mxu0 0.0
    %314 = vmatprep.subr.mxu0 0.0
    %315 = vmatpush1.xpose.msra.mxu0 0.0
    %316 = vmatprep.subr.mxu0 0.0
    %317 = vmatpush1.xpose.msra.mxu0 0.0
    %318 = vmatprep.subr.mxu0 0.0
    %319 = vmatpush1.xpose.msra.mxu0 0.0
    %320 = vmatprep.subr.mxu0 0.0
    %321 = vmatpush1.xpose.msra.mxu0 0.0
    %322 = vmatprep.subr.mxu0 0.0
    %323 = vmatpush1.xpose.msra.mxu0 0.0
    %324 = vmatprep.subr.mxu0 0.0
    %325 = vmatpush1.xpose.msra.mxu0 0.0
    %326 = vmatprep.subr.mxu0 0.0
    %327 = vmatpush1.xpose.msra.mxu0 0.0
    %328 = vmatprep.subr.mxu0 0.0
    %329 = vmatpush1.xpose.msra.mxu0 0.0
    %330 = vmatprep.subr.mxu0 0.0
    %331 = vmatpush1.xpose.msra.mxu0 0.0
    %332 = vmatprep.subr.mxu0 0.0
    %333 = vmatpush1.xpose.msra.mxu0 0.0
    %334 = vmatprep.subr.mxu0 0.0
    %335 = vmatpush1.xpose.msra.mxu0 0.0
    %336 = vmatprep.subr.mxu0 0.0
    %337 = vmatpush1.xpose.msra.mxu0 0.0
    %338 = vmatprep.subr.mxu0 0.0
    %339 = vmatpush1.xpose.msra.mxu0 0.0
    %340 = vmatprep.subr.mxu0 0.0
    %341 = vmatpush1.xpose.msra.mxu0 0.0
    %342 = vmatprep.subr.mxu0 0.0
    %343 = vmatpush1.xpose.msra.mxu0 0.0
    %344 = vmatprep.subr.mxu0 0.0
    %345 = vmatpush1.xpose.msra.mxu0 0.0
    %346 = vmatprep.subr.mxu0 0.0
    %347 = vmatpush1.xpose.msra.mxu0 0.0
    %348 = vmatprep.subr.mxu0 0.0
    %349 = vmatpush1.xpose.msra.mxu0 0.0
    %350 = vmatprep.subr.mxu0 0.0
    %351 = vmatpush1.xpose.msra.mxu0 0.0
    %352 = vmatprep.subr.mxu0 0.0
    %353 = vmatpush1.xpose.msra.mxu0 0.0
    %354 = vmatprep.subr.mxu0 0.0
    %355 = vmatpush1.xpose.msra.mxu0 0.0
    %356 = vmatprep.subr.mxu0 0.0
    %357 = vmatpush1.xpose.msra.mxu0 0.0
    %358 = vmatprep.subr.mxu0 0.0
    %359 = vmatpush1.xpose.msra.mxu0 0.0
    %360 = vmatprep.subr.mxu0 0.0
    %361 = vmatpush1.xpose.msra.mxu0 0.0
    %362 = vmatprep.subr.mxu0 0.0
    %363 = vmatpush1.xpose.msra.mxu0 0.0
    %364 = vmatprep.subr.mxu0 0.0
    %365 = vmatpush1.xpose.msra.mxu0 0.0
    %366 = vmatprep.subr.mxu0 0.0
    %367 = vmatpush1.xpose.msra.mxu0 0.0
    %368 = vmatprep.subr.mxu0 0.0
    %369 = vmatpush1.xpose.msra.mxu0 0.0
    %370 = vmatprep.subr.mxu0 0.0
    %371 = vmatpush1.xpose.msra.mxu0 0.0
    %372 = vmatprep.mubr.f32.mxu0 0.0
    %373 = vmatmul.mubr.f32.gmra.mrb[0].mxu0 %v304
    %v374 = vpop.f32.mrb[0].mxu0
    %v375 = vadd.f32 %v37, %v374
    %v376 = vpop.f32.mrb[0].mxu0
    %377 = vdwg.mxu0
    %v378 = vsel %vm138, %v375, -inf
    %379 = vmax.xlane.f32.xlu0 %v378
    %v380 = vpop.xlane.xlu0 %379
    %v381 = vsub.f32 %v375, %v380
    %v382 = vmul.f32 %v381, 1.442695
    %v383 = vpow.pop %v382
    %v384 = vsel %vm138, %v383, 0.0
    %385 = vadd.xlane.f32.xlu0 %v384
    %v386 = vpop.xlane.xlu0 %385
    %v387 = vrcp.pop %v386
    %v388 = vmul.f32 %v383, %v387
    %389 = vrot.lane.b32.xlu0 %v127, 56
    %v390 = vpop.permute.xlu0 %389
    %v393 = vsel %vm138, %v388, 0
    %395 = vmatprep.subr.mxu0 0.0
    %396 = vmatpush1.msra.mxu0 %v390
    %397 = vmatprep.subr.mxu0 0.0
    %398 = vmatpush1.msra.mxu0 0.0
    %399 = vmatprep.subr.mxu0 0.0
    %400 = vmatpush1.msra.mxu0 0.0
    %401 = vmatprep.subr.mxu0 0.0
    %402 = vmatpush1.msra.mxu0 0.0
    %403 = vmatprep.subr.mxu0 0.0
    %404 = vmatpush1.msra.mxu0 0.0
    %405 = vmatprep.subr.mxu0 0.0
    %406 = vmatpush1.msra.mxu0 0.0
    %407 = vmatprep.subr.mxu0 0.0
    %408 = vmatpush1.msra.mxu0 0.0
    %409 = vmatprep.subr.mxu0 0.0
    %410 = vmatpush1.msra.mxu0 0.0
    %411 = vmatprep.subr.mxu0 0.0
    %412 = vmatpush1.msra.mxu0 0.0
    %413 = vmatprep.subr.mxu0 0.0
    %414 = vmatpush1.msra.mxu0 0.0
    %415 = vmatprep.subr.mxu0 0.0
    %416 = vmatpush1.msra.mxu0 0.0
    %417 = vmatprep.subr.mxu0 0.0
    %418 = vmatpush1.msra.mxu0 0.0
    %419 = vmatprep.subr.mxu0 0.0
    %420 = vmatpush1.msra.mxu0 0.0
    %421 = vmatprep.subr.mxu0 0.0
    %422 = vmatpush1.msra.mxu0 0.0
    %423 = vmatprep.subr.mxu0 0.0
    %424 = vmatpush1.msra.mxu0 0.0
    %425 = vmatprep.subr.mxu0 0.0
    %426 = vmatpush1.msra.mxu0 0.0
    %427 = vmatprep.subr.mxu0 0.0
    %428 = vmatpush1.msra.mxu0 0.0
    %429 = vmatprep.subr.mxu0 0.0
    %430 = vmatpush1.msra.mxu0 0.0
    %431 = vmatprep.subr.mxu0 0.0
    %432 = vmatpush1.msra.mxu0 0.0
    %433 = vmatprep.subr.mxu0 0.0
    %434 = vmatpush1.msra.mxu0 0.0
    %435 = vmatprep.subr.mxu0 0.0
    %436 = vmatpush1.msra.mxu0 0.0
    %437 = vmatprep.subr.mxu0 0.0
    %438 = vmatpush1.msra.mxu0 0.0
    %439 = vmatprep.subr.mxu0 0.0
    %440 = vmatpush1.msra.mxu0 0.0
    %441 = vmatprep.subr.mxu0 0.0
    %442 = vmatpush1.msra.mxu0 0.0
    %443 = vmatprep.subr.mxu0 0.0
    %444 = vmatpush1.msra.mxu0 0.0
    %445 = vmatprep.subr.mxu0 0.0
    %446 = vmatpush1.msra.mxu0 0.0
    %447 = vmatprep.subr.mxu0 0.0
    %448 = vmatpush1.msra.mxu0 0.0
    %449 = vmatprep.subr.mxu0 0.0
    %450 = vmatpush1.msra.mxu0 0.0
    %451 = vmatprep.subr.mxu0 0.0
    %452 = vmatpush1.msra.mxu0 0.0
    %453 = vmatprep.subr.mxu0 0.0
    %454 = vmatpush1.msra.mxu0 0.0
    %455 = vmatprep.subr.mxu0 0.0
    %456 = vmatpush1.msra.mxu0 0.0
    %457 = vmatprep.subr.mxu0 0.0
    %458 = vmatpush1.msra.mxu0 0.0
    %459 = vmatprep.mubr.f32.mxu0 0.0
    %460 = vmatmul.mubr.f32.gmra.mrb[0].mxu0 %v393
    %v461 = vpop.f32.mrb[0].mxu0
    %v462 = vadd.f32 0.0, %v461
    %v463 = vpop.f32.mrb[0].mxu0
    %464 = vdwg.mxu0
    %465 = vrot.lane.b32.xlu0 %v127, 112
    %v466 = vpop.permute.xlu0 %465
    %467 = vrot.lane.b32.xlu0 %v127, 80
    %v468 = vpop.permute.xlu0 %467
    %v469 = vsel %vm138, %v466, 0
    %v471 = vsel %vm138, %v468, 0
    %473 = vmatprep.subr.mxu0 0.0
    %474 = vmatpush1.xpose.msra.mxu0 %v471
    %475 = vmatprep.subr.mxu0 0.0
    %476 = vmatpush1.xpose.msra.mxu0 0.0
    %477 = vmatprep.subr.mxu0 0.0
    %478 = vmatpush1.xpose.msra.mxu0 0.0
    %479 = vmatprep.subr.mxu0 0.0
    %480 = vmatpush1.xpose.msra.mxu0 0.0
    %481 = vmatprep.subr.mxu0 0.0
    %482 = vmatpush1.xpose.msra.mxu0 0.0
    %483 = vmatprep.subr.mxu0 0.0
    %484 = vmatpush1.xpose.msra.mxu0 0.0
    %485 = vmatprep.subr.mxu0 0.0
    %486 = vmatpush1.xpose.msra.mxu0 0.0
    %487 = vmatprep.subr.mxu0 0.0
    %488 = vmatpush1.xpose.msra.mxu0 0.0
    %489 = vmatprep.subr.mxu0 0.0
    %490 = vmatpush1.xpose.msra.mxu0 0.0
    %491 = vmatprep.subr.mxu0 0.0
    %492 = vmatpush1.xpose.msra.mxu0 0.0
    %493 = vmatprep.subr.mxu0 0.0
    %494 = vmatpush1.xpose.msra.mxu0 0.0
    %495 = vmatprep.subr.mxu0 0.0
    %496 = vmatpush1.xpose.msra.mxu0 0.0
    %497 = vmatprep.subr.mxu0 0.0
    %498 = vmatpush1.xpose.msra.mxu0 0.0
    %499 = vmatprep.subr.mxu0 0.0
    %500 = vmatpush1.xpose.msra.mxu0 0.0
    %501 = vmatprep.subr.mxu0 0.0
    %502 = vmatpush1.xpose.msra.mxu0 0.0
    %503 = vmatprep.subr.mxu0 0.0
    %504 = vmatpush1.xpose.msra.mxu0 0.0
    %505 = vmatprep.subr.mxu0 0.0
    %506 = vmatpush1.xpose.msra.mxu0 0.0
    %507 = vmatprep.subr.mxu0 0.0
    %508 = vmatpush1.xpose.msra.mxu0 0.0
    %509 = vmatprep.subr.mxu0 0.0
    %510 = vmatpush1.xpose.msra.mxu0 0.0
    %511 = vmatprep.subr.mxu0 0.0
    %512 = vmatpush1.xpose.msra.mxu0 0.0
    %513 = vmatprep.subr.mxu0 0.0
    %514 = vmatpush1.xpose.msra.mxu0 0.0
    %515 = vmatprep.subr.mxu0 0.0
    %516 = vmatpush1.xpose.msra.mxu0 0.0
    %517 = vmatprep.subr.mxu0 0.0
    %518 = vmatpush1.xpose.msra.mxu0 0.0
    %519 = vmatprep.subr.mxu0 0.0
    %520 = vmatpush1.xpose.msra.mxu0 0.0
    %521 = vmatprep.subr.mxu0 0.0
    %522 = vmatpush1.xpose.msra.mxu0 0.0
    %523 = vmatprep.subr.mxu0 0.0
    %524 = vmatpush1.xpose.msra.mxu0 0.0
    %525 = vmatprep.subr.mxu0 0.0
    %526 = vmatpush1.xpose.msra.mxu0 0.0
    %527 = vmatprep.subr.mxu0 0.0
    %528 = vmatpush1.xpose.msra.mxu0 0.0
    %529 = vmatprep.subr.mxu0 0.0
    %530 = vmatpush1.xpose.msra.mxu0 0.0
    %531 = vmatprep.subr.mxu0 0.0
    %532 = vmatpush1.xpose.msra.mxu0 0.0
    %533 = vmatprep.subr.mxu0 0.0
    %534 = vmatpush1.xpose.msra.mxu0 0.0
    %535 = vmatprep.subr.mxu0 0.0
    %536 = vmatpush1.xpose.msra.mxu0 0.0
    %537 = vmatprep.mubr.f32.mxu0 0.0
    %538 = vmatmul.mubr.f32.gmra.mrb[0].mxu0 %v469
    %v539 = vpop.f32.mrb[0].mxu0
    %v540 = vadd.f32 %v37, %v539
    %v541 = vpop.f32.mrb[0].mxu0
    %542 = vdwg.mxu0
    %v543 = vsel %vm138, %v540, -inf
    %544 = vmax.xlane.f32.xlu0 %v543
    %v545 = vpop.xlane.xlu0 %544
    %v546 = vsub.f32 %v540, %v545
    %v547 = vmul.f32 %v546, 1.442695
    %v548 = vpow.pop %v547
    %v549 = vsel %vm138, %v548, 0.0
    %550 = vadd.xlane.f32.xlu0 %v549
    %v551 = vpop.xlane.xlu0 %550
    %v552 = vrcp.pop %v551
    %v553 = vmul.f32 %v548, %v552
    %554 = vrot.lane.b32.xlu0 %v127, 48
    %v555 = vpop.permute.xlu0 %554
    %v558 = vsel %vm138, %v553, 0
    %560 = vmatprep.subr.mxu0 0.0
    %561 = vmatpush1.msra.mxu0 %v555
    %562 = vmatprep.subr.mxu0 0.0
    %563 = vmatpush1.msra.mxu0 0.0
    %564 = vmatprep.subr.mxu0 0.0
    %565 = vmatpush1.msra.mxu0 0.0
    %566 = vmatprep.subr.mxu0 0.0
    %567 = vmatpush1.msra.mxu0 0.0
    %568 = vmatprep.subr.mxu0 0.0
    %569 = vmatpush1.msra.mxu0 0.0
    %570 = vmatprep.subr.mxu0 0.0
    %571 = vmatpush1.msra.mxu0 0.0
    %572 = vmatprep.subr.mxu0 0.0
    %573 = vmatpush1.msra.mxu0 0.0
    %574 = vmatprep.subr.mxu0 0.0
    %575 = vmatpush1.msra.mxu0 0.0
    %576 = vmatprep.subr.mxu0 0.0
    %577 = vmatpush1.msra.mxu0 0.0
    %578 = vmatprep.subr.mxu0 0.0
    %579 = vmatpush1.msra.mxu0 0.0
    %580 = vmatprep.subr.mxu0 0.0
    %581 = vmatpush1.msra.mxu0 0.0
    %582 = vmatprep.subr.mxu0 0.0
    %583 = vmatpush1.msra.mxu0 0.0
    %584 = vmatprep.subr.mxu0 0.0
    %585 = vmatpush1.msra.mxu0 0.0
    %586 = vmatprep.subr.mxu0 0.0
    %587 = vmatpush1.msra.mxu0 0.0
    %588 = vmatprep.subr.mxu0 0.0
    %589 = vmatpush1.msra.mxu0 0.0
    %590 = vmatprep.subr.mxu0 0.0
    %591 = vmatpush1.msra.mxu0 0.0
    %592 = vmatprep.subr.mxu0 0.0
    %593 = vmatpush1.msra.mxu0 0.0
    %594 = vmatprep.subr.mxu0 0.0
    %595 = vmatpush1.msra.mxu0 0.0
    %596 = vmatprep.subr.mxu0 0.0
    %597 = vmatpush1.msra.mxu0 0.0
    %598 = vmatprep.subr.mxu0 0.0
    %599 = vmatpush1.msra.mxu0 0.0
    %600 = vmatprep.subr.mxu0 0.0
    %601 = vmatpush1.msra.mxu0 0.0
    %602 = vmatprep.subr.mxu0 0.0
    %603 = vmatpush1.msra.mxu0 0.0
    %604 = vmatprep.subr.mxu0 0.0
    %605 = vmatpush1.msra.mxu0 0.0
    %606 = vmatprep.subr.mxu0 0.0
    %607 = vmatpush1.msra.mxu0 0.0
    %608 = vmatprep.subr.mxu0 0.0
    %609 = vmatpush1.msra.mxu0 0.0
    %610 = vmatprep.subr.mxu0 0.0
    %611 = vmatpush1.msra.mxu0 0.0
    %612 = vmatprep.subr.mxu0 0.0
    %613 = vmatpush1.msra.mxu0 0.0
    %614 = vmatprep.subr.mxu0 0.0
    %615 = vmatpush1.msra.mxu0 0.0
    %616 = vmatprep.subr.mxu0 0.0
    %617 = vmatpush1.msra.mxu0 0.0
    %618 = vmatprep.subr.mxu0 0.0
    %619 = vmatpush1.msra.mxu0 0.0
    %620 = vmatprep.subr.mxu0 0.0
    %621 = vmatpush1.msra.mxu0 0.0
    %622 = vmatprep.subr.mxu0 0.0
    %623 = vmatpush1.msra.mxu0 0.0
    %624 = vmatprep.mubr.f32.mxu0 0.0
    %625 = vmatmul.mubr.f32.gmra.mrb[0].mxu0 %v558
    %v626 = vpop.f32.mrb[0].mxu0
    %v627 = vadd.f32 0.0, %v626
    %v628 = vpop.f32.mrb[0].mxu0
    %629 = vdwg.mxu0
    %630 = vrot.lane.b32.xlu0 %v127, 104
    %v631 = vpop.permute.xlu0 %630
    %632 = vrot.lane.b32.xlu0 %v127, 72
    %v633 = vpop.permute.xlu0 %632
    %v634 = vsel %vm138, %v631, 0
    %v636 = vsel %vm138, %v633, 0
    %638 = vmatprep.subr.mxu0 0.0
    %639 = vmatpush1.xpose.msra.mxu0 %v636
    %640 = vmatprep.subr.mxu0 0.0
    %641 = vmatpush1.xpose.msra.mxu0 0.0
    %642 = vmatprep.subr.mxu0 0.0
    %643 = vmatpush1.xpose.msra.mxu0 0.0
    %644 = vmatprep.subr.mxu0 0.0
    %645 = vmatpush1.xpose.msra.mxu0 0.0
    %646 = vmatprep.subr.mxu0 0.0
    %647 = vmatpush1.xpose.msra.mxu0 0.0
    %648 = vmatprep.subr.mxu0 0.0
    %649 = vmatpush1.xpose.msra.mxu0 0.0
    %650 = vmatprep.subr.mxu0 0.0
    %651 = vmatpush1.xpose.msra.mxu0 0.0
    %652 = vmatprep.subr.mxu0 0.0
    %653 = vmatpush1.xpose.msra.mxu0 0.0
    %654 = vmatprep.subr.mxu0 0.0
    %655 = vmatpush1.xpose.msra.mxu0 0.0
    %656 = vmatprep.subr.mxu0 0.0
    %657 = vmatpush1.xpose.msra.mxu0 0.0
    %658 = vmatprep.subr.mxu0 0.0
    %659 = vmatpush1.xpose.msra.mxu0 0.0
    %660 = vmatprep.subr.mxu0 0.0
    %661 = vmatpush1.xpose.msra.mxu0 0.0
    %662 = vmatprep.subr.mxu0 0.0
    %663 = vmatpush1.xpose.msra.mxu0 0.0
    %664 = vmatprep.subr.mxu0 0.0
    %665 = vmatpush1.xpose.msra.mxu0 0.0
    %666 = vmatprep.subr.mxu0 0.0
    %667 = vmatpush1.xpose.msra.mxu0 0.0
    %668 = vmatprep.subr.mxu0 0.0
    %669 = vmatpush1.xpose.msra.mxu0 0.0
    %670 = vmatprep.subr.mxu0 0.0
    %671 = vmatpush1.xpose.msra.mxu0 0.0
    %672 = vmatprep.subr.mxu0 0.0
    %673 = vmatpush1.xpose.msra.mxu0 0.0
    %674 = vmatprep.subr.mxu0 0.0
    %675 = vmatpush1.xpose.msra.mxu0 0.0
    %676 = vmatprep.subr.mxu0 0.0
    %677 = vmatpush1.xpose.msra.mxu0 0.0
    %678 = vmatprep.subr.mxu0 0.0
    %679 = vmatpush1.xpose.msra.mxu0 0.0
    %680 = vmatprep.subr.mxu0 0.0
    %681 = vmatpush1.xpose.msra.mxu0 0.0
    %682 = vmatprep.subr.mxu0 0.0
    %683 = vmatpush1.xpose.msra.mxu0 0.0
    %684 = vmatprep.subr.mxu0 0.0
    %685 = vmatpush1.xpose.msra.mxu0 0.0
    %686 = vmatprep.subr.mxu0 0.0
    %687 = vmatpush1.xpose.msra.mxu0 0.0
    %688 = vmatprep.subr.mxu0 0.0
    %689 = vmatpush1.xpose.msra.mxu0 0.0
    %690 = vmatprep.subr.mxu0 0.0
    %691 = vmatpush1.xpose.msra.mxu0 0.0
    %692 = vmatprep.subr.mxu0 0.0
    %693 = vmatpush1.xpose.msra.mxu0 0.0
    %694 = vmatprep.subr.mxu0 0.0
    %695 = vmatpush1.xpose.msra.mxu0 0.0
    %696 = vmatprep.subr.mxu0 0.0
    %697 = vmatpush1.xpose.msra.mxu0 0.0
    %698 = vmatprep.subr.mxu0 0.0
    %699 = vmatpush1.xpose.msra.mxu0 0.0
    %700 = vmatprep.subr.mxu0 0.0
    %701 = vmatpush1.xpose.msra.mxu0 0.0
    %702 = vmatprep.mubr.f32.mxu0 0.0
    %703 = vmatmul.mubr.f32.gmra.mrb[0].mxu0 %v634
    %v704 = vpop.f32.mrb[0].mxu0
    %v705 = vadd.f32 %v37, %v704
    %v706 = vpop.f32.mrb[0].mxu0
    %707 = vdwg.mxu0
    %v708 = vsel %vm138, %v705, -inf
    %709 = vmax.xlane.f32.xlu0 %v708
    %v710 = vpop.xlane.xlu0 %709
    %v711 = vsub.f32 %v705, %v710
    %v712 = vmul.f32 %v711, 1.442695
    %v713 = vpow.pop %v712
    %v714 = vsel %vm138, %v713, 0.0
    %715 = vadd.xlane.f32.xlu0 %v714
    %v716 = vpop.xlane.xlu0 %715
    %v717 = vrcp.pop %v716
    %v718 = vmul.f32 %v713, %v717
    %719 = vrot.lane.b32.xlu0 %v127, 40
    %v720 = vpop.permute.xlu0 %719
    %v723 = vsel %vm138, %v718, 0
    %725 = vmatprep.subr.mxu0 0.0
    %726 = vmatpush1.msra.mxu0 %v720
    %727 = vmatprep.subr.mxu0 0.0
    %728 = vmatpush1.msra.mxu0 0.0
    %729 = vmatprep.subr.mxu0 0.0
    %730 = vmatpush1.msra.mxu0 0.0
    %731 = vmatprep.subr.mxu0 0.0
    %732 = vmatpush1.msra.mxu0 0.0
    %733 = vmatprep.subr.mxu0 0.0
    %734 = vmatpush1.msra.mxu0 0.0
    %735 = vmatprep.subr.mxu0 0.0
    %736 = vmatpush1.msra.mxu0 0.0
    %737 = vmatprep.subr.mxu0 0.0
    %738 = vmatpush1.msra.mxu0 0.0
    %739 = vmatprep.subr.mxu0 0.0
    %740 = vmatpush1.msra.mxu0 0.0
    %741 = vmatprep.subr.mxu0 0.0
    %742 = vmatpush1.msra.mxu0 0.0
    %743 = vmatprep.subr.mxu0 0.0
    %744 = vmatpush1.msra.mxu0 0.0
    %745 = vmatprep.subr.mxu0 0.0
    %746 = vmatpush1.msra.mxu0 0.0
    %747 = vmatprep.subr.mxu0 0.0
    %748 = vmatpush1.msra.mxu0 0.0
    %749 = vmatprep.subr.mxu0 0.0
    %750 = vmatpush1.msra.mxu0 0.0
    %751 = vmatprep.subr.mxu0 0.0
    %752 = vmatpush1.msra.mxu0 0.0
    %753 = vmatprep.subr.mxu0 0.0
    %754 = vmatpush1.msra.mxu0 0.0
    %755 = vmatprep.subr.mxu0 0.0
    %756 = vmatpush1.msra.mxu0 0.0
    %757 = vmatprep.subr.mxu0 0.0
    %758 = vmatpush1.msra.mxu0 0.0
    %759 = vmatprep.subr.mxu0 0.0
    %760 = vmatpush1.msra.mxu0 0.0
    %761 = vmatprep.subr.mxu0 0.0
    %762 = vmatpush1.msra.mxu0 0.0
    %763 = vmatprep.subr.mxu0 0.0
    %764 = vmatpush1.msra.mxu0 0.0
    %765 = vmatprep.subr.mxu0 0.0
    %766 = vmatpush1.msra.mxu0 0.0
    %767 = vmatprep.subr.mxu0 0.0
    %768 = vmatpush1.msra.mxu0 0.0
    %769 = vmatprep.subr.mxu0 0.0
    %770 = vmatpush1.msra.mxu0 0.0
    %771 = vmatprep.subr.mxu0 0.0
    %772 = vmatpush1.msra.mxu0 0.0
    %773 = vmatprep.subr.mxu0 0.0
    %774 = vmatpush1.msra.mxu0 0.0
    %775 = vmatprep.subr.mxu0 0.0
    %776 = vmatpush1.msra.mxu0 0.0
    %777 = vmatprep.subr.mxu0 0.0
    %778 = vmatpush1.msra.mxu0 0.0
    %779 = vmatprep.subr.mxu0 0.0
    %780 = vmatpush1.msra.mxu0 0.0
    %781 = vmatprep.subr.mxu0 0.0
    %782 = vmatpush1.msra.mxu0 0.0
    %783 = vmatprep.subr.mxu0 0.0
    %784 = vmatpush1.msra.mxu0 0.0
    %785 = vmatprep.subr.mxu0 0.0
    %786 = vmatpush1.msra.mxu0 0.0
    %787 = vmatprep.subr.mxu0 0.0
    %788 = vmatpush1.msra.mxu0 0.0
    %789 = vmatprep.mubr.f32.mxu0 0.0
    %790 = vmatmul.mubr.f32.gmra.mrb[0].mxu0 %v723
    %v791 = vpop.f32.mrb[0].mxu0
    %v792 = vadd.f32 0.0, %v791
    %v793 = vpop.f32.mrb[0].mxu0
    %794 = vdwg.mxu0
    %796 = vrot.lane.b32.xlu0 %v462, 8
    %v797 = vpop.permute.xlu0 %796
    %800 = vrot.lane.b32.xlu0 %v627, 16
    %v801 = vpop.permute.xlu0 %800
    %804 = vrot.lane.b32.xlu0 %v792, 24
    %v805 = vpop.permute.xlu0 %804
    %v807 = vsel %vm138, %v297, %v797
    %vm808 = vcmask 130048
    %v809 = vsel %vm808, %v807, %v801
    %vm810 = vcmask 195584
    %v811 = vsel %vm810, %v809, %v805
    %813 = vrot.lane.b32.xlu0 %v132, 96
    %v814 = vpop.permute.xlu0 %813
    %v815 = vsel %vm138, %v132, 0
    %v817 = vsel %vm138, %v814, 0
    %819 = vmatprep.subr.mxu0 0.0
    %820 = vmatpush1.xpose.msra.mxu0 %v817
    %821 = vmatprep.subr.mxu0 0.0
    %822 = vmatpush1.xpose.msra.mxu0 0.0
    %823 = vmatprep.subr.mxu0 0.0
    %824 = vmatpush1.xpose.msra.mxu0 0.0
    %825 = vmatprep.subr.mxu0 0.0
    %826 = vmatpush1.xpose.msra.mxu0 0.0
    %827 = vmatprep.subr.mxu0 0.0
    %828 = vmatpush1.xpose.msra.mxu0 0.0
    %829 = vmatprep.subr.mxu0 0.0
    %830 = vmatpush1.xpose.msra.mxu0 0.0
    %831 = vmatprep.subr.mxu0 0.0
    %832 = vmatpush1.xpose.msra.mxu0 0.0
    %833 = vmatprep.subr.mxu0 0.0
    %834 = vmatpush1.xpose.msra.mxu0 0.0
    %835 = vmatprep.subr.mxu0 0.0
    %836 = vmatpush1.xpose.msra.mxu0 0.0
    %837 = vmatprep.subr.mxu0 0.0
    %838 = vmatpush1.xpose.msra.mxu0 0.0
    %839 = vmatprep.subr.mxu0 0.0
    %840 = vmatpush1.xpose.msra.mxu0 0.0
    %841 = vmatprep.subr.mxu0 0.0
    %842 = vmatpush1.xpose.msra.mxu0 0.0
    %843 = vmatprep.subr.mxu0 0.0
    %844 = vmatpush1.xpose.msra.mxu0 0.0
    %845 = vmatprep.subr.mxu0 0.0
    %846 = vmatpush1.xpose.msra.mxu0 0.0
    %847 = vmatprep.subr.mxu0 0.0
    %848 = vmatpush1.xpose.msra.mxu0 0.0
    %849 = vmatprep.subr.mxu0 0.0
    %850 = vmatpush1.xpose.msra.mxu0 0.0
    %851 = vmatprep.subr.mxu0 0.0
    %852 = vmatpush1.xpose.msra.mxu0 0.0
    %853 = vmatprep.subr.mxu0 0.0
    %854 = vmatpush1.xpose.msra.mxu0 0.0
    %855 = vmatprep.subr.mxu0 0.0
    %856 = vmatpush1.xpose.msra.mxu0 0.0
    %857 = vmatprep.subr.mxu0 0.0
    %858 = vmatpush1.xpose.msra.mxu0 0.0
    %859 = vmatprep.subr.mxu0 0.0
    %860 = vmatpush1.xpose.msra.mxu0 0.0
    %861 = vmatprep.subr.mxu0 0.0
    %862 = vmatpush1.xpose.msra.mxu0 0.0
    %863 = vmatprep.subr.mxu0 0.0
    %864 = vmatpush1.xpose.msra.mxu0 0.0
    %865 = vmatprep.subr.mxu0 0.0
    %866 = vmatpush1.xpose.msra.mxu0 0.0
    %867 = vmatprep.subr.mxu0 0.0
    %868 = vmatpush1.xpose.msra.mxu0 0.0
    %869 = vmatprep.subr.mxu0 0.0
    %870 = vmatpush1.xpose.msra.mxu0 0.0
    %871 = vmatprep.subr.mxu0 0.0
    %872 = vmatpush1.xpose.msra.mxu0 0.0
    %873 = vmatprep.subr.mxu0 0.0
    %874 = vmatpush1.xpose.msra.mxu0 0.0
    %875 = vmatprep.subr.mxu0 0.0
    %876 = vmatpush1.xpose.msra.mxu0 0.0
    %877 = vmatprep.subr.mxu0 0.0
    %878 = vmatpush1.xpose.msra.mxu0 0.0
    %879 = vmatprep.subr.mxu0 0.0
    %880 = vmatpush1.xpose.msra.mxu0 0.0
    %881 = vmatprep.subr.mxu0 0.0
    %882 = vmatpush1.xpose.msra.mxu0 0.0
    %883 = vmatprep.mubr.f32.mxu0 0.0
    %884 = vmatmul.mubr.f32.gmra.mrb[0].mxu0 %v815
    %v885 = vpop.f32.mrb[0].mxu0
    %v886 = vadd.f32 %v37, %v885
    %v887 = vpop.f32.mrb[0].mxu0
    %888 = vdwg.mxu0
    %v889 = vsel %vm138, %v886, -inf
    %890 = vmax.xlane.f32.xlu0 %v889
    %v891 = vpop.xlane.xlu0 %890
    %v892 = vsub.f32 %v886, %v891
    %v893 = vmul.f32 %v892, 1.442695
    %v894 = vpow.pop %v893
    %v895 = vsel %vm138, %v894, 0.0
    %896 = vadd.xlane.f32.xlu0 %v895
    %v897 = vpop.xlane.xlu0 %896
    %v898 = vrcp.pop %v897
    %v899 = vmul.f32 %v894, %v898
    %900 = vrot.lane.b32.xlu0 %v132, 64
    %v901 = vpop.permute.xlu0 %900
    %v904 = vsel %vm138, %v899, 0
    %906 = vmatprep.subr.mxu0 0.0
    %907 = vmatpush1.msra.mxu0 %v901
    %908 = vmatprep.subr.mxu0 0.0
    %909 = vmatpush1.msra.mxu0 0.0
    %910 = vmatprep.subr.mxu0 0.0
    %911 = vmatpush1.msra.mxu0 0.0
    %912 = vmatprep.subr.mxu0 0.0
    %913 = vmatpush1.msra.mxu0 0.0
    %914 = vmatprep.subr.mxu0 0.0
    %915 = vmatpush1.msra.mxu0 0.0
    %916 = vmatprep.subr.mxu0 0.0
    %917 = vmatpush1.msra.mxu0 0.0
    %918 = vmatprep.subr.mxu0 0.0
    %919 = vmatpush1.msra.mxu0 0.0
    %920 = vmatprep.subr.mxu0 0.0
    %921 = vmatpush1.msra.mxu0 0.0
    %922 = vmatprep.subr.mxu0 0.0
    %923 = vmatpush1.msra.mxu0 0.0
    %924 = vmatprep.subr.mxu0 0.0
    %925 = vmatpush1.msra.mxu0 0.0
    %926 = vmatprep.subr.mxu0 0.0
    %927 = vmatpush1.msra.mxu0 0.0
    %928 = vmatprep.subr.mxu0 0.0
    %929 = vmatpush1.msra.mxu0 0.0
    %930 = vmatprep.subr.mxu0 0.0
    %931 = vmatpush1.msra.mxu0 0.0
    %932 = vmatprep.subr.mxu0 0.0
    %933 = vmatpush1.msra.mxu0 0.0
    %934 = vmatprep.subr.mxu0 0.0
    %935 = vmatpush1.msra.mxu0 0.0
    %936 = vmatprep.subr.mxu0 0.0
    %937 = vmatpush1.msra.mxu0 0.0
    %938 = vmatprep.subr.mxu0 0.0
    %939 = vmatpush1.msra.mxu0 0.0
    %940 = vmatprep.subr.mxu0 0.0
    %941 = vmatpush1.msra.mxu0 0.0
    %942 = vmatprep.subr.mxu0 0.0
    %943 = vmatpush1.msra.mxu0 0.0
    %944 = vmatprep.subr.mxu0 0.0
    %945 = vmatpush1.msra.mxu0 0.0
    %946 = vmatprep.subr.mxu0 0.0
    %947 = vmatpush1.msra.mxu0 0.0
    %948 = vmatprep.subr.mxu0 0.0
    %949 = vmatpush1.msra.mxu0 0.0
    %950 = vmatprep.subr.mxu0 0.0
    %951 = vmatpush1.msra.mxu0 0.0
    %952 = vmatprep.subr.mxu0 0.0
    %953 = vmatpush1.msra.mxu0 0.0
    %954 = vmatprep.subr.mxu0 0.0
    %955 = vmatpush1.msra.mxu0 0.0
    %956 = vmatprep.subr.mxu0 0.0
    %957 = vmatpush1.msra.mxu0 0.0
    %958 = vmatprep.subr.mxu0 0.0
    %959 = vmatpush1.msra.mxu0 0.0
    %960 = vmatprep.subr.mxu0 0.0
    %961 = vmatpush1.msra.mxu0 0.0
    %962 = vmatprep.subr.mxu0 0.0
    %963 = vmatpush1.msra.mxu0 0.0
    %964 = vmatprep.subr.mxu0 0.0
    %965 = vmatpush1.msra.mxu0 0.0
    %966 = vmatprep.subr.mxu0 0.0
    %967 = vmatpush1.msra.mxu0 0.0
    %968 = vmatprep.subr.mxu0 0.0
    %969 = vmatpush1.msra.mxu0 0.0
    %970 = vmatprep.mubr.f32.mxu0 0.0
    %971 = vmatmul.mubr.f32.gmra.mrb[0].mxu0 %v904
    %v972 = vpop.f32.mrb[0].mxu0
    %v973 = vadd.f32 0.0, %v972
    %v974 = vpop.f32.mrb[0].mxu0
    %975 = vdwg.mxu0
    %976 = vrot.lane.b32.xlu0 %v132, 120
    %v977 = vpop.permute.xlu0 %976
    %978 = vrot.lane.b32.xlu0 %v132, 88
    %v979 = vpop.permute.xlu0 %978
    %v980 = vsel %vm138, %v977, 0
    %v982 = vsel %vm138, %v979, 0
    %984 = vmatprep.subr.mxu0 0.0
    %985 = vmatpush1.xpose.msra.mxu0 %v982
    %986 = vmatprep.subr.mxu0 0.0
    %987 = vmatpush1.xpose.msra.mxu0 0.0
    %988 = vmatprep.subr.mxu0 0.0
    %989 = vmatpush1.xpose.msra.mxu0 0.0
    %990 = vmatprep.subr.mxu0 0.0
    %991 = vmatpush1.xpose.msra.mxu0 0.0
    %992 = vmatprep.subr.mxu0 0.0
    %993 = vmatpush1.xpose.msra.mxu0 0.0
    %994 = vmatprep.subr.mxu0 0.0
    %995 = vmatpush1.xpose.msra.mxu0 0.0
    %996 = vmatprep.subr.mxu0 0.0
    %997 = vmatpush1.xpose.msra.mxu0 0.0
    %998 = vmatprep.subr.mxu0 0.0
    %999 = vmatpush1.xpose.msra.mxu0 0.0
    %1000 = vmatprep.subr.mxu0 0.0
    %1001 = vmatpush1.xpose.msra.mxu0 0.0
    %1002 = vmatprep.subr.mxu0 0.0
    %1003 = vmatpush1.xpose.msra.mxu0 0.0
    %1004 = vmatprep.subr.mxu0 0.0
    %1005 = vmatpush1.xpose.msra.mxu0 0.0
    %1006 = vmatprep.subr.mxu0 0.0
    %1007 = vmatpush1.xpose.msra.mxu0 0.0
    %1008 = vmatprep.subr.mxu0 0.0
    %1009 = vmatpush1.xpose.msra.mxu0 0.0
    %1010 = vmatprep.subr.mxu0 0.0
    %1011 = vmatpush1.xpose.msra.mxu0 0.0
    %1012 = vmatprep.subr.mxu0 0.0
    %1013 = vmatpush1.xpose.msra.mxu0 0.0
    %1014 = vmatprep.subr.mxu0 0.0
    %1015 = vmatpush1.xpose.msra.mxu0 0.0
    %1016 = vmatprep.subr.mxu0 0.0
    %1017 = vmatpush1.xpose.msra.mxu0 0.0
    %1018 = vmatprep.subr.mxu0 0.0
    %1019 = vmatpush1.xpose.msra.mxu0 0.0
    %1020 = vmatprep.subr.mxu0 0.0
    %1021 = vmatpush1.xpose.msra.mxu0 0.0
    %1022 = vmatprep.subr.mxu0 0.0
    %1023 = vmatpush1.xpose.msra.mxu0 0.0
    %1024 = vmatprep.subr.mxu0 0.0
    %1025 = vmatpush1.xpose.msra.mxu0 0.0
    %1026 = vmatprep.subr.mxu0 0.0
    %1027 = vmatpush1.xpose.msra.mxu0 0.0
    %1028 = vmatprep.subr.mxu0 0.0
    %1029 = vmatpush1.xpose.msra.mxu0 0.0
    %1030 = vmatprep.subr.mxu0 0.0
    %1031 = vmatpush1.xpose.msra.mxu0 0.0
    %1032 = vmatprep.subr.mxu0 0.0
    %1033 = vmatpush1.xpose.msra.mxu0 0.0
    %1034 = vmatprep.subr.mxu0 0.0
    %1035 = vmatpush1.xpose.msra.mxu0 0.0
    %1036 = vmatprep.subr.mxu0 0.0
    %1037 = vmatpush1.xpose.msra.mxu0 0.0
    %1038 = vmatprep.subr.mxu0 0.0
    %1039 = vmatpush1.xpose.msra.mxu0 0.0
    %1040 = vmatprep.subr.mxu0 0.0
    %1041 = vmatpush1.xpose.msra.mxu0 0.0
    %1042 = vmatprep.subr.mxu0 0.0
    %1043 = vmatpush1.xpose.msra.mxu0 0.0
    %1044 = vmatprep.subr.mxu0 0.0
    %1045 = vmatpush1.xpose.msra.mxu0 0.0
    %1046 = vmatprep.subr.mxu0 0.0
    %1047 = vmatpush1.xpose.msra.mxu0 0.0
    %1048 = vmatprep.mubr.f32.mxu0 0.0
    %1049 = vmatmul.mubr.f32.gmra.mrb[0].mxu0 %v980
    %v1050 = vpop.f32.mrb[0].mxu0
    %v1051 = vadd.f32 %v37, %v1050
    %v1052 = vpop.f32.mrb[0].mxu0
    %1053 = vdwg.mxu0
    %v1054 = vsel %vm138, %v1051, -inf
    %1055 = vmax.xlane.f32.xlu0 %v1054
    %v1056 = vpop.xlane.xlu0 %1055
    %v1057 = vsub.f32 %v1051, %v1056
    %v1058 = vmul.f32 %v1057, 1.442695
    %v1059 = vpow.pop %v1058
    %v1060 = vsel %vm138, %v1059, 0.0
    %1061 = vadd.xlane.f32.xlu0 %v1060
    %v1062 = vpop.xlane.xlu0 %1061
    %v1063 = vrcp.pop %v1062
    %v1064 = vmul.f32 %v1059, %v1063
    %1065 = vrot.lane.b32.xlu0 %v132, 56
    %v1066 = vpop.permute.xlu0 %1065
    %v1069 = vsel %vm138, %v1064, 0
    %1071 = vmatprep.subr.mxu0 0.0
    %1072 = vmatpush1.msra.mxu0 %v1066
    %1073 = vmatprep.subr.mxu0 0.0
    %1074 = vmatpush1.msra.mxu0 0.0
    %1075 = vmatprep.subr.mxu0 0.0
    %1076 = vmatpush1.msra.mxu0 0.0
    %1077 = vmatprep.subr.mxu0 0.0
    %1078 = vmatpush1.msra.mxu0 0.0
    %1079 = vmatprep.subr.mxu0 0.0
    %1080 = vmatpush1.msra.mxu0 0.0
    %1081 = vmatprep.subr.mxu0 0.0
    %1082 = vmatpush1.msra.mxu0 0.0
    %1083 = vmatprep.subr.mxu0 0.0
    %1084 = vmatpush1.msra.mxu0 0.0
    %1085 = vmatprep.subr.mxu0 0.0
    %1086 = vmatpush1.msra.mxu0 0.0
    %1087 = vmatprep.subr.mxu0 0.0
    %1088 = vmatpush1.msra.mxu0 0.0
    %1089 = vmatprep.subr.mxu0 0.0
    %1090 = vmatpush1.msra.mxu0 0.0
    %1091 = vmatprep.subr.mxu0 0.0
    %1092 = vmatpush1.msra.mxu0 0.0
    %1093 = vmatprep.subr.mxu0 0.0
    %1094 = vmatpush1.msra.mxu0 0.0
    %1095 = vmatprep.subr.mxu0 0.0
    %1096 = vmatpush1.msra.mxu0 0.0
    %1097 = vmatprep.subr.mxu0 0.0
    %1098 = vmatpush1.msra.mxu0 0.0
    %1099 = vmatprep.subr.mxu0 0.0
    %1100 = vmatpush1.msra.mxu0 0.0
    %1101 = vmatprep.subr.mxu0 0.0
    %1102 = vmatpush1.msra.mxu0 0.0
    %1103 = vmatprep.subr.mxu0 0.0
    %1104 = vmatpush1.msra.mxu0 0.0
    %1105 = vmatprep.subr.mxu0 0.0
    %1106 = vmatpush1.msra.mxu0 0.0
    %1107 = vmatprep.subr.mxu0 0.0
    %1108 = vmatpush1.msra.mxu0 0.0
    %1109 = vmatprep.subr.mxu0 0.0
    %1110 = vmatpush1.msra.mxu0 0.0
    %1111 = vmatprep.subr.mxu0 0.0
    %1112 = vmatpush1.msra.mxu0 0.0
    %1113 = vmatprep.subr.mxu0 0.0
    %1114 = vmatpush1.msra.mxu0 0.0
    %1115 = vmatprep.subr.mxu0 0.0
    %1116 = vmatpush1.msra.mxu0 0.0
    %1117 = vmatprep.subr.mxu0 0.0
    %1118 = vmatpush1.msra.mxu0 0.0
    %1119 = vmatprep.subr.mxu0 0.0
    %1120 = vmatpush1.msra.mxu0 0.0
    %1121 = vmatprep.subr.mxu0 0.0
    %1122 = vmatpush1.msra.mxu0 0.0
    %1123 = vmatprep.subr.mxu0 0.0
    %1124 = vmatpush1.msra.mxu0 0.0
    %1125 = vmatprep.subr.mxu0 0.0
    %1126 = vmatpush1.msra.mxu0 0.0
    %1127 = vmatprep.subr.mxu0 0.0
    %1128 = vmatpush1.msra.mxu0 0.0
    %1129 = vmatprep.subr.mxu0 0.0
    %1130 = vmatpush1.msra.mxu0 0.0
    %1131 = vmatprep.subr.mxu0 0.0
    %1132 = vmatpush1.msra.mxu0 0.0
    %1133 = vmatprep.subr.mxu0 0.0
    %1134 = vmatpush1.msra.mxu0 0.0
    %1135 = vmatprep.mubr.f32.mxu0 0.0
    %1136 = vmatmul.mubr.f32.gmra.mrb[0].mxu0 %v1069
    %v1137 = vpop.f32.mrb[0].mxu0
    %v1138 = vadd.f32 0.0, %v1137
    %v1139 = vpop.f32.mrb[0].mxu0
    %1140 = vdwg.mxu0
    %1141 = vrot.lane.b32.xlu0 %v132, 112
    %v1142 = vpop.permute.xlu0 %1141
    %1143 = vrot.lane.b32.xlu0 %v132, 80
    %v1144 = vpop.permute.xlu0 %1143
    %v1145 = vsel %vm138, %v1142, 0
    %v1147 = vsel %vm138, %v1144, 0
    %1149 = vmatprep.subr.mxu0 0.0
    %1150 = vmatpush1.xpose.msra.mxu0 %v1147
    %1151 = vmatprep.subr.mxu0 0.0
    %1152 = vmatpush1.xpose.msra.mxu0 0.0
    %1153 = vmatprep.subr.mxu0 0.0
    %1154 = vmatpush1.xpose.msra.mxu0 0.0
    %1155 = vmatprep.subr.mxu0 0.0
    %1156 = vmatpush1.xpose.msra.mxu0 0.0
    %1157 = vmatprep.subr.mxu0 0.0
    %1158 = vmatpush1.xpose.msra.mxu0 0.0
    %1159 = vmatprep.subr.mxu0 0.0
    %1160 = vmatpush1.xpose.msra.mxu0 0.0
    %1161 = vmatprep.subr.mxu0 0.0
    %1162 = vmatpush1.xpose.msra.mxu0 0.0
    %1163 = vmatprep.subr.mxu0 0.0
    %1164 = vmatpush1.xpose.msra.mxu0 0.0
    %1165 = vmatprep.subr.mxu0 0.0
    %1166 = vmatpush1.xpose.msra.mxu0 0.0
    %1167 = vmatprep.subr.mxu0 0.0
    %1168 = vmatpush1.xpose.msra.mxu0 0.0
    %1169 = vmatprep.subr.mxu0 0.0
    %1170 = vmatpush1.xpose.msra.mxu0 0.0
    %1171 = vmatprep.subr.mxu0 0.0
    %1172 = vmatpush1.xpose.msra.mxu0 0.0
    %1173 = vmatprep.subr.mxu0 0.0
    %1174 = vmatpush1.xpose.msra.mxu0 0.0
    %1175 = vmatprep.subr.mxu0 0.0
    %1176 = vmatpush1.xpose.msra.mxu0 0.0
    %1177 = vmatprep.subr.mxu0 0.0
    %1178 = vmatpush1.xpose.msra.mxu0 0.0
    %1179 = vmatprep.subr.mxu0 0.0
    %1180 = vmatpush1.xpose.msra.mxu0 0.0
    %1181 = vmatprep.subr.mxu0 0.0
    %1182 = vmatpush1.xpose.msra.mxu0 0.0
    %1183 = vmatprep.subr.mxu0 0.0
    %1184 = vmatpush1.xpose.msra.mxu0 0.0
    %1185 = vmatprep.subr.mxu0 0.0
    %1186 = vmatpush1.xpose.msra.mxu0 0.0
    %1187 = vmatprep.subr.mxu0 0.0
    %1188 = vmatpush1.xpose.msra.mxu0 0.0
    %1189 = vmatprep.subr.mxu0 0.0
    %1190 = vmatpush1.xpose.msra.mxu0 0.0
    %1191 = vmatprep.subr.mxu0 0.0
    %1192 = vmatpush1.xpose.msra.mxu0 0.0
    %1193 = vmatprep.subr.mxu0 0.0
    %1194 = vmatpush1.xpose.msra.mxu0 0.0
    %1195 = vmatprep.subr.mxu0 0.0
    %1196 = vmatpush1.xpose.msra.mxu0 0.0
    %1197 = vmatprep.subr.mxu0 0.0
    %1198 = vmatpush1.xpose.msra.mxu0 0.0
    %1199 = vmatprep.subr.mxu0 0.0
    %1200 = vmatpush1.xpose.msra.mxu0 0.0
    %1201 = vmatprep.subr.mxu0 0.0
    %1202 = vmatpush1.xpose.msra.mxu0 0.0
    %1203 = vmatprep.subr.mxu0 0.0
    %1204 = vmatpush1.xpose.msra.mxu0 0.0
    %1205 = vmatprep.subr.mxu0 0.0
    %1206 = vmatpush1.xpose.msra.mxu0 0.0
    %1207 = vmatprep.subr.mxu0 0.0
    %1208 = vmatpush1.xpose.msra.mxu0 0.0
    %1209 = vmatprep.subr.mxu0 0.0
    %1210 = vmatpush1.xpose.msra.mxu0 0.0
    %1211 = vmatprep.subr.mxu0 0.0
    %1212 = vmatpush1.xpose.msra.mxu0 0.0
    %1213 = vmatprep.mubr.f32.mxu0 0.0
    %1214 = vmatmul.mubr.f32.gmra.mrb[0].mxu0 %v1145
    %v1215 = vpop.f32.mrb[0].mxu0
    %v1216 = vadd.f32 %v37, %v1215
    %v1217 = vpop.f32.mrb[0].mxu0
    %1218 = vdwg.mxu0
    %v1219 = vsel %vm138, %v1216, -inf
    %1220 = vmax.xlane.f32.xlu0 %v1219
    %v1221 = vpop.xlane.xlu0 %1220
    %v1222 = vsub.f32 %v1216, %v1221
    %v1223 = vmul.f32 %v1222, 1.442695
    %v1224 = vpow.pop %v1223
    %v1225 = vsel %vm138, %v1224, 0.0
    %1226 = vadd.xlane.f32.xlu0 %v1225
    %v1227 = vpop.xlane.xlu0 %1226
    %v1228 = vrcp.pop %v1227
    %v1229 = vmul.f32 %v1224, %v1228
    %1230 = vrot.lane.b32.xlu0 %v132, 48
    %v1231 = vpop.permute.xlu0 %1230
    %v1234 = vsel %vm138, %v1229, 0
    %1236 = vmatprep.subr.mxu0 0.0
    %1237 = vmatpush1.msra.mxu0 %v1231
    %1238 = vmatprep.subr.mxu0 0.0
    %1239 = vmatpush1.msra.mxu0 0.0
    %1240 = vmatprep.subr.mxu0 0.0
    %1241 = vmatpush1.msra.mxu0 0.0
    %1242 = vmatprep.subr.mxu0 0.0
    %1243 = vmatpush1.msra.mxu0 0.0
    %1244 = vmatprep.subr.mxu0 0.0
    %1245 = vmatpush1.msra.mxu0 0.0
    %1246 = vmatprep.subr.mxu0 0.0
    %1247 = vmatpush1.msra.mxu0 0.0
    %1248 = vmatprep.subr.mxu0 0.0
    %1249 = vmatpush1.msra.mxu0 0.0
    %1250 = vmatprep.subr.mxu0 0.0
    %1251 = vmatpush1.msra.mxu0 0.0
    %1252 = vmatprep.subr.mxu0 0.0
    %1253 = vmatpush1.msra.mxu0 0.0
    %1254 = vmatprep.subr.mxu0 0.0
    %1255 = vmatpush1.msra.mxu0 0.0
    %1256 = vmatprep.subr.mxu0 0.0
    %1257 = vmatpush1.msra.mxu0 0.0
    %1258 = vmatprep.subr.mxu0 0.0
    %1259 = vmatpush1.msra.mxu0 0.0
    %1260 = vmatprep.subr.mxu0 0.0
    %1261 = vmatpush1.msra.mxu0 0.0
    %1262 = vmatprep.subr.mxu0 0.0
    %1263 = vmatpush1.msra.mxu0 0.0
    %1264 = vmatprep.subr.mxu0 0.0
    %1265 = vmatpush1.msra.mxu0 0.0
    %1266 = vmatprep.subr.mxu0 0.0
    %1267 = vmatpush1.msra.mxu0 0.0
    %1268 = vmatprep.subr.mxu0 0.0
    %1269 = vmatpush1.msra.mxu0 0.0
    %1270 = vmatprep.subr.mxu0 0.0
    %1271 = vmatpush1.msra.mxu0 0.0
    %1272 = vmatprep.subr.mxu0 0.0
    %1273 = vmatpush1.msra.mxu0 0.0
    %1274 = vmatprep.subr.mxu0 0.0
    %1275 = vmatpush1.msra.mxu0 0.0
    %1276 = vmatprep.subr.mxu0 0.0
    %1277 = vmatpush1.msra.mxu0 0.0
    %1278 = vmatprep.subr.mxu0 0.0
    %1279 = vmatpush1.msra.mxu0 0.0
    %1280 = vmatprep.subr.mxu0 0.0
    %1281 = vmatpush1.msra.mxu0 0.0
    %1282 = vmatprep.subr.mxu0 0.0
    %1283 = vmatpush1.msra.mxu0 0.0
    %1284 = vmatprep.subr.mxu0 0.0
    %1285 = vmatpush1.msra.mxu0 0.0
    %1286 = vmatprep.subr.mxu0 0.0
    %1287 = vmatpush1.msra.mxu0 0.0
    %1288 = vmatprep.subr.mxu0 0.0
    %1289 = vmatpush1.msra.mxu0 0.0
    %1290 = vmatprep.subr.mxu0 0.0
    %1291 = vmatpush1.msra.mxu0 0.0
    %1292 = vmatprep.subr.mxu0 0.0
    %1293 = vmatpush1.msra.mxu0 0.0
    %1294 = vmatprep.subr.mxu0 0.0
    %1295 = vmatpush1.msra.mxu0 0.0
    %1296 = vmatprep.subr.mxu0 0.0
    %1297 = vmatpush1.msra.mxu0 0.0
    %1298 = vmatprep.subr.mxu0 0.0
    %1299 = vmatpush1.msra.mxu0 0.0
    %1300 = vmatprep.mubr.f32.mxu0 0.0
    %1301 = vmatmul.mubr.f32.gmra.mrb[0].mxu0 %v1234
    %v1302 = vpop.f32.mrb[0].mxu0
    %v1303 = vadd.f32 0.0, %v1302
    %v1304 = vpop.f32.mrb[0].mxu0
    %1305 = vdwg.mxu0
    %1306 = vrot.lane.b32.xlu0 %v132, 104
    %v1307 = vpop.permute.xlu0 %1306
    %1308 = vrot.lane.b32.xlu0 %v132, 72
    %v1309 = vpop.permute.xlu0 %1308
    %v1310 = vsel %vm138, %v1307, 0
    %v1312 = vsel %vm138, %v1309, 0
    %1314 = vmatprep.subr.mxu0 0.0
    %1315 = vmatpush1.xpose.msra.mxu0 %v1312
    %1316 = vmatprep.subr.mxu0 0.0
    %1317 = vmatpush1.xpose.msra.mxu0 0.0
    %1318 = vmatprep.subr.mxu0 0.0
    %1319 = vmatpush1.xpose.msra.mxu0 0.0
    %1320 = vmatprep.subr.mxu0 0.0
    %1321 = vmatpush1.xpose.msra.mxu0 0.0
    %1322 = vmatprep.subr.mxu0 0.0
    %1323 = vmatpush1.xpose.msra.mxu0 0.0
    %1324 = vmatprep.subr.mxu0 0.0
    %1325 = vmatpush1.xpose.msra.mxu0 0.0
    %1326 = vmatprep.subr.mxu0 0.0
    %1327 = vmatpush1.xpose.msra.mxu0 0.0
    %1328 = vmatprep.subr.mxu0 0.0
    %1329 = vmatpush1.xpose.msra.mxu0 0.0
    %1330 = vmatprep.subr.mxu0 0.0
    %1331 = vmatpush1.xpose.msra.mxu0 0.0
    %1332 = vmatprep.subr.mxu0 0.0
    %1333 = vmatpush1.xpose.msra.mxu0 0.0
    %1334 = vmatprep.subr.mxu0 0.0
    %1335 = vmatpush1.xpose.msra.mxu0 0.0
    %1336 = vmatprep.subr.mxu0 0.0
    %1337 = vmatpush1.xpose.msra.mxu0 0.0
    %1338 = vmatprep.subr.mxu0 0.0
    %1339 = vmatpush1.xpose.msra.mxu0 0.0
    %1340 = vmatprep.subr.mxu0 0.0
    %1341 = vmatpush1.xpose.msra.mxu0 0.0
    %1342 = vmatprep.subr.mxu0 0.0
    %1343 = vmatpush1.xpose.msra.mxu0 0.0
    %1344 = vmatprep.subr.mxu0 0.0
    %1345 = vmatpush1.xpose.msra.mxu0 0.0
    %1346 = vmatprep.subr.mxu0 0.0
    %1347 = vmatpush1.xpose.msra.mxu0 0.0
    %1348 = vmatprep.subr.mxu0 0.0
    %1349 = vmatpush1.xpose.msra.mxu0 0.0
    %1350 = vmatprep.subr.mxu0 0.0
    %1351 = vmatpush1.xpose.msra.mxu0 0.0
    %1352 = vmatprep.subr.mxu0 0.0
    %1353 = vmatpush1.xpose.msra.mxu0 0.0
    %1354 = vmatprep.subr.mxu0 0.0
    %1355 = vmatpush1.xpose.msra.mxu0 0.0
    %1356 = vmatprep.subr.mxu0 0.0
    %1357 = vmatpush1.xpose.msra.mxu0 0.0
    %1358 = vmatprep.subr.mxu0 0.0
    %1359 = vmatpush1.xpose.msra.mxu0 0.0
    %1360 = vmatprep.subr.mxu0 0.0
    %1361 = vmatpush1.xpose.msra.mxu0 0.0
    %1362 = vmatprep.subr.mxu0 0.0
    %1363 = vmatpush1.xpose.msra.mxu0 0.0
    %1364 = vmatprep.subr.mxu0 0.0
    %1365 = vmatpush1.xpose.msra.mxu0 0.0
    %1366 = vmatprep.subr.mxu0 0.0
    %1367 = vmatpush1.xpose.msra.mxu0 0.0
    %1368 = vmatprep.subr.mxu0 0.0
    %1369 = vmatpush1.xpose.msra.mxu0 0.0
    %1370 = vmatprep.subr.mxu0 0.0
    %1371 = vmatpush1.xpose.msra.mxu0 0.0
    %1372 = vmatprep.subr.mxu0 0.0
    %1373 = vmatpush1.xpose.msra.mxu0 0.0
    %1374 = vmatprep.subr.mxu0 0.0
    %1375 = vmatpush1.xpose.msra.mxu0 0.0
    %1376 = vmatprep.subr.mxu0 0.0
    %1377 = vmatpush1.xpose.msra.mxu0 0.0
    %1378 = vmatprep.mubr.f32.mxu0 0.0
    %1379 = vmatmul.mubr.f32.gmra.mrb[0].mxu0 %v1310
    %v1380 = vpop.f32.mrb[0].mxu0
    %v1381 = vadd.f32 %v37, %v1380
    %v1382 = vpop.f32.mrb[0].mxu0
    %1383 = vdwg.mxu0
    %v1384 = vsel %vm138, %v1381, -inf
    %1385 = vmax.xlane.f32.xlu0 %v1384
    %v1386 = vpop.xlane.xlu0 %1385
    %v1387 = vsub.f32 %v1381, %v1386
    %v1388 = vmul.f32 %v1387, 1.442695
    %v1389 = vpow.pop %v1388
    %v1390 = vsel %vm138, %v1389, 0.0
    %1391 = vadd.xlane.f32.xlu0 %v1390
    %v1392 = vpop.xlane.xlu0 %1391
    %v1393 = vrcp.pop %v1392
    %v1394 = vmul.f32 %v1389, %v1393
    %1395 = vrot.lane.b32.xlu0 %v132, 40
    %v1396 = vpop.permute.xlu0 %1395
    %v1399 = vsel %vm138, %v1394, 0
    %1401 = vmatprep.subr.mxu0 0.0
    %1402 = vmatpush1.msra.mxu0 %v1396
    %1403 = vmatprep.subr.mxu0 0.0
    %1404 = vmatpush1.msra.mxu0 0.0
    %1405 = vmatprep.subr.mxu0 0.0
    %1406 = vmatpush1.msra.mxu0 0.0
    %1407 = vmatprep.subr.mxu0 0.0
    %1408 = vmatpush1.msra.mxu0 0.0
    %1409 = vmatprep.subr.mxu0 0.0
    %1410 = vmatpush1.msra.mxu0 0.0
    %1411 = vmatprep.subr.mxu0 0.0
    %1412 = vmatpush1.msra.mxu0 0.0
    %1413 = vmatprep.subr.mxu0 0.0
    %1414 = vmatpush1.msra.mxu0 0.0
    %1415 = vmatprep.subr.mxu0 0.0
    %1416 = vmatpush1.msra.mxu0 0.0
    %1417 = vmatprep.subr.mxu0 0.0
    %1418 = vmatpush1.msra.mxu0 0.0
    %1419 = vmatprep.subr.mxu0 0.0
    %1420 = vmatpush1.msra.mxu0 0.0
    %1421 = vmatprep.subr.mxu0 0.0
    %1422 = vmatpush1.msra.mxu0 0.0
    %1423 = vmatprep.subr.mxu0 0.0
    %1424 = vmatpush1.msra.mxu0 0.0
    %1425 = vmatprep.subr.mxu0 0.0
    %1426 = vmatpush1.msra.mxu0 0.0
    %1427 = vmatprep.subr.mxu0 0.0
    %1428 = vmatpush1.msra.mxu0 0.0
    %1429 = vmatprep.subr.mxu0 0.0
    %1430 = vmatpush1.msra.mxu0 0.0
    %1431 = vmatprep.subr.mxu0 0.0
    %1432 = vmatpush1.msra.mxu0 0.0
    %1433 = vmatprep.subr.mxu0 0.0
    %1434 = vmatpush1.msra.mxu0 0.0
    %1435 = vmatprep.subr.mxu0 0.0
    %1436 = vmatpush1.msra.mxu0 0.0
    %1437 = vmatprep.subr.mxu0 0.0
    %1438 = vmatpush1.msra.mxu0 0.0
    %1439 = vmatprep.subr.mxu0 0.0
    %1440 = vmatpush1.msra.mxu0 0.0
    %1441 = vmatprep.subr.mxu0 0.0
    %1442 = vmatpush1.msra.mxu0 0.0
    %1443 = vmatprep.subr.mxu0 0.0
    %1444 = vmatpush1.msra.mxu0 0.0
    %1445 = vmatprep.subr.mxu0 0.0
    %1446 = vmatpush1.msra.mxu0 0.0
    %1447 = vmatprep.subr.mxu0 0.0
    %1448 = vmatpush1.msra.mxu0 0.0
    %1449 = vmatprep.subr.mxu0 0.0
    %1450 = vmatpush1.msra.mxu0 0.0
    %1451 = vmatprep.subr.mxu0 0.0
    %1452 = vmatpush1.msra.mxu0 0.0
    %1453 = vmatprep.subr.mxu0 0.0
    %1454 = vmatpush1.msra.mxu0 0.0
    %1455 = vmatprep.subr.mxu0 0.0
    %1456 = vmatpush1.msra.mxu0 0.0
    %1457 = vmatprep.subr.mxu0 0.0
    %1458 = vmatpush1.msra.mxu0 0.0
    %1459 = vmatprep.subr.mxu0 0.0
    %1460 = vmatpush1.msra.mxu0 0.0
    %1461 = vmatprep.subr.mxu0 0.0
    %1462 = vmatpush1.msra.mxu0 0.0
    %1463 = vmatprep.subr.mxu0 0.0
    %1464 = vmatpush1.msra.mxu0 0.0
    %1465 = vmatprep.mubr.f32.mxu0 0.0
    %1466 = vmatmul.mubr.f32.gmra.mrb[0].mxu0 %v1399
    %v1467 = vpop.f32.mrb[0].mxu0
    %v1468 = vadd.f32 0.0, %v1467
    %v1469 = vpop.f32.mrb[0].mxu0
    %1470 = vdwg.mxu0
    %1472 = vrot.lane.b32.xlu0 %v1138, 8
    %v1473 = vpop.permute.xlu0 %1472
    %1476 = vrot.lane.b32.xlu0 %v1303, 16
    %v1477 = vpop.permute.xlu0 %1476
    %1480 = vrot.lane.b32.xlu0 %v1468, 24
    %v1481 = vpop.permute.xlu0 %1480
    %v1483 = vsel %vm138, %v973, %v1473
    %v1484 = vsel %vm808, %v1483, %v1477
    %v1485 = vsel %vm810, %v1484, %v1481
    %v1486 = vld [vmem:[%s4] sm:$0xff]
    %v1487 = vld [vmem:[%s4 + $0x8] sm:$0xff]
    %v1488 = vld [vmem:[%s4 + $0x10] sm:$0xff]
    %v1489 = vld [vmem:[%s4 + $0x18] sm:$0xff]
    %v1490 = vld [vmem:[%s7] sm:$0x1]
    %v1492 = vlaneseq
    %v1493 = vshrl.u32 %v1492, 7
    %v1494 = vsub.s32 0, %v1493
    %v1495 = vrot.slane %v1490, %v1494
    %v1498 = vsel %vm53, %v811, 0
    %v1501 = vsel %vm53, %v1485, 0
    %1503 = vmatprep.subr.mxu0 0.0
    %1504 = vmatpush1.msra.mxu0 %v1486
    %1505 = vmatprep.subr.mxu0 0.0
    %1506 = vmatpush1.msra.mxu0 %v1487
    %1507 = vmatprep.subr.mxu0 0.0
    %1508 = vmatpush1.msra.mxu0 %v1488
    %1509 = vmatprep.subr.mxu0 0.0
    %1510 = vmatpush1.msra.mxu0 %v1489
    %1511 = vmatprep.subr.mxu0 0.0
    %1512 = vmatpush1.msra.mxu0 0.0
    %1513 = vmatprep.subr.mxu0 0.0
    %1514 = vmatpush1.msra.mxu0 0.0
    %1515 = vmatprep.subr.mxu0 0.0
    %1516 = vmatpush1.msra.mxu0 0.0
    %1517 = vmatprep.subr.mxu0 0.0
    %1518 = vmatpush1.msra.mxu0 0.0
    %1519 = vmatprep.subr.mxu0 0.0
    %1520 = vmatpush1.msra.mxu0 0.0
    %1521 = vmatprep.subr.mxu0 0.0
    %1522 = vmatpush1.msra.mxu0 0.0
    %1523 = vmatprep.subr.mxu0 0.0
    %1524 = vmatpush1.msra.mxu0 0.0
    %1525 = vmatprep.subr.mxu0 0.0
    %1526 = vmatpush1.msra.mxu0 0.0
    %1527 = vmatprep.subr.mxu0 0.0
    %1528 = vmatpush1.msra.mxu0 0.0
    %1529 = vmatprep.subr.mxu0 0.0
    %1530 = vmatpush1.msra.mxu0 0.0
    %1531 = vmatprep.subr.mxu0 0.0
    %1532 = vmatpush1.msra.mxu0 0.0
    %1533 = vmatprep.subr.mxu0 0.0
    %1534 = vmatpush1.msra.mxu0 0.0
    %1535 = vmatprep.subr.mxu0 0.0
    %1536 = vmatpush1.msra.mxu0 0.0
    %1537 = vmatprep.subr.mxu0 0.0
    %1538 = vmatpush1.msra.mxu0 0.0
    %1539 = vmatprep.subr.mxu0 0.0
    %1540 = vmatpush1.msra.mxu0 0.0
    %1541 = vmatprep.subr.mxu0 0.0
    %1542 = vmatpush1.msra.mxu0 0.0
    %1543 = vmatprep.subr.mxu0 0.0
    %1544 = vmatpush1.msra.mxu0 0.0
    %1545 = vmatprep.subr.mxu0 0.0
    %1546 = vmatpush1.msra.mxu0 0.0
    %1547 = vmatprep.subr.mxu0 0.0
    %1548 = vmatpush1.msra.mxu0 0.0
    %1549 = vmatprep.subr.mxu0 0.0
    %1550 = vmatpush1.msra.mxu0 0.0
    %1551 = vmatprep.subr.mxu0 0.0
    %1552 = vmatpush1.msra.mxu0 0.0
    %1553 = vmatprep.subr.mxu0 0.0
    %1554 = vmatpush1.msra.mxu0 0.0
    %1555 = vmatprep.subr.mxu0 0.0
    %1556 = vmatpush1.msra.mxu0 0.0
    %1557 = vmatprep.subr.mxu0 0.0
    %1558 = vmatpush1.msra.mxu0 0.0
    %1559 = vmatprep.subr.mxu0 0.0
    %1560 = vmatpush1.msra.mxu0 0.0
    %1561 = vmatprep.subr.mxu0 0.0
    %1562 = vmatpush1.msra.mxu0 0.0
    %1563 = vmatprep.subr.mxu0 0.0
    %1564 = vmatpush1.msra.mxu0 0.0
    %1565 = vmatprep.subr.mxu0 0.0
    %1566 = vmatpush1.msra.mxu0 0.0
    %1567 = vmatprep.mubr.f32.mxu0 0.0
    %1568 = vmatmul.mubr.f32.gmra.mrb[0].mxu0 %v1498
    %v1569 = vpop.f32.mrb[0].mxu0
    %v1570 = vadd.f32 %v1495, %v1569
    %v1571 = vpop.f32.mrb[0].mxu0
    %1572 = vmatprep.mubr.f32.mxu0 0.0
    %1573 = vmatmul.mubr.f32.gmra.mrb[0].mxu0 %v1501
    %v1574 = vpop.f32.mrb[0].mxu0
    %v1575 = vadd.f32 %v1495, %v1574
    %v1576 = vpop.f32.mrb[0].mxu0
    %1577 = vdwg.mxu0
    %v1578 = vadd.f32 %v38, %v1570
    %v1579 = vadd.f32 %v39, %v1575
    %s1580 = scalar_lea.vmem %s7, 3
    %v1581 = vld [vmem:[%s1580] sm:$0x1]
    %s1582 = scalar_lea.vmem %s7, 4
    %v1583 = vld [vmem:[%s1582] sm:$0x1]
    %v1584 = vsel %vm53, %v1578, 0.0
    %1585 = vadd.xlane.f32.xlu0 %v1584
    %v1586 = vpop.xlane.xlu0 %1585
    %v1587 = vsel %vm53, %v1579, 0.0
    %1588 = vadd.xlane.f32.xlu0 %v1587
    %v1589 = vpop.xlane.xlu0 %1588
    %v1590 = vrcp.pop 32.0
    %v1591 = vmul.f32 %v1586, %v1590
    %v1592 = vmul.f32 %v1589, %v1590
    %v1593 = vsub.f32 %v1578, %v1591
    %v1594 = vsub.f32 %v1579, %v1592
    %v1595 = vmul.f32 %v1593, %v1593
    %v1596 = vmul.f32 %v1594, %v1594
    %v1597 = vsel %vm53, %v1595, 0.0
    %1598 = vadd.xlane.f32.xlu0 %v1597
    %v1599 = vpop.xlane.xlu0 %1598
    %v1600 = vsel %vm53, %v1596, 0.0
    %1601 = vadd.xlane.f32.xlu0 %v1600
    %v1602 = vpop.xlane.xlu0 %1601
    %v1603 = vmul.f32 %v1599, %v1590
    %v1604 = vmul.f32 %v1602, %v1590
    %v1605 = vadd.f32 %v1603, 1e-05
    %v1606 = vadd.f32 %v1604, 1e-05
    %v1607 = vrsqrt.pop %v1605
    %v1608 = vrsqrt.pop %v1606
    %v1609 = vmul.f32 %v1593, %v1607
    %v1610 = vmul.f32 %v1594, %v1608
    %v1612 = vlaneseq
    %v1613 = vshrl.u32 %v1612, 7
    %v1614 = vsub.s32 0, %v1613
    %v1615 = vrot.slane %v1581, %v1614
    %v1617 = vmul.f32 %v1609, %v1615
    %v1618 = vmul.f32 %v1610, %v1615
    %v1620 = vlaneseq
    %v1621 = vshrl.u32 %v1620, 7
    %v1622 = vsub.s32 0, %v1621
    %v1623 = vrot.slane %v1583, %v1622
    %v1625 = vadd.f32 %v1617, %v1623
    %v1626 = vadd.f32 %v1618, %v1623
    %s1627 = scalar_lea.vmem %s2, 32
    %v1628 = vld [vmem:[%s1627] sm:$0xff]
    %v1629 = vld [vmem:[%s1627 + $0x8] sm:$0xff]
    %v1630 = vld [vmem:[%s1627 + $0x10] sm:$0xff]
    %v1631 = vld [vmem:[%s1627 + $0x18] sm:$0xff]
    %s1632 = scalar_lea.vmem %s3, 1
    %v1633 = vld [vmem:[%s1632] sm:$0x1]
    %v1635 = vlaneseq
    %v1636 = vshrl.u32 %v1635, 7
    %v1637 = vsub.s32 0, %v1636
    %v1638 = vrot.slane %v1633, %v1637
    %v1641 = vsel %vm53, %v1625, 0
    %v1644 = vsel %vm53, %v1626, 0
    %1646 = vmatprep.subr.mxu0 0.0
    %1647 = vmatpush1.msra.mxu0 %v1628
    %1648 = vmatprep.subr.mxu0 0.0
    %1649 = vmatpush1.msra.mxu0 %v1629
    %1650 = vmatprep.subr.mxu0 0.0
    %1651 = vmatpush1.msra.mxu0 %v1630
    %1652 = vmatprep.subr.mxu0 0.0
    %1653 = vmatpush1.msra.mxu0 %v1631
    %1654 = vmatprep.subr.mxu0 0.0
    %1655 = vmatpush1.msra.mxu0 0.0
    %1656 = vmatprep.subr.mxu0 0.0
    %1657 = vmatpush1.msra.mxu0 0.0
    %1658 = vmatprep.subr.mxu0 0.0
    %1659 = vmatpush1.msra.mxu0 0.0
    %1660 = vmatprep.subr.mxu0 0.0
    %1661 = vmatpush1.msra.mxu0 0.0
    %1662 = vmatprep.subr.mxu0 0.0
    %1663 = vmatpush1.msra.mxu0 0.0
    %1664 = vmatprep.subr.mxu0 0.0
    %1665 = vmatpush1.msra.mxu0 0.0
    %1666 = vmatprep.subr.mxu0 0.0
    %1667 = vmatpush1.msra.mxu0 0.0
    %1668 = vmatprep.subr.mxu0 0.0
    %1669 = vmatpush1.msra.mxu0 0.0
    %1670 = vmatprep.subr.mxu0 0.0
    %1671 = vmatpush1.msra.mxu0 0.0
    %1672 = vmatprep.subr.mxu0 0.0
    %1673 = vmatpush1.msra.mxu0 0.0
    %1674 = vmatprep.subr.mxu0 0.0
    %1675 = vmatpush1.msra.mxu0 0.0
    %1676 = vmatprep.subr.mxu0 0.0
    %1677 = vmatpush1.msra.mxu0 0.0
    %1678 = vmatprep.subr.mxu0 0.0
    %1679 = vmatpush1.msra.mxu0 0.0
    %1680 = vmatprep.subr.mxu0 0.0
    %1681 = vmatpush1.msra.mxu0 0.0
    %1682 = vmatprep.subr.mxu0 0.0
    %1683 = vmatpush1.msra.mxu0 0.0
    %1684 = vmatprep.subr.mxu0 0.0
    %1685 = vmatpush1.msra.mxu0 0.0
    %1686 = vmatprep.subr.mxu0 0.0
    %1687 = vmatpush1.msra.mxu0 0.0
    %1688 = vmatprep.subr.mxu0 0.0
    %1689 = vmatpush1.msra.mxu0 0.0
    %1690 = vmatprep.subr.mxu0 0.0
    %1691 = vmatpush1.msra.mxu0 0.0
    %1692 = vmatprep.subr.mxu0 0.0
    %1693 = vmatpush1.msra.mxu0 0.0
    %1694 = vmatprep.subr.mxu0 0.0
    %1695 = vmatpush1.msra.mxu0 0.0
    %1696 = vmatprep.subr.mxu0 0.0
    %1697 = vmatpush1.msra.mxu0 0.0
    %1698 = vmatprep.subr.mxu0 0.0
    %1699 = vmatpush1.msra.mxu0 0.0
    %1700 = vmatprep.subr.mxu0 0.0
    %1701 = vmatpush1.msra.mxu0 0.0
    %1702 = vmatprep.subr.mxu0 0.0
    %1703 = vmatpush1.msra.mxu0 0.0
    %1704 = vmatprep.subr.mxu0 0.0
    %1705 = vmatpush1.msra.mxu0 0.0
    %1706 = vmatprep.subr.mxu0 0.0
    %1707 = vmatpush1.msra.mxu0 0.0
    %1708 = vmatprep.subr.mxu0 0.0
    %1709 = vmatpush1.msra.mxu0 0.0
    %1710 = vmatprep.mubr.f32.mxu0 0.0
    %1711 = vmatmul.mubr.f32.gmra.mrb[0].mxu0 %v1641
    %v1712 = vpop.f32.mrb[0].mxu0
    %v1713 = vadd.f32 %v1638, %v1712
    %v1714 = vpop.f32.mrb[0].mxu0
    %1715 = vmatprep.mubr.f32.mxu0 0.0
    %1716 = vmatmul.mubr.f32.gmra.mrb[0].mxu0 %v1644
    %v1717 = vpop.f32.mrb[0].mxu0
    %v1718 = vadd.f32 %v1638, %v1717
    %v1719 = vpop.f32.mrb[0].mxu0
    %1720 = vdwg.mxu0
    %v1722 = vsel %vm53, %v40, 0
    %v1725 = vsel %vm53, %v41, 0
    %1727 = vmatprep.subr.mxu0 0.0
    %1728 = vmatpush1.msra.mxu0 %v1628
    %1729 = vmatprep.subr.mxu0 0.0
    %1730 = vmatpush1.msra.mxu0 %v1629
    %1731 = vmatprep.subr.mxu0 0.0
    %1732 = vmatpush1.msra.mxu0 %v1630
    %1733 = vmatprep.subr.mxu0 0.0
    %1734 = vmatpush1.msra.mxu0 %v1631
    %1735 = vmatprep.subr.mxu0 0.0
    %1736 = vmatpush1.msra.mxu0 0.0
    %1737 = vmatprep.subr.mxu0 0.0
    %1738 = vmatpush1.msra.mxu0 0.0
    %1739 = vmatprep.subr.mxu0 0.0
    %1740 = vmatpush1.msra.mxu0 0.0
    %1741 = vmatprep.subr.mxu0 0.0
    %1742 = vmatpush1.msra.mxu0 0.0
    %1743 = vmatprep.subr.mxu0 0.0
    %1744 = vmatpush1.msra.mxu0 0.0
    %1745 = vmatprep.subr.mxu0 0.0
    %1746 = vmatpush1.msra.mxu0 0.0
    %1747 = vmatprep.subr.mxu0 0.0
    %1748 = vmatpush1.msra.mxu0 0.0
    %1749 = vmatprep.subr.mxu0 0.0
    %1750 = vmatpush1.msra.mxu0 0.0
    %1751 = vmatprep.subr.mxu0 0.0
    %1752 = vmatpush1.msra.mxu0 0.0
    %1753 = vmatprep.subr.mxu0 0.0
    %1754 = vmatpush1.msra.mxu0 0.0
    %1755 = vmatprep.subr.mxu0 0.0
    %1756 = vmatpush1.msra.mxu0 0.0
    %1757 = vmatprep.subr.mxu0 0.0
    %1758 = vmatpush1.msra.mxu0 0.0
    %1759 = vmatprep.subr.mxu0 0.0
    %1760 = vmatpush1.msra.mxu0 0.0
    %1761 = vmatprep.subr.mxu0 0.0
    %1762 = vmatpush1.msra.mxu0 0.0
    %1763 = vmatprep.subr.mxu0 0.0
    %1764 = vmatpush1.msra.mxu0 0.0
    %1765 = vmatprep.subr.mxu0 0.0
    %1766 = vmatpush1.msra.mxu0 0.0
    %1767 = vmatprep.subr.mxu0 0.0
    %1768 = vmatpush1.msra.mxu0 0.0
    %1769 = vmatprep.subr.mxu0 0.0
    %1770 = vmatpush1.msra.mxu0 0.0
    %1771 = vmatprep.subr.mxu0 0.0
    %1772 = vmatpush1.msra.mxu0 0.0
    %1773 = vmatprep.subr.mxu0 0.0
    %1774 = vmatpush1.msra.mxu0 0.0
    %1775 = vmatprep.subr.mxu0 0.0
    %1776 = vmatpush1.msra.mxu0 0.0
    %1777 = vmatprep.subr.mxu0 0.0
    %1778 = vmatpush1.msra.mxu0 0.0
    %1779 = vmatprep.subr.mxu0 0.0
    %1780 = vmatpush1.msra.mxu0 0.0
    %1781 = vmatprep.subr.mxu0 0.0
    %1782 = vmatpush1.msra.mxu0 0.0
    %1783 = vmatprep.subr.mxu0 0.0
    %1784 = vmatpush1.msra.mxu0 0.0
    %1785 = vmatprep.subr.mxu0 0.0
    %1786 = vmatpush1.msra.mxu0 0.0
    %1787 = vmatprep.subr.mxu0 0.0
    %1788 = vmatpush1.msra.mxu0 0.0
    %1789 = vmatprep.subr.mxu0 0.0
    %1790 = vmatpush1.msra.mxu0 0.0
    %1791 = vmatprep.mubr.f32.mxu0 0.0
    %1792 = vmatmul.mubr.f32.gmra.mrb[0].mxu0 %v1722
    %v1793 = vpop.f32.mrb[0].mxu0
    %v1794 = vadd.f32 %v1638, %v1793
    %v1795 = vpop.f32.mrb[0].mxu0
    %1796 = vmatprep.mubr.f32.mxu0 0.0
    %1797 = vmatmul.mubr.f32.gmra.mrb[0].mxu0 %v1725
    %v1798 = vpop.f32.mrb[0].mxu0
    %v1799 = vadd.f32 %v1638, %v1798
    %v1800 = vpop.f32.mrb[0].mxu0
    %1801 = vdwg.mxu0
    %1803 = vrot.lane.b32.xlu0 %v1794, 96
    %v1804 = vpop.permute.xlu0 %1803
    %v1806 = vsel %vm138, %v1713, 0
    %v1808 = vsel %vm138, %v1804, 0
    %1810 = vmatprep.subr.mxu0 0.0
    %1811 = vmatpush1.xpose.msra.mxu0 %v1808
    %1812 = vmatprep.subr.mxu0 0.0
    %1813 = vmatpush1.xpose.msra.mxu0 0.0
    %1814 = vmatprep.subr.mxu0 0.0
    %1815 = vmatpush1.xpose.msra.mxu0 0.0
    %1816 = vmatprep.subr.mxu0 0.0
    %1817 = vmatpush1.xpose.msra.mxu0 0.0
    %1818 = vmatprep.subr.mxu0 0.0
    %1819 = vmatpush1.xpose.msra.mxu0 0.0
    %1820 = vmatprep.subr.mxu0 0.0
    %1821 = vmatpush1.xpose.msra.mxu0 0.0
    %1822 = vmatprep.subr.mxu0 0.0
    %1823 = vmatpush1.xpose.msra.mxu0 0.0
    %1824 = vmatprep.subr.mxu0 0.0
    %1825 = vmatpush1.xpose.msra.mxu0 0.0
    %1826 = vmatprep.subr.mxu0 0.0
    %1827 = vmatpush1.xpose.msra.mxu0 0.0
    %1828 = vmatprep.subr.mxu0 0.0
    %1829 = vmatpush1.xpose.msra.mxu0 0.0
    %1830 = vmatprep.subr.mxu0 0.0
    %1831 = vmatpush1.xpose.msra.mxu0 0.0
    %1832 = vmatprep.subr.mxu0 0.0
    %1833 = vmatpush1.xpose.msra.mxu0 0.0
    %1834 = vmatprep.subr.mxu0 0.0
    %1835 = vmatpush1.xpose.msra.mxu0 0.0
    %1836 = vmatprep.subr.mxu0 0.0
    %1837 = vmatpush1.xpose.msra.mxu0 0.0
    %1838 = vmatprep.subr.mxu0 0.0
    %1839 = vmatpush1.xpose.msra.mxu0 0.0
    %1840 = vmatprep.subr.mxu0 0.0
    %1841 = vmatpush1.xpose.msra.mxu0 0.0
    %1842 = vmatprep.subr.mxu0 0.0
    %1843 = vmatpush1.xpose.msra.mxu0 0.0
    %1844 = vmatprep.subr.mxu0 0.0
    %1845 = vmatpush1.xpose.msra.mxu0 0.0
    %1846 = vmatprep.subr.mxu0 0.0
    %1847 = vmatpush1.xpose.msra.mxu0 0.0
    %1848 = vmatprep.subr.mxu0 0.0
    %1849 = vmatpush1.xpose.msra.mxu0 0.0
    %1850 = vmatprep.subr.mxu0 0.0
    %1851 = vmatpush1.xpose.msra.mxu0 0.0
    %1852 = vmatprep.subr.mxu0 0.0
    %1853 = vmatpush1.xpose.msra.mxu0 0.0
    %1854 = vmatprep.subr.mxu0 0.0
    %1855 = vmatpush1.xpose.msra.mxu0 0.0
    %1856 = vmatprep.subr.mxu0 0.0
    %1857 = vmatpush1.xpose.msra.mxu0 0.0
    %1858 = vmatprep.subr.mxu0 0.0
    %1859 = vmatpush1.xpose.msra.mxu0 0.0
    %1860 = vmatprep.subr.mxu0 0.0
    %1861 = vmatpush1.xpose.msra.mxu0 0.0
    %1862 = vmatprep.subr.mxu0 0.0
    %1863 = vmatpush1.xpose.msra.mxu0 0.0
    %1864 = vmatprep.subr.mxu0 0.0
    %1865 = vmatpush1.xpose.msra.mxu0 0.0
    %1866 = vmatprep.subr.mxu0 0.0
    %1867 = vmatpush1.xpose.msra.mxu0 0.0
    %1868 = vmatprep.subr.mxu0 0.0
    %1869 = vmatpush1.xpose.msra.mxu0 0.0
    %1870 = vmatprep.subr.mxu0 0.0
    %1871 = vmatpush1.xpose.msra.mxu0 0.0
    %1872 = vmatprep.subr.mxu0 0.0
    %1873 = vmatpush1.xpose.msra.mxu0 0.0
    %1874 = vmatprep.mubr.f32.mxu0 0.0
    %1875 = vmatmul.mubr.f32.gmra.mrb[0].mxu0 %v1806
    %v1876 = vpop.f32.mrb[0].mxu0
    %v1877 = vadd.f32 0.0, %v1876
    %v1878 = vpop.f32.mrb[0].mxu0
    %1879 = vdwg.mxu0
    %v1880 = vsel %vm138, %v1877, -inf
    %1881 = vmax.xlane.f32.xlu0 %v1880
    %v1882 = vpop.xlane.xlu0 %1881
    %v1883 = vsub.f32 %v1877, %v1882
    %v1884 = vmul.f32 %v1883, 1.442695
    %v1885 = vpow.pop %v1884
    %v1886 = vsel %vm138, %v1885, 0.0
    %1887 = vadd.xlane.f32.xlu0 %v1886
    %v1888 = vpop.xlane.xlu0 %1887
    %v1889 = vrcp.pop %v1888
    %v1890 = vmul.f32 %v1885, %v1889
    %v1891 = vmul.f32 %v1890, 0.25
    %v1892 = vadd.f32 %v1891, 0.0
    %1893 = vrot.lane.b32.xlu0 %v1794, 64
    %v1894 = vpop.permute.xlu0 %1893
    %v1897 = vsel %vm138, %v1890, 0
    %1899 = vmatprep.subr.mxu0 0.0
    %1900 = vmatpush1.msra.mxu0 %v1894
    %1901 = vmatprep.subr.mxu0 0.0
    %1902 = vmatpush1.msra.mxu0 0.0
    %1903 = vmatprep.subr.mxu0 0.0
    %1904 = vmatpush1.msra.mxu0 0.0
    %1905 = vmatprep.subr.mxu0 0.0
    %1906 = vmatpush1.msra.mxu0 0.0
    %1907 = vmatprep.subr.mxu0 0.0
    %1908 = vmatpush1.msra.mxu0 0.0
    %1909 = vmatprep.subr.mxu0 0.0
    %1910 = vmatpush1.msra.mxu0 0.0
    %1911 = vmatprep.subr.mxu0 0.0
    %1912 = vmatpush1.msra.mxu0 0.0
    %1913 = vmatprep.subr.mxu0 0.0
    %1914 = vmatpush1.msra.mxu0 0.0
    %1915 = vmatprep.subr.mxu0 0.0
    %1916 = vmatpush1.msra.mxu0 0.0
    %1917 = vmatprep.subr.mxu0 0.0
    %1918 = vmatpush1.msra.mxu0 0.0
    %1919 = vmatprep.subr.mxu0 0.0
    %1920 = vmatpush1.msra.mxu0 0.0
    %1921 = vmatprep.subr.mxu0 0.0
    %1922 = vmatpush1.msra.mxu0 0.0
    %1923 = vmatprep.subr.mxu0 0.0
    %1924 = vmatpush1.msra.mxu0 0.0
    %1925 = vmatprep.subr.mxu0 0.0
    %1926 = vmatpush1.msra.mxu0 0.0
    %1927 = vmatprep.subr.mxu0 0.0
    %1928 = vmatpush1.msra.mxu0 0.0
    %1929 = vmatprep.subr.mxu0 0.0
    %1930 = vmatpush1.msra.mxu0 0.0
    %1931 = vmatprep.subr.mxu0 0.0
    %1932 = vmatpush1.msra.mxu0 0.0
    %1933 = vmatprep.subr.mxu0 0.0
    %1934 = vmatpush1.msra.mxu0 0.0
    %1935 = vmatprep.subr.mxu0 0.0
    %1936 = vmatpush1.msra.mxu0 0.0
    %1937 = vmatprep.subr.mxu0 0.0
    %1938 = vmatpush1.msra.mxu0 0.0
    %1939 = vmatprep.subr.mxu0 0.0
    %1940 = vmatpush1.msra.mxu0 0.0
    %1941 = vmatprep.subr.mxu0 0.0
    %1942 = vmatpush1.msra.mxu0 0.0
    %1943 = vmatprep.subr.mxu0 0.0
    %1944 = vmatpush1.msra.mxu0 0.0
    %1945 = vmatprep.subr.mxu0 0.0
    %1946 = vmatpush1.msra.mxu0 0.0
    %1947 = vmatprep.subr.mxu0 0.0
    %1948 = vmatpush1.msra.mxu0 0.0
    %1949 = vmatprep.subr.mxu0 0.0
    %1950 = vmatpush1.msra.mxu0 0.0
    %1951 = vmatprep.subr.mxu0 0.0
    %1952 = vmatpush1.msra.mxu0 0.0
    %1953 = vmatprep.subr.mxu0 0.0
    %1954 = vmatpush1.msra.mxu0 0.0
    %1955 = vmatprep.subr.mxu0 0.0
    %1956 = vmatpush1.msra.mxu0 0.0
    %1957 = vmatprep.subr.mxu0 0.0
    %1958 = vmatpush1.msra.mxu0 0.0
    %1959 = vmatprep.subr.mxu0 0.0
    %1960 = vmatpush1.msra.mxu0 0.0
    %1961 = vmatprep.subr.mxu0 0.0
    %1962 = vmatpush1.msra.mxu0 0.0
    %1963 = vmatprep.mubr.f32.mxu0 0.0
    %1964 = vmatmul.mubr.f32.gmra.mrb[0].mxu0 %v1897
    %v1965 = vpop.f32.mrb[0].mxu0
    %v1966 = vadd.f32 0.0, %v1965
    %v1967 = vpop.f32.mrb[0].mxu0
    %1968 = vdwg.mxu0
    %1969 = vrot.lane.b32.xlu0 %v1713, 120
    %v1970 = vpop.permute.xlu0 %1969
    %1971 = vrot.lane.b32.xlu0 %v1794, 88
    %v1972 = vpop.permute.xlu0 %1971
    %v1973 = vsel %vm138, %v1970, 0
    %v1975 = vsel %vm138, %v1972, 0
    %1977 = vmatprep.subr.mxu0 0.0
    %1978 = vmatpush1.xpose.msra.mxu0 %v1975
    %1979 = vmatprep.subr.mxu0 0.0
    %1980 = vmatpush1.xpose.msra.mxu0 0.0
    %1981 = vmatprep.subr.mxu0 0.0
    %1982 = vmatpush1.xpose.msra.mxu0 0.0
    %1983 = vmatprep.subr.mxu0 0.0
    %1984 = vmatpush1.xpose.msra.mxu0 0.0
    %1985 = vmatprep.subr.mxu0 0.0
    %1986 = vmatpush1.xpose.msra.mxu0 0.0
    %1987 = vmatprep.subr.mxu0 0.0
    %1988 = vmatpush1.xpose.msra.mxu0 0.0
    %1989 = vmatprep.subr.mxu0 0.0
    %1990 = vmatpush1.xpose.msra.mxu0 0.0
    %1991 = vmatprep.subr.mxu0 0.0
    %1992 = vmatpush1.xpose.msra.mxu0 0.0
    %1993 = vmatprep.subr.mxu0 0.0
    %1994 = vmatpush1.xpose.msra.mxu0 0.0
    %1995 = vmatprep.subr.mxu0 0.0
    %1996 = vmatpush1.xpose.msra.mxu0 0.0
    %1997 = vmatprep.subr.mxu0 0.0
    %1998 = vmatpush1.xpose.msra.mxu0 0.0
    %1999 = vmatprep.subr.mxu0 0.0
    %2000 = vmatpush1.xpose.msra.mxu0 0.0
    %2001 = vmatprep.subr.mxu0 0.0
    %2002 = vmatpush1.xpose.msra.mxu0 0.0
    %2003 = vmatprep.subr.mxu0 0.0
    %2004 = vmatpush1.xpose.msra.mxu0 0.0
    %2005 = vmatprep.subr.mxu0 0.0
    %2006 = vmatpush1.xpose.msra.mxu0 0.0
    %2007 = vmatprep.subr.mxu0 0.0
    %2008 = vmatpush1.xpose.msra.mxu0 0.0
    %2009 = vmatprep.subr.mxu0 0.0
    %2010 = vmatpush1.xpose.msra.mxu0 0.0
    %2011 = vmatprep.subr.mxu0 0.0
    %2012 = vmatpush1.xpose.msra.mxu0 0.0
    %2013 = vmatprep.subr.mxu0 0.0
    %2014 = vmatpush1.xpose.msra.mxu0 0.0
    %2015 = vmatprep.subr.mxu0 0.0
    %2016 = vmatpush1.xpose.msra.mxu0 0.0
    %2017 = vmatprep.subr.mxu0 0.0
    %2018 = vmatpush1.xpose.msra.mxu0 0.0
    %2019 = vmatprep.subr.mxu0 0.0
    %2020 = vmatpush1.xpose.msra.mxu0 0.0
    %2021 = vmatprep.subr.mxu0 0.0
    %2022 = vmatpush1.xpose.msra.mxu0 0.0
    %2023 = vmatprep.subr.mxu0 0.0
    %2024 = vmatpush1.xpose.msra.mxu0 0.0
    %2025 = vmatprep.subr.mxu0 0.0
    %2026 = vmatpush1.xpose.msra.mxu0 0.0
    %2027 = vmatprep.subr.mxu0 0.0
    %2028 = vmatpush1.xpose.msra.mxu0 0.0
    %2029 = vmatprep.subr.mxu0 0.0
    %2030 = vmatpush1.xpose.msra.mxu0 0.0
    %2031 = vmatprep.subr.mxu0 0.0
    %2032 = vmatpush1.xpose.msra.mxu0 0.0
    %2033 = vmatprep.subr.mxu0 0.0
    %2034 = vmatpush1.xpose.msra.mxu0 0.0
    %2035 = vmatprep.subr.mxu0 0.0
    %2036 = vmatpush1.xpose.msra.mxu0 0.0
    %2037 = vmatprep.subr.mxu0 0.0
    %2038 = vmatpush1.xpose.msra.mxu0 0.0
    %2039 = vmatprep.subr.mxu0 0.0
    %2040 = vmatpush1.xpose.msra.mxu0 0.0
    %2041 = vmatprep.mubr.f32.mxu0 0.0
    %2042 = vmatmul.mubr.f32.gmra.mrb[0].mxu0 %v1973
    %v2043 = vpop.f32.mrb[0].mxu0
    %v2044 = vadd.f32 0.0, %v2043
    %v2045 = vpop.f32.mrb[0].mxu0
    %2046 = vdwg.mxu0
    %v2047 = vsel %vm138, %v2044, -inf
    %2048 = vmax.xlane.f32.xlu0 %v2047
    %v2049 = vpop.xlane.xlu0 %2048
    %v2050 = vsub.f32 %v2044, %v2049
    %v2051 = vmul.f32 %v2050, 1.442695
    %v2052 = vpow.pop %v2051
    %v2053 = vsel %vm138, %v2052, 0.0
    %2054 = vadd.xlane.f32.xlu0 %v2053
    %v2055 = vpop.xlane.xlu0 %2054
    %v2056 = vrcp.pop %v2055
    %v2057 = vmul.f32 %v2052, %v2056
    %v2058 = vmul.f32 %v2057, 0.25
    %v2059 = vadd.f32 %v1892, %v2058
    %2060 = vrot.lane.b32.xlu0 %v1794, 56
    %v2061 = vpop.permute.xlu0 %2060
    %v2064 = vsel %vm138, %v2057, 0
    %2066 = vmatprep.subr.mxu0 0.0
    %2067 = vmatpush1.msra.mxu0 %v2061
    %2068 = vmatprep.subr.mxu0 0.0
    %2069 = vmatpush1.msra.mxu0 0.0
    %2070 = vmatprep.subr.mxu0 0.0
    %2071 = vmatpush1.msra.mxu0 0.0
    %2072 = vmatprep.subr.mxu0 0.0
    %2073 = vmatpush1.msra.mxu0 0.0
    %2074 = vmatprep.subr.mxu0 0.0
    %2075 = vmatpush1.msra.mxu0 0.0
    %2076 = vmatprep.subr.mxu0 0.0
    %2077 = vmatpush1.msra.mxu0 0.0
    %2078 = vmatprep.subr.mxu0 0.0
    %2079 = vmatpush1.msra.mxu0 0.0
    %2080 = vmatprep.subr.mxu0 0.0
    %2081 = vmatpush1.msra.mxu0 0.0
    %2082 = vmatprep.subr.mxu0 0.0
    %2083 = vmatpush1.msra.mxu0 0.0
    %2084 = vmatprep.subr.mxu0 0.0
    %2085 = vmatpush1.msra.mxu0 0.0
    %2086 = vmatprep.subr.mxu0 0.0
    %2087 = vmatpush1.msra.mxu0 0.0
    %2088 = vmatprep.subr.mxu0 0.0
    %2089 = vmatpush1.msra.mxu0 0.0
    %2090 = vmatprep.subr.mxu0 0.0
    %2091 = vmatpush1.msra.mxu0 0.0
    %2092 = vmatprep.subr.mxu0 0.0
    %2093 = vmatpush1.msra.mxu0 0.0
    %2094 = vmatprep.subr.mxu0 0.0
    %2095 = vmatpush1.msra.mxu0 0.0
    %2096 = vmatprep.subr.mxu0 0.0
    %2097 = vmatpush1.msra.mxu0 0.0
    %2098 = vmatprep.subr.mxu0 0.0
    %2099 = vmatpush1.msra.mxu0 0.0
    %2100 = vmatprep.subr.mxu0 0.0
    %2101 = vmatpush1.msra.mxu0 0.0
    %2102 = vmatprep.subr.mxu0 0.0
    %2103 = vmatpush1.msra.mxu0 0.0
    %2104 = vmatprep.subr.mxu0 0.0
    %2105 = vmatpush1.msra.mxu0 0.0
    %2106 = vmatprep.subr.mxu0 0.0
    %2107 = vmatpush1.msra.mxu0 0.0
    %2108 = vmatprep.subr.mxu0 0.0
    %2109 = vmatpush1.msra.mxu0 0.0
    %2110 = vmatprep.subr.mxu0 0.0
    %2111 = vmatpush1.msra.mxu0 0.0
    %2112 = vmatprep.subr.mxu0 0.0
    %2113 = vmatpush1.msra.mxu0 0.0
    %2114 = vmatprep.subr.mxu0 0.0
    %2115 = vmatpush1.msra.mxu0 0.0
    %2116 = vmatprep.subr.mxu0 0.0
    %2117 = vmatpush1.msra.mxu0 0.0
    %2118 = vmatprep.subr.mxu0 0.0
    %2119 = vmatpush1.msra.mxu0 0.0
    %2120 = vmatprep.subr.mxu0 0.0
    %2121 = vmatpush1.msra.mxu0 0.0
    %2122 = vmatprep.subr.mxu0 0.0
    %2123 = vmatpush1.msra.mxu0 0.0
    %2124 = vmatprep.subr.mxu0 0.0
    %2125 = vmatpush1.msra.mxu0 0.0
    %2126 = vmatprep.subr.mxu0 0.0
    %2127 = vmatpush1.msra.mxu0 0.0
    %2128 = vmatprep.subr.mxu0 0.0
    %2129 = vmatpush1.msra.mxu0 0.0
    %2130 = vmatprep.mubr.f32.mxu0 0.0
    %2131 = vmatmul.mubr.f32.gmra.mrb[0].mxu0 %v2064
    %v2132 = vpop.f32.mrb[0].mxu0
    %v2133 = vadd.f32 0.0, %v2132
    %v2134 = vpop.f32.mrb[0].mxu0
    %2135 = vdwg.mxu0
    %2136 = vrot.lane.b32.xlu0 %v1713, 112
    %v2137 = vpop.permute.xlu0 %2136
    %2138 = vrot.lane.b32.xlu0 %v1794, 80
    %v2139 = vpop.permute.xlu0 %2138
    %v2140 = vsel %vm138, %v2137, 0
    %v2142 = vsel %vm138, %v2139, 0
    %2144 = vmatprep.subr.mxu0 0.0
    %2145 = vmatpush1.xpose.msra.mxu0 %v2142
    %2146 = vmatprep.subr.mxu0 0.0
    %2147 = vmatpush1.xpose.msra.mxu0 0.0
    %2148 = vmatprep.subr.mxu0 0.0
    %2149 = vmatpush1.xpose.msra.mxu0 0.0
    %2150 = vmatprep.subr.mxu0 0.0
    %2151 = vmatpush1.xpose.msra.mxu0 0.0
    %2152 = vmatprep.subr.mxu0 0.0
    %2153 = vmatpush1.xpose.msra.mxu0 0.0
    %2154 = vmatprep.subr.mxu0 0.0
    %2155 = vmatpush1.xpose.msra.mxu0 0.0
    %2156 = vmatprep.subr.mxu0 0.0
    %2157 = vmatpush1.xpose.msra.mxu0 0.0
    %2158 = vmatprep.subr.mxu0 0.0
    %2159 = vmatpush1.xpose.msra.mxu0 0.0
    %2160 = vmatprep.subr.mxu0 0.0
    %2161 = vmatpush1.xpose.msra.mxu0 0.0
    %2162 = vmatprep.subr.mxu0 0.0
    %2163 = vmatpush1.xpose.msra.mxu0 0.0
    %2164 = vmatprep.subr.mxu0 0.0
    %2165 = vmatpush1.xpose.msra.mxu0 0.0
    %2166 = vmatprep.subr.mxu0 0.0
    %2167 = vmatpush1.xpose.msra.mxu0 0.0
    %2168 = vmatprep.subr.mxu0 0.0
    %2169 = vmatpush1.xpose.msra.mxu0 0.0
    %2170 = vmatprep.subr.mxu0 0.0
    %2171 = vmatpush1.xpose.msra.mxu0 0.0
    %2172 = vmatprep.subr.mxu0 0.0
    %2173 = vmatpush1.xpose.msra.mxu0 0.0
    %2174 = vmatprep.subr.mxu0 0.0
    %2175 = vmatpush1.xpose.msra.mxu0 0.0
    %2176 = vmatprep.subr.mxu0 0.0
    %2177 = vmatpush1.xpose.msra.mxu0 0.0
    %2178 = vmatprep.subr.mxu0 0.0
    %2179 = vmatpush1.xpose.msra.mxu0 0.0
    %2180 = vmatprep.subr.mxu0 0.0
    %2181 = vmatpush1.xpose.msra.mxu0 0.0
    %2182 = vmatprep.subr.mxu0 0.0
    %2183 = vmatpush1.xpose.msra.mxu0 0.0
    %2184 = vmatprep.subr.mxu0 0.0
    %2185 = vmatpush1.xpose.msra.mxu0 0.0
    %2186 = vmatprep.subr.mxu0 0.0
    %2187 = vmatpush1.xpose.msra.mxu0 0.0
    %2188 = vmatprep.subr.mxu0 0.0
    %2189 = vmatpush1.xpose.msra.mxu0 0.0
    %2190 = vmatprep.subr.mxu0 0.0
    %2191 = vmatpush1.xpose.msra.mxu0 0.0
    %2192 = vmatprep.subr.mxu0 0.0
    %2193 = vmatpush1.xpose.msra.mxu0 0.0
    %2194 = vmatprep.subr.mxu0 0.0
    %2195 = vmatpush1.xpose.msra.mxu0 0.0
    %2196 = vmatprep.subr.mxu0 0.0
    %2197 = vmatpush1.xpose.msra.mxu0 0.0
    %2198 = vmatprep.subr.mxu0 0.0
    %2199 = vmatpush1.xpose.msra.mxu0 0.0
    %2200 = vmatprep.subr.mxu0 0.0
    %2201 = vmatpush1.xpose.msra.mxu0 0.0
    %2202 = vmatprep.subr.mxu0 0.0
    %2203 = vmatpush1.xpose.msra.mxu0 0.0
    %2204 = vmatprep.subr.mxu0 0.0
    %2205 = vmatpush1.xpose.msra.mxu0 0.0
    %2206 = vmatprep.subr.mxu0 0.0
    %2207 = vmatpush1.xpose.msra.mxu0 0.0
    %2208 = vmatprep.mubr.f32.mxu0 0.0
    %2209 = vmatmul.mubr.f32.gmra.mrb[0].mxu0 %v2140
    %v2210 = vpop.f32.mrb[0].mxu0
    %v2211 = vadd.f32 0.0, %v2210
    %v2212 = vpop.f32.mrb[0].mxu0
    %2213 = vdwg.mxu0
    %v2214 = vsel %vm138, %v2211, -inf
    %2215 = vmax.xlane.f32.xlu0 %v2214
    %v2216 = vpop.xlane.xlu0 %2215
    %v2217 = vsub.f32 %v2211, %v2216
    %v2218 = vmul.f32 %v2217, 1.442695
    %v2219 = vpow.pop %v2218
    %v2220 = vsel %vm138, %v2219, 0.0
    %2221 = vadd.xlane.f32.xlu0 %v2220
    %v2222 = vpop.xlane.xlu0 %2221
    %v2223 = vrcp.pop %v2222
    %v2224 = vmul.f32 %v2219, %v2223
    %v2225 = vmul.f32 %v2224, 0.25
    %v2226 = vadd.f32 %v2059, %v2225
    %2227 = vrot.lane.b32.xlu0 %v1794, 48
    %v2228 = vpop.permute.xlu0 %2227
    %v2231 = vsel %vm138, %v2224, 0
    %2233 = vmatprep.subr.mxu0 0.0
    %2234 = vmatpush1.msra.mxu0 %v2228
    %2235 = vmatprep.subr.mxu0 0.0
    %2236 = vmatpush1.msra.mxu0 0.0
    %2237 = vmatprep.subr.mxu0 0.0
    %2238 = vmatpush1.msra.mxu0 0.0
    %2239 = vmatprep.subr.mxu0 0.0
    %2240 = vmatpush1.msra.mxu0 0.0
    %2241 = vmatprep.subr.mxu0 0.0
    %2242 = vmatpush1.msra.mxu0 0.0
    %2243 = vmatprep.subr.mxu0 0.0
    %2244 = vmatpush1.msra.mxu0 0.0
    %2245 = vmatprep.subr.mxu0 0.0
    %2246 = vmatpush1.msra.mxu0 0.0
    %2247 = vmatprep.subr.mxu0 0.0
    %2248 = vmatpush1.msra.mxu0 0.0
    %2249 = vmatprep.subr.mxu0 0.0
    %2250 = vmatpush1.msra.mxu0 0.0
    %2251 = vmatprep.subr.mxu0 0.0
    %2252 = vmatpush1.msra.mxu0 0.0
    %2253 = vmatprep.subr.mxu0 0.0
    %2254 = vmatpush1.msra.mxu0 0.0
    %2255 = vmatprep.subr.mxu0 0.0
    %2256 = vmatpush1.msra.mxu0 0.0
    %2257 = vmatprep.subr.mxu0 0.0
    %2258 = vmatpush1.msra.mxu0 0.0
    %2259 = vmatprep.subr.mxu0 0.0
    %2260 = vmatpush1.msra.mxu0 0.0
    %2261 = vmatprep.subr.mxu0 0.0
    %2262 = vmatpush1.msra.mxu0 0.0
    %2263 = vmatprep.subr.mxu0 0.0
    %2264 = vmatpush1.msra.mxu0 0.0
    %2265 = vmatprep.subr.mxu0 0.0
    %2266 = vmatpush1.msra.mxu0 0.0
    %2267 = vmatprep.subr.mxu0 0.0
    %2268 = vmatpush1.msra.mxu0 0.0
    %2269 = vmatprep.subr.mxu0 0.0
    %2270 = vmatpush1.msra.mxu0 0.0
    %2271 = vmatprep.subr.mxu0 0.0
    %2272 = vmatpush1.msra.mxu0 0.0
    %2273 = vmatprep.subr.mxu0 0.0
    %2274 = vmatpush1.msra.mxu0 0.0
    %2275 = vmatprep.subr.mxu0 0.0
    %2276 = vmatpush1.msra.mxu0 0.0
    %2277 = vmatprep.subr.mxu0 0.0
    %2278 = vmatpush1.msra.mxu0 0.0
    %2279 = vmatprep.subr.mxu0 0.0
    %2280 = vmatpush1.msra.mxu0 0.0
    %2281 = vmatprep.subr.mxu0 0.0
    %2282 = vmatpush1.msra.mxu0 0.0
    %2283 = vmatprep.subr.mxu0 0.0
    %2284 = vmatpush1.msra.mxu0 0.0
    %2285 = vmatprep.subr.mxu0 0.0
    %2286 = vmatpush1.msra.mxu0 0.0
    %2287 = vmatprep.subr.mxu0 0.0
    %2288 = vmatpush1.msra.mxu0 0.0
    %2289 = vmatprep.subr.mxu0 0.0
    %2290 = vmatpush1.msra.mxu0 0.0
    %2291 = vmatprep.subr.mxu0 0.0
    %2292 = vmatpush1.msra.mxu0 0.0
    %2293 = vmatprep.subr.mxu0 0.0
    %2294 = vmatpush1.msra.mxu0 0.0
    %2295 = vmatprep.subr.mxu0 0.0
    %2296 = vmatpush1.msra.mxu0 0.0
    %2297 = vmatprep.mubr.f32.mxu0 0.0
    %2298 = vmatmul.mubr.f32.gmra.mrb[0].mxu0 %v2231
    %v2299 = vpop.f32.mrb[0].mxu0
    %v2300 = vadd.f32 0.0, %v2299
    %v2301 = vpop.f32.mrb[0].mxu0
    %2302 = vdwg.mxu0
    %2303 = vrot.lane.b32.xlu0 %v1713, 104
    %v2304 = vpop.permute.xlu0 %2303
    %2305 = vrot.lane.b32.xlu0 %v1794, 72
    %v2306 = vpop.permute.xlu0 %2305
    %v2307 = vsel %vm138, %v2304, 0
    %v2309 = vsel %vm138, %v2306, 0
    %2311 = vmatprep.subr.mxu0 0.0
    %2312 = vmatpush1.xpose.msra.mxu0 %v2309
    %2313 = vmatprep.subr.mxu0 0.0
    %2314 = vmatpush1.xpose.msra.mxu0 0.0
    %2315 = vmatprep.subr.mxu0 0.0
    %2316 = vmatpush1.xpose.msra.mxu0 0.0
    %2317 = vmatprep.subr.mxu0 0.0
    %2318 = vmatpush1.xpose.msra.mxu0 0.0
    %2319 = vmatprep.subr.mxu0 0.0
    %2320 = vmatpush1.xpose.msra.mxu0 0.0
    %2321 = vmatprep.subr.mxu0 0.0
    %2322 = vmatpush1.xpose.msra.mxu0 0.0
    %2323 = vmatprep.subr.mxu0 0.0
    %2324 = vmatpush1.xpose.msra.mxu0 0.0
    %2325 = vmatprep.subr.mxu0 0.0
    %2326 = vmatpush1.xpose.msra.mxu0 0.0
    %2327 = vmatprep.subr.mxu0 0.0
    %2328 = vmatpush1.xpose.msra.mxu0 0.0
    %2329 = vmatprep.subr.mxu0 0.0
    %2330 = vmatpush1.xpose.msra.mxu0 0.0
    %2331 = vmatprep.subr.mxu0 0.0
    %2332 = vmatpush1.xpose.msra.mxu0 0.0
    %2333 = vmatprep.subr.mxu0 0.0
    %2334 = vmatpush1.xpose.msra.mxu0 0.0
    %2335 = vmatprep.subr.mxu0 0.0
    %2336 = vmatpush1.xpose.msra.mxu0 0.0
    %2337 = vmatprep.subr.mxu0 0.0
    %2338 = vmatpush1.xpose.msra.mxu0 0.0
    %2339 = vmatprep.subr.mxu0 0.0
    %2340 = vmatpush1.xpose.msra.mxu0 0.0
    %2341 = vmatprep.subr.mxu0 0.0
    %2342 = vmatpush1.xpose.msra.mxu0 0.0
    %2343 = vmatprep.subr.mxu0 0.0
    %2344 = vmatpush1.xpose.msra.mxu0 0.0
    %2345 = vmatprep.subr.mxu0 0.0
    %2346 = vmatpush1.xpose.msra.mxu0 0.0
    %2347 = vmatprep.subr.mxu0 0.0
    %2348 = vmatpush1.xpose.msra.mxu0 0.0
    %2349 = vmatprep.subr.mxu0 0.0
    %2350 = vmatpush1.xpose.msra.mxu0 0.0
    %2351 = vmatprep.subr.mxu0 0.0
    %2352 = vmatpush1.xpose.msra.mxu0 0.0
    %2353 = vmatprep.subr.mxu0 0.0
    %2354 = vmatpush1.xpose.msra.mxu0 0.0
    %2355 = vmatprep.subr.mxu0 0.0
    %2356 = vmatpush1.xpose.msra.mxu0 0.0
    %2357 = vmatprep.subr.mxu0 0.0
    %2358 = vmatpush1.xpose.msra.mxu0 0.0
    %2359 = vmatprep.subr.mxu0 0.0
    %2360 = vmatpush1.xpose.msra.mxu0 0.0
    %2361 = vmatprep.subr.mxu0 0.0
    %2362 = vmatpush1.xpose.msra.mxu0 0.0
    %2363 = vmatprep.subr.mxu0 0.0
    %2364 = vmatpush1.xpose.msra.mxu0 0.0
    %2365 = vmatprep.subr.mxu0 0.0
    %2366 = vmatpush1.xpose.msra.mxu0 0.0
    %2367 = vmatprep.subr.mxu0 0.0
    %2368 = vmatpush1.xpose.msra.mxu0 0.0
    %2369 = vmatprep.subr.mxu0 0.0
    %2370 = vmatpush1.xpose.msra.mxu0 0.0
    %2371 = vmatprep.subr.mxu0 0.0
    %2372 = vmatpush1.xpose.msra.mxu0 0.0
    %2373 = vmatprep.subr.mxu0 0.0
    %2374 = vmatpush1.xpose.msra.mxu0 0.0
    %2375 = vmatprep.mubr.f32.mxu0 0.0
    %2376 = vmatmul.mubr.f32.gmra.mrb[0].mxu0 %v2307
    %v2377 = vpop.f32.mrb[0].mxu0
    %v2378 = vadd.f32 0.0, %v2377
    %v2379 = vpop.f32.mrb[0].mxu0
    %2380 = vdwg.mxu0
    %v2381 = vsel %vm138, %v2378, -inf
    %2382 = vmax.xlane.f32.xlu0 %v2381
    %v2383 = vpop.xlane.xlu0 %2382
    %v2384 = vsub.f32 %v2378, %v2383
    %v2385 = vmul.f32 %v2384, 1.442695
    %v2386 = vpow.pop %v2385
    %v2387 = vsel %vm138, %v2386, 0.0
    %2388 = vadd.xlane.f32.xlu0 %v2387
    %v2389 = vpop.xlane.xlu0 %2388
    %v2390 = vrcp.pop %v2389
    %v2391 = vmul.f32 %v2386, %v2390
    %v2392 = vmul.f32 %v2391, 0.25
    %v2393 = vadd.f32 %v2226, %v2392
    %2394 = vrot.lane.b32.xlu0 %v1794, 40
    %v2395 = vpop.permute.xlu0 %2394
    %v2398 = vsel %vm138, %v2391, 0
    %2400 = vmatprep.subr.mxu0 0.0
    %2401 = vmatpush1.msra.mxu0 %v2395
    %2402 = vmatprep.subr.mxu0 0.0
    %2403 = vmatpush1.msra.mxu0 0.0
    %2404 = vmatprep.subr.mxu0 0.0
    %2405 = vmatpush1.msra.mxu0 0.0
    %2406 = vmatprep.subr.mxu0 0.0
    %2407 = vmatpush1.msra.mxu0 0.0
    %2408 = vmatprep.subr.mxu0 0.0
    %2409 = vmatpush1.msra.mxu0 0.0
    %2410 = vmatprep.subr.mxu0 0.0
    %2411 = vmatpush1.msra.mxu0 0.0
    %2412 = vmatprep.subr.mxu0 0.0
    %2413 = vmatpush1.msra.mxu0 0.0
    %2414 = vmatprep.subr.mxu0 0.0
    %2415 = vmatpush1.msra.mxu0 0.0
    %2416 = vmatprep.subr.mxu0 0.0
    %2417 = vmatpush1.msra.mxu0 0.0
    %2418 = vmatprep.subr.mxu0 0.0
    %2419 = vmatpush1.msra.mxu0 0.0
    %2420 = vmatprep.subr.mxu0 0.0
    %2421 = vmatpush1.msra.mxu0 0.0
    %2422 = vmatprep.subr.mxu0 0.0
    %2423 = vmatpush1.msra.mxu0 0.0
    %2424 = vmatprep.subr.mxu0 0.0
    %2425 = vmatpush1.msra.mxu0 0.0
    %2426 = vmatprep.subr.mxu0 0.0
    %2427 = vmatpush1.msra.mxu0 0.0
    %2428 = vmatprep.subr.mxu0 0.0
    %2429 = vmatpush1.msra.mxu0 0.0
    %2430 = vmatprep.subr.mxu0 0.0
    %2431 = vmatpush1.msra.mxu0 0.0
    %2432 = vmatprep.subr.mxu0 0.0
    %2433 = vmatpush1.msra.mxu0 0.0
    %2434 = vmatprep.subr.mxu0 0.0
    %2435 = vmatpush1.msra.mxu0 0.0
    %2436 = vmatprep.subr.mxu0 0.0
    %2437 = vmatpush1.msra.mxu0 0.0
    %2438 = vmatprep.subr.mxu0 0.0
    %2439 = vmatpush1.msra.mxu0 0.0
    %2440 = vmatprep.subr.mxu0 0.0
    %2441 = vmatpush1.msra.mxu0 0.0
    %2442 = vmatprep.subr.mxu0 0.0
    %2443 = vmatpush1.msra.mxu0 0.0
    %2444 = vmatprep.subr.mxu0 0.0
    %2445 = vmatpush1.msra.mxu0 0.0
    %2446 = vmatprep.subr.mxu0 0.0
    %2447 = vmatpush1.msra.mxu0 0.0
    %2448 = vmatprep.subr.mxu0 0.0
    %2449 = vmatpush1.msra.mxu0 0.0
    %2450 = vmatprep.subr.mxu0 0.0
    %2451 = vmatpush1.msra.mxu0 0.0
    %2452 = vmatprep.subr.mxu0 0.0
    %2453 = vmatpush1.msra.mxu0 0.0
    %2454 = vmatprep.subr.mxu0 0.0
    %2455 = vmatpush1.msra.mxu0 0.0
    %2456 = vmatprep.subr.mxu0 0.0
    %2457 = vmatpush1.msra.mxu0 0.0
    %2458 = vmatprep.subr.mxu0 0.0
    %2459 = vmatpush1.msra.mxu0 0.0
    %2460 = vmatprep.subr.mxu0 0.0
    %2461 = vmatpush1.msra.mxu0 0.0
    %2462 = vmatprep.subr.mxu0 0.0
    %2463 = vmatpush1.msra.mxu0 0.0
    %2464 = vmatprep.mubr.f32.mxu0 0.0
    %2465 = vmatmul.mubr.f32.gmra.mrb[0].mxu0 %v2398
    %v2466 = vpop.f32.mrb[0].mxu0
    %v2467 = vadd.f32 0.0, %v2466
    %v2468 = vpop.f32.mrb[0].mxu0
    %2469 = vdwg.mxu0
    %2471 = vrot.lane.b32.xlu0 %v2133, 8
    %v2472 = vpop.permute.xlu0 %2471
    %2475 = vrot.lane.b32.xlu0 %v2300, 16
    %v2476 = vpop.permute.xlu0 %2475
    %2479 = vrot.lane.b32.xlu0 %v2467, 24
    %v2480 = vpop.permute.xlu0 %2479
    %v2482 = vsel %vm138, %v1966, %v2472
    %v2483 = vsel %vm808, %v2482, %v2476
    %v2484 = vsel %vm810, %v2483, %v2480
    %2486 = vrot.lane.b32.xlu0 %v1799, 96
    %v2487 = vpop.permute.xlu0 %2486
    %v2489 = vsel %vm138, %v1718, 0
    %v2491 = vsel %vm138, %v2487, 0
    %2493 = vmatprep.subr.mxu0 0.0
    %2494 = vmatpush1.xpose.msra.mxu0 %v2491
    %2495 = vmatprep.subr.mxu0 0.0
    %2496 = vmatpush1.xpose.msra.mxu0 0.0
    %2497 = vmatprep.subr.mxu0 0.0
    %2498 = vmatpush1.xpose.msra.mxu0 0.0
    %2499 = vmatprep.subr.mxu0 0.0
    %2500 = vmatpush1.xpose.msra.mxu0 0.0
    %2501 = vmatprep.subr.mxu0 0.0
    %2502 = vmatpush1.xpose.msra.mxu0 0.0
    %2503 = vmatprep.subr.mxu0 0.0
    %2504 = vmatpush1.xpose.msra.mxu0 0.0
    %2505 = vmatprep.subr.mxu0 0.0
    %2506 = vmatpush1.xpose.msra.mxu0 0.0
    %2507 = vmatprep.subr.mxu0 0.0
    %2508 = vmatpush1.xpose.msra.mxu0 0.0
    %2509 = vmatprep.subr.mxu0 0.0
    %2510 = vmatpush1.xpose.msra.mxu0 0.0
    %2511 = vmatprep.subr.mxu0 0.0
    %2512 = vmatpush1.xpose.msra.mxu0 0.0
    %2513 = vmatprep.subr.mxu0 0.0
    %2514 = vmatpush1.xpose.msra.mxu0 0.0
    %2515 = vmatprep.subr.mxu0 0.0
    %2516 = vmatpush1.xpose.msra.mxu0 0.0
    %2517 = vmatprep.subr.mxu0 0.0
    %2518 = vmatpush1.xpose.msra.mxu0 0.0
    %2519 = vmatprep.subr.mxu0 0.0
    %2520 = vmatpush1.xpose.msra.mxu0 0.0
    %2521 = vmatprep.subr.mxu0 0.0
    %2522 = vmatpush1.xpose.msra.mxu0 0.0
    %2523 = vmatprep.subr.mxu0 0.0
    %2524 = vmatpush1.xpose.msra.mxu0 0.0
    %2525 = vmatprep.subr.mxu0 0.0
    %2526 = vmatpush1.xpose.msra.mxu0 0.0
    %2527 = vmatprep.subr.mxu0 0.0
    %2528 = vmatpush1.xpose.msra.mxu0 0.0
    %2529 = vmatprep.subr.mxu0 0.0
    %2530 = vmatpush1.xpose.msra.mxu0 0.0
    %2531 = vmatprep.subr.mxu0 0.0
    %2532 = vmatpush1.xpose.msra.mxu0 0.0
    %2533 = vmatprep.subr.mxu0 0.0
    %2534 = vmatpush1.xpose.msra.mxu0 0.0
    %2535 = vmatprep.subr.mxu0 0.0
    %2536 = vmatpush1.xpose.msra.mxu0 0.0
    %2537 = vmatprep.subr.mxu0 0.0
    %2538 = vmatpush1.xpose.msra.mxu0 0.0
    %2539 = vmatprep.subr.mxu0 0.0
    %2540 = vmatpush1.xpose.msra.mxu0 0.0
    %2541 = vmatprep.subr.mxu0 0.0
    %2542 = vmatpush1.xpose.msra.mxu0 0.0
    %2543 = vmatprep.subr.mxu0 0.0
    %2544 = vmatpush1.xpose.msra.mxu0 0.0
    %2545 = vmatprep.subr.mxu0 0.0
    %2546 = vmatpush1.xpose.msra.mxu0 0.0
    %2547 = vmatprep.subr.mxu0 0.0
    %2548 = vmatpush1.xpose.msra.mxu0 0.0
    %2549 = vmatprep.subr.mxu0 0.0
    %2550 = vmatpush1.xpose.msra.mxu0 0.0
    %2551 = vmatprep.subr.mxu0 0.0
    %2552 = vmatpush1.xpose.msra.mxu0 0.0
    %2553 = vmatprep.subr.mxu0 0.0
    %2554 = vmatpush1.xpose.msra.mxu0 0.0
    %2555 = vmatprep.subr.mxu0 0.0
    %2556 = vmatpush1.xpose.msra.mxu0 0.0
    %2557 = vmatprep.mubr.f32.mxu0 0.0
    %2558 = vmatmul.mubr.f32.gmra.mrb[0].mxu0 %v2489
    %v2559 = vpop.f32.mrb[0].mxu0
    %v2560 = vadd.f32 0.0, %v2559
    %v2561 = vpop.f32.mrb[0].mxu0
    %2562 = vdwg.mxu0
    %v2563 = vsel %vm138, %v2560, -inf
    %2564 = vmax.xlane.f32.xlu0 %v2563
    %v2565 = vpop.xlane.xlu0 %2564
    %v2566 = vsub.f32 %v2560, %v2565
    %v2567 = vmul.f32 %v2566, 1.442695
    %v2568 = vpow.pop %v2567
    %v2569 = vsel %vm138, %v2568, 0.0
    %2570 = vadd.xlane.f32.xlu0 %v2569
    %v2571 = vpop.xlane.xlu0 %2570
    %v2572 = vrcp.pop %v2571
    %v2573 = vmul.f32 %v2568, %v2572
    %v2574 = vmul.f32 %v2573, 0.25
    %v2575 = vadd.f32 %v2574, 0.0
    %2576 = vrot.lane.b32.xlu0 %v1799, 64
    %v2577 = vpop.permute.xlu0 %2576
    %v2580 = vsel %vm138, %v2573, 0
    %2582 = vmatprep.subr.mxu0 0.0
    %2583 = vmatpush1.msra.mxu0 %v2577
    %2584 = vmatprep.subr.mxu0 0.0
    %2585 = vmatpush1.msra.mxu0 0.0
    %2586 = vmatprep.subr.mxu0 0.0
    %2587 = vmatpush1.msra.mxu0 0.0
    %2588 = vmatprep.subr.mxu0 0.0
    %2589 = vmatpush1.msra.mxu0 0.0
    %2590 = vmatprep.subr.mxu0 0.0
    %2591 = vmatpush1.msra.mxu0 0.0
    %2592 = vmatprep.subr.mxu0 0.0
    %2593 = vmatpush1.msra.mxu0 0.0
    %2594 = vmatprep.subr.mxu0 0.0
    %2595 = vmatpush1.msra.mxu0 0.0
    %2596 = vmatprep.subr.mxu0 0.0
    %2597 = vmatpush1.msra.mxu0 0.0
    %2598 = vmatprep.subr.mxu0 0.0
    %2599 = vmatpush1.msra.mxu0 0.0
    %2600 = vmatprep.subr.mxu0 0.0
    %2601 = vmatpush1.msra.mxu0 0.0
    %2602 = vmatprep.subr.mxu0 0.0
    %2603 = vmatpush1.msra.mxu0 0.0
    %2604 = vmatprep.subr.mxu0 0.0
    %2605 = vmatpush1.msra.mxu0 0.0
    %2606 = vmatprep.subr.mxu0 0.0
    %2607 = vmatpush1.msra.mxu0 0.0
    %2608 = vmatprep.subr.mxu0 0.0
    %2609 = vmatpush1.msra.mxu0 0.0
    %2610 = vmatprep.subr.mxu0 0.0
    %2611 = vmatpush1.msra.mxu0 0.0
    %2612 = vmatprep.subr.mxu0 0.0
    %2613 = vmatpush1.msra.mxu0 0.0
    %2614 = vmatprep.subr.mxu0 0.0
    %2615 = vmatpush1.msra.mxu0 0.0
    %2616 = vmatprep.subr.mxu0 0.0
    %2617 = vmatpush1.msra.mxu0 0.0
    %2618 = vmatprep.subr.mxu0 0.0
    %2619 = vmatpush1.msra.mxu0 0.0
    %2620 = vmatprep.subr.mxu0 0.0
    %2621 = vmatpush1.msra.mxu0 0.0
    %2622 = vmatprep.subr.mxu0 0.0
    %2623 = vmatpush1.msra.mxu0 0.0
    %2624 = vmatprep.subr.mxu0 0.0
    %2625 = vmatpush1.msra.mxu0 0.0
    %2626 = vmatprep.subr.mxu0 0.0
    %2627 = vmatpush1.msra.mxu0 0.0
    %2628 = vmatprep.subr.mxu0 0.0
    %2629 = vmatpush1.msra.mxu0 0.0
    %2630 = vmatprep.subr.mxu0 0.0
    %2631 = vmatpush1.msra.mxu0 0.0
    %2632 = vmatprep.subr.mxu0 0.0
    %2633 = vmatpush1.msra.mxu0 0.0
    %2634 = vmatprep.subr.mxu0 0.0
    %2635 = vmatpush1.msra.mxu0 0.0
    %2636 = vmatprep.subr.mxu0 0.0
    %2637 = vmatpush1.msra.mxu0 0.0
    %2638 = vmatprep.subr.mxu0 0.0
    %2639 = vmatpush1.msra.mxu0 0.0
    %2640 = vmatprep.subr.mxu0 0.0
    %2641 = vmatpush1.msra.mxu0 0.0
    %2642 = vmatprep.subr.mxu0 0.0
    %2643 = vmatpush1.msra.mxu0 0.0
    %2644 = vmatprep.subr.mxu0 0.0
    %2645 = vmatpush1.msra.mxu0 0.0
    %2646 = vmatprep.mubr.f32.mxu0 0.0
    %2647 = vmatmul.mubr.f32.gmra.mrb[0].mxu0 %v2580
    %v2648 = vpop.f32.mrb[0].mxu0
    %v2649 = vadd.f32 0.0, %v2648
    %v2650 = vpop.f32.mrb[0].mxu0
    %2651 = vdwg.mxu0
    %2652 = vrot.lane.b32.xlu0 %v1718, 120
    %v2653 = vpop.permute.xlu0 %2652
    %2654 = vrot.lane.b32.xlu0 %v1799, 88
    %v2655 = vpop.permute.xlu0 %2654
    %v2656 = vsel %vm138, %v2653, 0
    %v2658 = vsel %vm138, %v2655, 0
    %2660 = vmatprep.subr.mxu0 0.0
    %2661 = vmatpush1.xpose.msra.mxu0 %v2658
    %2662 = vmatprep.subr.mxu0 0.0
    %2663 = vmatpush1.xpose.msra.mxu0 0.0
    %2664 = vmatprep.subr.mxu0 0.0
    %2665 = vmatpush1.xpose.msra.mxu0 0.0
    %2666 = vmatprep.subr.mxu0 0.0
    %2667 = vmatpush1.xpose.msra.mxu0 0.0
    %2668 = vmatprep.subr.mxu0 0.0
    %2669 = vmatpush1.xpose.msra.mxu0 0.0
    %2670 = vmatprep.subr.mxu0 0.0
    %2671 = vmatpush1.xpose.msra.mxu0 0.0
    %2672 = vmatprep.subr.mxu0 0.0
    %2673 = vmatpush1.xpose.msra.mxu0 0.0
    %2674 = vmatprep.subr.mxu0 0.0
    %2675 = vmatpush1.xpose.msra.mxu0 0.0
    %2676 = vmatprep.subr.mxu0 0.0
    %2677 = vmatpush1.xpose.msra.mxu0 0.0
    %2678 = vmatprep.subr.mxu0 0.0
    %2679 = vmatpush1.xpose.msra.mxu0 0.0
    %2680 = vmatprep.subr.mxu0 0.0
    %2681 = vmatpush1.xpose.msra.mxu0 0.0
    %2682 = vmatprep.subr.mxu0 0.0
    %2683 = vmatpush1.xpose.msra.mxu0 0.0
    %2684 = vmatprep.subr.mxu0 0.0
    %2685 = vmatpush1.xpose.msra.mxu0 0.0
    %2686 = vmatprep.subr.mxu0 0.0
    %2687 = vmatpush1.xpose.msra.mxu0 0.0
    %2688 = vmatprep.subr.mxu0 0.0
    %2689 = vmatpush1.xpose.msra.mxu0 0.0
    %2690 = vmatprep.subr.mxu0 0.0
    %2691 = vmatpush1.xpose.msra.mxu0 0.0
    %2692 = vmatprep.subr.mxu0 0.0
    %2693 = vmatpush1.xpose.msra.mxu0 0.0
    %2694 = vmatprep.subr.mxu0 0.0
    %2695 = vmatpush1.xpose.msra.mxu0 0.0
    %2696 = vmatprep.subr.mxu0 0.0
    %2697 = vmatpush1.xpose.msra.mxu0 0.0
    %2698 = vmatprep.subr.mxu0 0.0
    %2699 = vmatpush1.xpose.msra.mxu0 0.0
    %2700 = vmatprep.subr.mxu0 0.0
    %2701 = vmatpush1.xpose.msra.mxu0 0.0
    %2702 = vmatprep.subr.mxu0 0.0
    %2703 = vmatpush1.xpose.msra.mxu0 0.0
    %2704 = vmatprep.subr.mxu0 0.0
    %2705 = vmatpush1.xpose.msra.mxu0 0.0
    %2706 = vmatprep.subr.mxu0 0.0
    %2707 = vmatpush1.xpose.msra.mxu0 0.0
    %2708 = vmatprep.subr.mxu0 0.0
    %2709 = vmatpush1.xpose.msra.mxu0 0.0
    %2710 = vmatprep.subr.mxu0 0.0
    %2711 = vmatpush1.xpose.msra.mxu0 0.0
    %2712 = vmatprep.subr.mxu0 0.0
    %2713 = vmatpush1.xpose.msra.mxu0 0.0
    %2714 = vmatprep.subr.mxu0 0.0
    %2715 = vmatpush1.xpose.msra.mxu0 0.0
    %2716 = vmatprep.subr.mxu0 0.0
    %2717 = vmatpush1.xpose.msra.mxu0 0.0
    %2718 = vmatprep.subr.mxu0 0.0
    %2719 = vmatpush1.xpose.msra.mxu0 0.0
    %2720 = vmatprep.subr.mxu0 0.0
    %2721 = vmatpush1.xpose.msra.mxu0 0.0
    %2722 = vmatprep.subr.mxu0 0.0
    %2723 = vmatpush1.xpose.msra.mxu0 0.0
    %2724 = vmatprep.mubr.f32.mxu0 0.0
    %2725 = vmatmul.mubr.f32.gmra.mrb[0].mxu0 %v2656
    %v2726 = vpop.f32.mrb[0].mxu0
    %v2727 = vadd.f32 0.0, %v2726
    %v2728 = vpop.f32.mrb[0].mxu0
    %2729 = vdwg.mxu0
    %v2730 = vsel %vm138, %v2727, -inf
    %2731 = vmax.xlane.f32.xlu0 %v2730
    %v2732 = vpop.xlane.xlu0 %2731
    %v2733 = vsub.f32 %v2727, %v2732
    %v2734 = vmul.f32 %v2733, 1.442695
    %v2735 = vpow.pop %v2734
    %v2736 = vsel %vm138, %v2735, 0.0
    %2737 = vadd.xlane.f32.xlu0 %v2736
    %v2738 = vpop.xlane.xlu0 %2737
    %v2739 = vrcp.pop %v2738
    %v2740 = vmul.f32 %v2735, %v2739
    %v2741 = vmul.f32 %v2740, 0.25
    %v2742 = vadd.f32 %v2575, %v2741
    %2743 = vrot.lane.b32.xlu0 %v1799, 56
    %v2744 = vpop.permute.xlu0 %2743
    %v2747 = vsel %vm138, %v2740, 0
    %2749 = vmatprep.subr.mxu0 0.0
    %2750 = vmatpush1.msra.mxu0 %v2744
    %2751 = vmatprep.subr.mxu0 0.0
    %2752 = vmatpush1.msra.mxu0 0.0
    %2753 = vmatprep.subr.mxu0 0.0
    %2754 = vmatpush1.msra.mxu0 0.0
    %2755 = vmatprep.subr.mxu0 0.0
    %2756 = vmatpush1.msra.mxu0 0.0
    %2757 = vmatprep.subr.mxu0 0.0
    %2758 = vmatpush1.msra.mxu0 0.0
    %2759 = vmatprep.subr.mxu0 0.0
    %2760 = vmatpush1.msra.mxu0 0.0
    %2761 = vmatprep.subr.mxu0 0.0
    %2762 = vmatpush1.msra.mxu0 0.0
    %2763 = vmatprep.subr.mxu0 0.0
    %2764 = vmatpush1.msra.mxu0 0.0
    %2765 = vmatprep.subr.mxu0 0.0
    %2766 = vmatpush1.msra.mxu0 0.0
    %2767 = vmatprep.subr.mxu0 0.0
    %2768 = vmatpush1.msra.mxu0 0.0
    %2769 = vmatprep.subr.mxu0 0.0
    %2770 = vmatpush1.msra.mxu0 0.0
    %2771 = vmatprep.subr.mxu0 0.0
    %2772 = vmatpush1.msra.mxu0 0.0
    %2773 = vmatprep.subr.mxu0 0.0
    %2774 = vmatpush1.msra.mxu0 0.0
    %2775 = vmatprep.subr.mxu0 0.0
    %2776 = vmatpush1.msra.mxu0 0.0
    %2777 = vmatprep.subr.mxu0 0.0
    %2778 = vmatpush1.msra.mxu0 0.0
    %2779 = vmatprep.subr.mxu0 0.0
    %2780 = vmatpush1.msra.mxu0 0.0
    %2781 = vmatprep.subr.mxu0 0.0
    %2782 = vmatpush1.msra.mxu0 0.0
    %2783 = vmatprep.subr.mxu0 0.0
    %2784 = vmatpush1.msra.mxu0 0.0
    %2785 = vmatprep.subr.mxu0 0.0
    %2786 = vmatpush1.msra.mxu0 0.0
    %2787 = vmatprep.subr.mxu0 0.0
    %2788 = vmatpush1.msra.mxu0 0.0
    %2789 = vmatprep.subr.mxu0 0.0
    %2790 = vmatpush1.msra.mxu0 0.0
    %2791 = vmatprep.subr.mxu0 0.0
    %2792 = vmatpush1.msra.mxu0 0.0
    %2793 = vmatprep.subr.mxu0 0.0
    %2794 = vmatpush1.msra.mxu0 0.0
    %2795 = vmatprep.subr.mxu0 0.0
    %2796 = vmatpush1.msra.mxu0 0.0
    %2797 = vmatprep.subr.mxu0 0.0
    %2798 = vmatpush1.msra.mxu0 0.0
    %2799 = vmatprep.subr.mxu0 0.0
    %2800 = vmatpush1.msra.mxu0 0.0
    %2801 = vmatprep.subr.mxu0 0.0
    %2802 = vmatpush1.msra.mxu0 0.0
    %2803 = vmatprep.subr.mxu0 0.0
    %2804 = vmatpush1.msra.mxu0 0.0
    %2805 = vmatprep.subr.mxu0 0.0
    %2806 = vmatpush1.msra.mxu0 0.0
    %2807 = vmatprep.subr.mxu0 0.0
    %2808 = vmatpush1.msra.mxu0 0.0
    %2809 = vmatprep.subr.mxu0 0.0
    %2810 = vmatpush1.msra.mxu0 0.0
    %2811 = vmatprep.subr.mxu0 0.0
    %2812 = vmatpush1.msra.mxu0 0.0
    %2813 = vmatprep.mubr.f32.mxu0 0.0
    %2814 = vmatmul.mubr.f32.gmra.mrb[0].mxu0 %v2747
    %v2815 = vpop.f32.mrb[0].mxu0
    %v2816 = vadd.f32 0.0, %v2815
    %v2817 = vpop.f32.mrb[0].mxu0
    %2818 = vdwg.mxu0
    %2819 = vrot.lane.b32.xlu0 %v1718, 112
    %v2820 = vpop.permute.xlu0 %2819
    %2821 = vrot.lane.b32.xlu0 %v1799, 80
    %v2822 = vpop.permute.xlu0 %2821
    %v2823 = vsel %vm138, %v2820, 0
    %v2825 = vsel %vm138, %v2822, 0
    %2827 = vmatprep.subr.mxu0 0.0
    %2828 = vmatpush1.xpose.msra.mxu0 %v2825
    %2829 = vmatprep.subr.mxu0 0.0
    %2830 = vmatpush1.xpose.msra.mxu0 0.0
    %2831 = vmatprep.subr.mxu0 0.0
    %2832 = vmatpush1.xpose.msra.mxu0 0.0
    %2833 = vmatprep.subr.mxu0 0.0
    %2834 = vmatpush1.xpose.msra.mxu0 0.0
    %2835 = vmatprep.subr.mxu0 0.0
    %2836 = vmatpush1.xpose.msra.mxu0 0.0
    %2837 = vmatprep.subr.mxu0 0.0
    %2838 = vmatpush1.xpose.msra.mxu0 0.0
    %2839 = vmatprep.subr.mxu0 0.0
    %2840 = vmatpush1.xpose.msra.mxu0 0.0
    %2841 = vmatprep.subr.mxu0 0.0
    %2842 = vmatpush1.xpose.msra.mxu0 0.0
    %2843 = vmatprep.subr.mxu0 0.0
    %2844 = vmatpush1.xpose.msra.mxu0 0.0
    %2845 = vmatprep.subr.mxu0 0.0
    %2846 = vmatpush1.xpose.msra.mxu0 0.0
    %2847 = vmatprep.subr.mxu0 0.0
    %2848 = vmatpush1.xpose.msra.mxu0 0.0
    %2849 = vmatprep.subr.mxu0 0.0
    %2850 = vmatpush1.xpose.msra.mxu0 0.0
    %2851 = vmatprep.subr.mxu0 0.0
    %2852 = vmatpush1.xpose.msra.mxu0 0.0
    %2853 = vmatprep.subr.mxu0 0.0
    %2854 = vmatpush1.xpose.msra.mxu0 0.0
    %2855 = vmatprep.subr.mxu0 0.0
    %2856 = vmatpush1.xpose.msra.mxu0 0.0
    %2857 = vmatprep.subr.mxu0 0.0
    %2858 = vmatpush1.xpose.msra.mxu0 0.0
    %2859 = vmatprep.subr.mxu0 0.0
    %2860 = vmatpush1.xpose.msra.mxu0 0.0
    %2861 = vmatprep.subr.mxu0 0.0
    %2862 = vmatpush1.xpose.msra.mxu0 0.0
    %2863 = vmatprep.subr.mxu0 0.0
    %2864 = vmatpush1.xpose.msra.mxu0 0.0
    %2865 = vmatprep.subr.mxu0 0.0
    %2866 = vmatpush1.xpose.msra.mxu0 0.0
    %2867 = vmatprep.subr.mxu0 0.0
    %2868 = vmatpush1.xpose.msra.mxu0 0.0
    %2869 = vmatprep.subr.mxu0 0.0
    %2870 = vmatpush1.xpose.msra.mxu0 0.0
    %2871 = vmatprep.subr.mxu0 0.0
    %2872 = vmatpush1.xpose.msra.mxu0 0.0
    %2873 = vmatprep.subr.mxu0 0.0
    %2874 = vmatpush1.xpose.msra.mxu0 0.0
    %2875 = vmatprep.subr.mxu0 0.0
    %2876 = vmatpush1.xpose.msra.mxu0 0.0
    %2877 = vmatprep.subr.mxu0 0.0
    %2878 = vmatpush1.xpose.msra.mxu0 0.0
    %2879 = vmatprep.subr.mxu0 0.0
    %2880 = vmatpush1.xpose.msra.mxu0 0.0
    %2881 = vmatprep.subr.mxu0 0.0
    %2882 = vmatpush1.xpose.msra.mxu0 0.0
    %2883 = vmatprep.subr.mxu0 0.0
    %2884 = vmatpush1.xpose.msra.mxu0 0.0
    %2885 = vmatprep.subr.mxu0 0.0
    %2886 = vmatpush1.xpose.msra.mxu0 0.0
    %2887 = vmatprep.subr.mxu0 0.0
    %2888 = vmatpush1.xpose.msra.mxu0 0.0
    %2889 = vmatprep.subr.mxu0 0.0
    %2890 = vmatpush1.xpose.msra.mxu0 0.0
    %2891 = vmatprep.mubr.f32.mxu0 0.0
    %2892 = vmatmul.mubr.f32.gmra.mrb[0].mxu0 %v2823
    %v2893 = vpop.f32.mrb[0].mxu0
    %v2894 = vadd.f32 0.0, %v2893
    %v2895 = vpop.f32.mrb[0].mxu0
    %2896 = vdwg.mxu0
    %v2897 = vsel %vm138, %v2894, -inf
    %2898 = vmax.xlane.f32.xlu0 %v2897
    %v2899 = vpop.xlane.xlu0 %2898
    %v2900 = vsub.f32 %v2894, %v2899
    %v2901 = vmul.f32 %v2900, 1.442695
    %v2902 = vpow.pop %v2901
    %v2903 = vsel %vm138, %v2902, 0.0
    %2904 = vadd.xlane.f32.xlu0 %v2903
    %v2905 = vpop.xlane.xlu0 %2904
    %v2906 = vrcp.pop %v2905
    %v2907 = vmul.f32 %v2902, %v2906
    %v2908 = vmul.f32 %v2907, 0.25
    %v2909 = vadd.f32 %v2742, %v2908
    %2910 = vrot.lane.b32.xlu0 %v1799, 48
    %v2911 = vpop.permute.xlu0 %2910
    %v2914 = vsel %vm138, %v2907, 0
    %2916 = vmatprep.subr.mxu0 0.0
    %2917 = vmatpush1.msra.mxu0 %v2911
    %2918 = vmatprep.subr.mxu0 0.0
    %2919 = vmatpush1.msra.mxu0 0.0
    %2920 = vmatprep.subr.mxu0 0.0
    %2921 = vmatpush1.msra.mxu0 0.0
    %2922 = vmatprep.subr.mxu0 0.0
    %2923 = vmatpush1.msra.mxu0 0.0
    %2924 = vmatprep.subr.mxu0 0.0
    %2925 = vmatpush1.msra.mxu0 0.0
    %2926 = vmatprep.subr.mxu0 0.0
    %2927 = vmatpush1.msra.mxu0 0.0
    %2928 = vmatprep.subr.mxu0 0.0
    %2929 = vmatpush1.msra.mxu0 0.0
    %2930 = vmatprep.subr.mxu0 0.0
    %2931 = vmatpush1.msra.mxu0 0.0
    %2932 = vmatprep.subr.mxu0 0.0
    %2933 = vmatpush1.msra.mxu0 0.0
    %2934 = vmatprep.subr.mxu0 0.0
    %2935 = vmatpush1.msra.mxu0 0.0
    %2936 = vmatprep.subr.mxu0 0.0
    %2937 = vmatpush1.msra.mxu0 0.0
    %2938 = vmatprep.subr.mxu0 0.0
    %2939 = vmatpush1.msra.mxu0 0.0
    %2940 = vmatprep.subr.mxu0 0.0
    %2941 = vmatpush1.msra.mxu0 0.0
    %2942 = vmatprep.subr.mxu0 0.0
    %2943 = vmatpush1.msra.mxu0 0.0
    %2944 = vmatprep.subr.mxu0 0.0
    %2945 = vmatpush1.msra.mxu0 0.0
    %2946 = vmatprep.subr.mxu0 0.0
    %2947 = vmatpush1.msra.mxu0 0.0
    %2948 = vmatprep.subr.mxu0 0.0
    %2949 = vmatpush1.msra.mxu0 0.0
    %2950 = vmatprep.subr.mxu0 0.0
    %2951 = vmatpush1.msra.mxu0 0.0
    %2952 = vmatprep.subr.mxu0 0.0
    %2953 = vmatpush1.msra.mxu0 0.0
    %2954 = vmatprep.subr.mxu0 0.0
    %2955 = vmatpush1.msra.mxu0 0.0
    %2956 = vmatprep.subr.mxu0 0.0
    %2957 = vmatpush1.msra.mxu0 0.0
    %2958 = vmatprep.subr.mxu0 0.0
    %2959 = vmatpush1.msra.mxu0 0.0
    %2960 = vmatprep.subr.mxu0 0.0
    %2961 = vmatpush1.msra.mxu0 0.0
    %2962 = vmatprep.subr.mxu0 0.0
    %2963 = vmatpush1.msra.mxu0 0.0
    %2964 = vmatprep.subr.mxu0 0.0
    %2965 = vmatpush1.msra.mxu0 0.0
    %2966 = vmatprep.subr.mxu0 0.0
    %2967 = vmatpush1.msra.mxu0 0.0
    %2968 = vmatprep.subr.mxu0 0.0
    %2969 = vmatpush1.msra.mxu0 0.0
    %2970 = vmatprep.subr.mxu0 0.0
    %2971 = vmatpush1.msra.mxu0 0.0
    %2972 = vmatprep.subr.mxu0 0.0
    %2973 = vmatpush1.msra.mxu0 0.0
    %2974 = vmatprep.subr.mxu0 0.0
    %2975 = vmatpush1.msra.mxu0 0.0
    %2976 = vmatprep.subr.mxu0 0.0
    %2977 = vmatpush1.msra.mxu0 0.0
    %2978 = vmatprep.subr.mxu0 0.0
    %2979 = vmatpush1.msra.mxu0 0.0
    %2980 = vmatprep.mubr.f32.mxu0 0.0
    %2981 = vmatmul.mubr.f32.gmra.mrb[0].mxu0 %v2914
    %v2982 = vpop.f32.mrb[0].mxu0
    %v2983 = vadd.f32 0.0, %v2982
    %v2984 = vpop.f32.mrb[0].mxu0
    %2985 = vdwg.mxu0
    %2986 = vrot.lane.b32.xlu0 %v1718, 104
    %v2987 = vpop.permute.xlu0 %2986
    %2988 = vrot.lane.b32.xlu0 %v1799, 72
    %v2989 = vpop.permute.xlu0 %2988
    %v2990 = vsel %vm138, %v2987, 0
    %v2992 = vsel %vm138, %v2989, 0
    %2994 = vmatprep.subr.mxu0 0.0
    %2995 = vmatpush1.xpose.msra.mxu0 %v2992
    %2996 = vmatprep.subr.mxu0 0.0
    %2997 = vmatpush1.xpose.msra.mxu0 0.0
    %2998 = vmatprep.subr.mxu0 0.0
    %2999 = vmatpush1.xpose.msra.mxu0 0.0
    %3000 = vmatprep.subr.mxu0 0.0
    %3001 = vmatpush1.xpose.msra.mxu0 0.0
    %3002 = vmatprep.subr.mxu0 0.0
    %3003 = vmatpush1.xpose.msra.mxu0 0.0
    %3004 = vmatprep.subr.mxu0 0.0
    %3005 = vmatpush1.xpose.msra.mxu0 0.0
    %3006 = vmatprep.subr.mxu0 0.0
    %3007 = vmatpush1.xpose.msra.mxu0 0.0
    %3008 = vmatprep.subr.mxu0 0.0
    %3009 = vmatpush1.xpose.msra.mxu0 0.0
    %3010 = vmatprep.subr.mxu0 0.0
    %3011 = vmatpush1.xpose.msra.mxu0 0.0
    %3012 = vmatprep.subr.mxu0 0.0
    %3013 = vmatpush1.xpose.msra.mxu0 0.0
    %3014 = vmatprep.subr.mxu0 0.0
    %3015 = vmatpush1.xpose.msra.mxu0 0.0
    %3016 = vmatprep.subr.mxu0 0.0
    %3017 = vmatpush1.xpose.msra.mxu0 0.0
    %3018 = vmatprep.subr.mxu0 0.0
    %3019 = vmatpush1.xpose.msra.mxu0 0.0
    %3020 = vmatprep.subr.mxu0 0.0
    %3021 = vmatpush1.xpose.msra.mxu0 0.0
    %3022 = vmatprep.subr.mxu0 0.0
    %3023 = vmatpush1.xpose.msra.mxu0 0.0
    %3024 = vmatprep.subr.mxu0 0.0
    %3025 = vmatpush1.xpose.msra.mxu0 0.0
    %3026 = vmatprep.subr.mxu0 0.0
    %3027 = vmatpush1.xpose.msra.mxu0 0.0
    %3028 = vmatprep.subr.mxu0 0.0
    %3029 = vmatpush1.xpose.msra.mxu0 0.0
    %3030 = vmatprep.subr.mxu0 0.0
    %3031 = vmatpush1.xpose.msra.mxu0 0.0
    %3032 = vmatprep.subr.mxu0 0.0
    %3033 = vmatpush1.xpose.msra.mxu0 0.0
    %3034 = vmatprep.subr.mxu0 0.0
    %3035 = vmatpush1.xpose.msra.mxu0 0.0
    %3036 = vmatprep.subr.mxu0 0.0
    %3037 = vmatpush1.xpose.msra.mxu0 0.0
    %3038 = vmatprep.subr.mxu0 0.0
    %3039 = vmatpush1.xpose.msra.mxu0 0.0
    %3040 = vmatprep.subr.mxu0 0.0
    %3041 = vmatpush1.xpose.msra.mxu0 0.0
    %3042 = vmatprep.subr.mxu0 0.0
    %3043 = vmatpush1.xpose.msra.mxu0 0.0
    %3044 = vmatprep.subr.mxu0 0.0
    %3045 = vmatpush1.xpose.msra.mxu0 0.0
    %3046 = vmatprep.subr.mxu0 0.0
    %3047 = vmatpush1.xpose.msra.mxu0 0.0
    %3048 = vmatprep.subr.mxu0 0.0
    %3049 = vmatpush1.xpose.msra.mxu0 0.0
    %3050 = vmatprep.subr.mxu0 0.0
    %3051 = vmatpush1.xpose.msra.mxu0 0.0
    %3052 = vmatprep.subr.mxu0 0.0
    %3053 = vmatpush1.xpose.msra.mxu0 0.0
    %3054 = vmatprep.subr.mxu0 0.0
    %3055 = vmatpush1.xpose.msra.mxu0 0.0
    %3056 = vmatprep.subr.mxu0 0.0
    %3057 = vmatpush1.xpose.msra.mxu0 0.0
    %3058 = vmatprep.mubr.f32.mxu0 0.0
    %3059 = vmatmul.mubr.f32.gmra.mrb[0].mxu0 %v2990
    %v3060 = vpop.f32.mrb[0].mxu0
    %v3061 = vadd.f32 0.0, %v3060
    %v3062 = vpop.f32.mrb[0].mxu0
    %3063 = vdwg.mxu0
    %v3064 = vsel %vm138, %v3061, -inf
    %3065 = vmax.xlane.f32.xlu0 %v3064
    %v3066 = vpop.xlane.xlu0 %3065
    %v3067 = vsub.f32 %v3061, %v3066
    %v3068 = vmul.f32 %v3067, 1.442695
    %v3069 = vpow.pop %v3068
    %v3070 = vsel %vm138, %v3069, 0.0
    %3071 = vadd.xlane.f32.xlu0 %v3070
    %v3072 = vpop.xlane.xlu0 %3071
    %v3073 = vrcp.pop %v3072
    %v3074 = vmul.f32 %v3069, %v3073
    %v3075 = vmul.f32 %v3074, 0.25
    %v3076 = vadd.f32 %v2909, %v3075
    %3077 = vrot.lane.b32.xlu0 %v1799, 40
    %v3078 = vpop.permute.xlu0 %3077
    %v3081 = vsel %vm138, %v3074, 0
    %3083 = vmatprep.subr.mxu0 0.0
    %3084 = vmatpush1.msra.mxu0 %v3078
    %3085 = vmatprep.subr.mxu0 0.0
    %3086 = vmatpush1.msra.mxu0 0.0
    %3087 = vmatprep.subr.mxu0 0.0
    %3088 = vmatpush1.msra.mxu0 0.0
    %3089 = vmatprep.subr.mxu0 0.0
    %3090 = vmatpush1.msra.mxu0 0.0
    %3091 = vmatprep.subr.mxu0 0.0
    %3092 = vmatpush1.msra.mxu0 0.0
    %3093 = vmatprep.subr.mxu0 0.0
    %3094 = vmatpush1.msra.mxu0 0.0
    %3095 = vmatprep.subr.mxu0 0.0
    %3096 = vmatpush1.msra.mxu0 0.0
    %3097 = vmatprep.subr.mxu0 0.0
    %3098 = vmatpush1.msra.mxu0 0.0
    %3099 = vmatprep.subr.mxu0 0.0
    %3100 = vmatpush1.msra.mxu0 0.0
    %3101 = vmatprep.subr.mxu0 0.0
    %3102 = vmatpush1.msra.mxu0 0.0
    %3103 = vmatprep.subr.mxu0 0.0
    %3104 = vmatpush1.msra.mxu0 0.0
    %3105 = vmatprep.subr.mxu0 0.0
    %3106 = vmatpush1.msra.mxu0 0.0
    %3107 = vmatprep.subr.mxu0 0.0
    %3108 = vmatpush1.msra.mxu0 0.0
    %3109 = vmatprep.subr.mxu0 0.0
    %3110 = vmatpush1.msra.mxu0 0.0
    %3111 = vmatprep.subr.mxu0 0.0
    %3112 = vmatpush1.msra.mxu0 0.0
    %3113 = vmatprep.subr.mxu0 0.0
    %3114 = vmatpush1.msra.mxu0 0.0
    %3115 = vmatprep.subr.mxu0 0.0
    %3116 = vmatpush1.msra.mxu0 0.0
    %3117 = vmatprep.subr.mxu0 0.0
    %3118 = vmatpush1.msra.mxu0 0.0
    %3119 = vmatprep.subr.mxu0 0.0
    %3120 = vmatpush1.msra.mxu0 0.0
    %3121 = vmatprep.subr.mxu0 0.0
    %3122 = vmatpush1.msra.mxu0 0.0
    %3123 = vmatprep.subr.mxu0 0.0
    %3124 = vmatpush1.msra.mxu0 0.0
    %3125 = vmatprep.subr.mxu0 0.0
    %3126 = vmatpush1.msra.mxu0 0.0
    %3127 = vmatprep.subr.mxu0 0.0
    %3128 = vmatpush1.msra.mxu0 0.0
    %3129 = vmatprep.subr.mxu0 0.0
    %3130 = vmatpush1.msra.mxu0 0.0
    %3131 = vmatprep.subr.mxu0 0.0
    %3132 = vmatpush1.msra.mxu0 0.0
    %3133 = vmatprep.subr.mxu0 0.0
    %3134 = vmatpush1.msra.mxu0 0.0
    %3135 = vmatprep.subr.mxu0 0.0
    %3136 = vmatpush1.msra.mxu0 0.0
    %3137 = vmatprep.subr.mxu0 0.0
    %3138 = vmatpush1.msra.mxu0 0.0
    %3139 = vmatprep.subr.mxu0 0.0
    %3140 = vmatpush1.msra.mxu0 0.0
    %3141 = vmatprep.subr.mxu0 0.0
    %3142 = vmatpush1.msra.mxu0 0.0
    %3143 = vmatprep.subr.mxu0 0.0
    %3144 = vmatpush1.msra.mxu0 0.0
    %3145 = vmatprep.subr.mxu0 0.0
    %3146 = vmatpush1.msra.mxu0 0.0
    %3147 = vmatprep.mubr.f32.mxu0 0.0
    %3148 = vmatmul.mubr.f32.gmra.mrb[0].mxu0 %v3081
    %v3149 = vpop.f32.mrb[0].mxu0
    %v3150 = vadd.f32 0.0, %v3149
    %v3151 = vpop.f32.mrb[0].mxu0
    %3152 = vdwg.mxu0
    %3154 = vrot.lane.b32.xlu0 %v2816, 8
    %v3155 = vpop.permute.xlu0 %3154
    %3158 = vrot.lane.b32.xlu0 %v2983, 16
    %v3159 = vpop.permute.xlu0 %3158
    %3162 = vrot.lane.b32.xlu0 %v3150, 24
    %v3163 = vpop.permute.xlu0 %3162
    %v3165 = vsel %vm138, %v2649, %v3155
    %v3166 = vsel %vm808, %v3165, %v3159
    %v3167 = vsel %vm810, %v3166, %v3163
    %v3168 = vld [vmem:[%s4 + $0x20] sm:$0xff]
    %v3169 = vld [vmem:[%s4 + $0x28] sm:$0xff]
    %v3170 = vld [vmem:[%s4 + $0x30] sm:$0xff]
    %v3171 = vld [vmem:[%s4 + $0x38] sm:$0xff]
    %s3172 = scalar_lea.vmem %s7, 1
    %v3173 = vld [vmem:[%s3172] sm:$0x1]
    %v3175 = vlaneseq
    %v3176 = vshrl.u32 %v3175, 7
    %v3177 = vsub.s32 0, %v3176
    %v3178 = vrot.slane %v3173, %v3177
    %v3181 = vsel %vm53, %v2484, 0
    %v3184 = vsel %vm53, %v3167, 0
    %3186 = vmatprep.subr.mxu0 0.0
    %3187 = vmatpush1.msra.mxu0 %v3168
    %3188 = vmatprep.subr.mxu0 0.0
    %3189 = vmatpush1.msra.mxu0 %v3169
    %3190 = vmatprep.subr.mxu0 0.0
    %3191 = vmatpush1.msra.mxu0 %v3170
    %3192 = vmatprep.subr.mxu0 0.0
    %3193 = vmatpush1.msra.mxu0 %v3171
    %3194 = vmatprep.subr.mxu0 0.0
    %3195 = vmatpush1.msra.mxu0 0.0
    %3196 = vmatprep.subr.mxu0 0.0
    %3197 = vmatpush1.msra.mxu0 0.0
    %3198 = vmatprep.subr.mxu0 0.0
    %3199 = vmatpush1.msra.mxu0 0.0
    %3200 = vmatprep.subr.mxu0 0.0
    %3201 = vmatpush1.msra.mxu0 0.0
    %3202 = vmatprep.subr.mxu0 0.0
    %3203 = vmatpush1.msra.mxu0 0.0
    %3204 = vmatprep.subr.mxu0 0.0
    %3205 = vmatpush1.msra.mxu0 0.0
    %3206 = vmatprep.subr.mxu0 0.0
    %3207 = vmatpush1.msra.mxu0 0.0
    %3208 = vmatprep.subr.mxu0 0.0
    %3209 = vmatpush1.msra.mxu0 0.0
    %3210 = vmatprep.subr.mxu0 0.0
    %3211 = vmatpush1.msra.mxu0 0.0
    %3212 = vmatprep.subr.mxu0 0.0
    %3213 = vmatpush1.msra.mxu0 0.0
    %3214 = vmatprep.subr.mxu0 0.0
    %3215 = vmatpush1.msra.mxu0 0.0
    %3216 = vmatprep.subr.mxu0 0.0
    %3217 = vmatpush1.msra.mxu0 0.0
    %3218 = vmatprep.subr.mxu0 0.0
    %3219 = vmatpush1.msra.mxu0 0.0
    %3220 = vmatprep.subr.mxu0 0.0
    %3221 = vmatpush1.msra.mxu0 0.0
    %3222 = vmatprep.subr.mxu0 0.0
    %3223 = vmatpush1.msra.mxu0 0.0
    %3224 = vmatprep.subr.mxu0 0.0
    %3225 = vmatpush1.msra.mxu0 0.0
    %3226 = vmatprep.subr.mxu0 0.0
    %3227 = vmatpush1.msra.mxu0 0.0
    %3228 = vmatprep.subr.mxu0 0.0
    %3229 = vmatpush1.msra.mxu0 0.0
    %3230 = vmatprep.subr.mxu0 0.0
    %3231 = vmatpush1.msra.mxu0 0.0
    %3232 = vmatprep.subr.mxu0 0.0
    %3233 = vmatpush1.msra.mxu0 0.0
    %3234 = vmatprep.subr.mxu0 0.0
    %3235 = vmatpush1.msra.mxu0 0.0
    %3236 = vmatprep.subr.mxu0 0.0
    %3237 = vmatpush1.msra.mxu0 0.0
    %3238 = vmatprep.subr.mxu0 0.0
    %3239 = vmatpush1.msra.mxu0 0.0
    %3240 = vmatprep.subr.mxu0 0.0
    %3241 = vmatpush1.msra.mxu0 0.0
    %3242 = vmatprep.subr.mxu0 0.0
    %3243 = vmatpush1.msra.mxu0 0.0
    %3244 = vmatprep.subr.mxu0 0.0
    %3245 = vmatpush1.msra.mxu0 0.0
    %3246 = vmatprep.subr.mxu0 0.0
    %3247 = vmatpush1.msra.mxu0 0.0
    %3248 = vmatprep.subr.mxu0 0.0
    %3249 = vmatpush1.msra.mxu0 0.0
    %3250 = vmatprep.mubr.f32.mxu0 0.0
    %3251 = vmatmul.mubr.f32.gmra.mrb[0].mxu0 %v3181
    %v3252 = vpop.f32.mrb[0].mxu0
    %v3253 = vadd.f32 %v3178, %v3252
    %v3254 = vpop.f32.mrb[0].mxu0
    %3255 = vmatprep.mubr.f32.mxu0 0.0
    %3256 = vmatmul.mubr.f32.gmra.mrb[0].mxu0 %v3184
    %v3257 = vpop.f32.mrb[0].mxu0
    %v3258 = vadd.f32 %v3178, %v3257
    %v3259 = vpop.f32.mrb[0].mxu0
    %3260 = vdwg.mxu0
    %3261 = vst.msk [vmem:[#allocation2] sm:$0xff] %vm138, %v2393
    %3262 = vst.msk [vmem:[#allocation2 + $0x8] sm:$0xff] %vm138, %v3076
    %v3263 = vadd.f32 %v1625, %v3253
    %v3264 = vadd.f32 %v1626, %v3258
    %s3265 = scalar_lea.vmem %s7, 5
    %v3266 = vld [vmem:[%s3265] sm:$0x1]
    %s3267 = scalar_lea.vmem %s7, 6
    %v3268 = vld [vmem:[%s3267] sm:$0x1]
    %v3269 = vsel %vm53, %v3263, 0.0
    %3270 = vadd.xlane.f32.xlu0 %v3269
    %v3271 = vpop.xlane.xlu0 %3270
    %v3272 = vsel %vm53, %v3264, 0.0
    %3273 = vadd.xlane.f32.xlu0 %v3272
    %v3274 = vpop.xlane.xlu0 %3273
    %v3275 = vmul.f32 %v3271, %v1590
    %v3276 = vmul.f32 %v3274, %v1590
    %v3277 = vsub.f32 %v3263, %v3275
    %v3278 = vsub.f32 %v3264, %v3276
    %v3279 = vmul.f32 %v3277, %v3277
    %v3280 = vmul.f32 %v3278, %v3278
    %v3281 = vsel %vm53, %v3279, 0.0
    %3282 = vadd.xlane.f32.xlu0 %v3281
    %v3283 = vpop.xlane.xlu0 %3282
    %v3284 = vsel %vm53, %v3280, 0.0
    %3285 = vadd.xlane.f32.xlu0 %v3284
    %v3286 = vpop.xlane.xlu0 %3285
    %v3287 = vmul.f32 %v3283, %v1590
    %v3288 = vmul.f32 %v3286, %v1590
    %v3289 = vadd.f32 %v3287, 1e-05
    %v3290 = vadd.f32 %v3288, 1e-05
    %v3291 = vrsqrt.pop %v3289
    %v3292 = vrsqrt.pop %v3290
    %v3293 = vmul.f32 %v3277, %v3291
    %v3294 = vmul.f32 %v3278, %v3292
    %v3296 = vlaneseq
    %v3297 = vshrl.u32 %v3296, 7
    %v3298 = vsub.s32 0, %v3297
    %v3299 = vrot.slane %v3266, %v3298
    %v3301 = vmul.f32 %v3293, %v3299
    %v3302 = vmul.f32 %v3294, %v3299
    %v3304 = vlaneseq
    %v3305 = vshrl.u32 %v3304, 7
    %v3306 = vsub.s32 0, %v3305
    %v3307 = vrot.slane %v3268, %v3306
    %v3309 = vadd.f32 %v3301, %v3307
    %v3310 = vadd.f32 %v3302, %v3307
    %v3311 = vld [vmem:[%s5] sm:$0xff]
    %v3312 = vld [vmem:[%s5 + $0x8] sm:$0xff]
    %v3313 = vld [vmem:[%s5 + $0x10] sm:$0xff]
    %v3314 = vld [vmem:[%s5 + $0x18] sm:$0xff]
    %v3315 = vld [vmem:[%s6] sm:$0x1]
    %v3317 = vlaneseq
    %v3318 = vshrl.u32 %v3317, 7
    %v3319 = vsub.s32 0, %v3318
    %v3320 = vrot.slane %v3315, %v3319
    %v3323 = vsel %vm53, %v3309, 0
    %v3326 = vsel %vm53, %v3310, 0
    %3328 = vmatprep.subr.mxu0 0.0
    %3329 = vmatpush1.msra.mxu0 %v3311
    %3330 = vmatprep.subr.mxu0 0.0
    %3331 = vmatpush1.msra.mxu0 %v3312
    %3332 = vmatprep.subr.mxu0 0.0
    %3333 = vmatpush1.msra.mxu0 %v3313
    %3334 = vmatprep.subr.mxu0 0.0
    %3335 = vmatpush1.msra.mxu0 %v3314
    %3336 = vmatprep.subr.mxu0 0.0
    %3337 = vmatpush1.msra.mxu0 0.0
    %3338 = vmatprep.subr.mxu0 0.0
    %3339 = vmatpush1.msra.mxu0 0.0
    %3340 = vmatprep.subr.mxu0 0.0
    %3341 = vmatpush1.msra.mxu0 0.0
    %3342 = vmatprep.subr.mxu0 0.0
    %3343 = vmatpush1.msra.mxu0 0.0
    %3344 = vmatprep.subr.mxu0 0.0
    %3345 = vmatpush1.msra.mxu0 0.0
    %3346 = vmatprep.subr.mxu0 0.0
    %3347 = vmatpush1.msra.mxu0 0.0
    %3348 = vmatprep.subr.mxu0 0.0
    %3349 = vmatpush1.msra.mxu0 0.0
    %3350 = vmatprep.subr.mxu0 0.0
    %3351 = vmatpush1.msra.mxu0 0.0
    %3352 = vmatprep.subr.mxu0 0.0
    %3353 = vmatpush1.msra.mxu0 0.0
    %3354 = vmatprep.subr.mxu0 0.0
    %3355 = vmatpush1.msra.mxu0 0.0
    %3356 = vmatprep.subr.mxu0 0.0
    %3357 = vmatpush1.msra.mxu0 0.0
    %3358 = vmatprep.subr.mxu0 0.0
    %3359 = vmatpush1.msra.mxu0 0.0
    %3360 = vmatprep.subr.mxu0 0.0
    %3361 = vmatpush1.msra.mxu0 0.0
    %3362 = vmatprep.subr.mxu0 0.0
    %3363 = vmatpush1.msra.mxu0 0.0
    %3364 = vmatprep.subr.mxu0 0.0
    %3365 = vmatpush1.msra.mxu0 0.0
    %3366 = vmatprep.subr.mxu0 0.0
    %3367 = vmatpush1.msra.mxu0 0.0
    %3368 = vmatprep.subr.mxu0 0.0
    %3369 = vmatpush1.msra.mxu0 0.0
    %3370 = vmatprep.subr.mxu0 0.0
    %3371 = vmatpush1.msra.mxu0 0.0
    %3372 = vmatprep.subr.mxu0 0.0
    %3373 = vmatpush1.msra.mxu0 0.0
    %3374 = vmatprep.subr.mxu0 0.0
    %3375 = vmatpush1.msra.mxu0 0.0
    %3376 = vmatprep.subr.mxu0 0.0
    %3377 = vmatpush1.msra.mxu0 0.0
    %3378 = vmatprep.subr.mxu0 0.0
    %3379 = vmatpush1.msra.mxu0 0.0
    %3380 = vmatprep.subr.mxu0 0.0
    %3381 = vmatpush1.msra.mxu0 0.0
    %3382 = vmatprep.subr.mxu0 0.0
    %3383 = vmatpush1.msra.mxu0 0.0
    %3384 = vmatprep.subr.mxu0 0.0
    %3385 = vmatpush1.msra.mxu0 0.0
    %3386 = vmatprep.subr.mxu0 0.0
    %3387 = vmatpush1.msra.mxu0 0.0
    %3388 = vmatprep.subr.mxu0 0.0
    %3389 = vmatpush1.msra.mxu0 0.0
    %3390 = vmatprep.subr.mxu0 0.0
    %3391 = vmatpush1.msra.mxu0 0.0
    %3392 = vmatprep.mubr.f32.mxu0 0.0
    %3393 = vmatmul.mubr.f32.gmra.mrb[0].mxu0 %v3323
    %v3394 = vpop.f32.mrb[0].mxu0
    %v3395 = vadd.f32 %v3320, %v3394
    %v3396 = vpop.f32.mrb[0].mxu0
    %3397 = vmatprep.mubr.f32.mxu0 0.0
    %3398 = vmatmul.mubr.f32.gmra.mrb[0].mxu0 %v3326
    %v3399 = vpop.f32.mrb[0].mxu0
    %v3400 = vadd.f32 %v3320, %v3399
    %v3401 = vpop.f32.mrb[0].mxu0
    %3402 = vdwg.mxu0
    %v3403 = vmax.f32 %v3395, 0.0
    %v3404 = vmax.f32 %v3400, 0.0
    %v3405 = vld [vmem:[%s4 + $0x40] sm:$0xff]
    %v3406 = vld [vmem:[%s4 + $0x48] sm:$0xff]
    %v3407 = vld [vmem:[%s4 + $0x50] sm:$0xff]
    %v3408 = vld [vmem:[%s4 + $0x58] sm:$0xff]
    %v3409 = vld [vmem:[%s4 + $0x60] sm:$0xff]
    %v3410 = vld [vmem:[%s4 + $0x68] sm:$0xff]
    %v3411 = vld [vmem:[%s4 + $0x70] sm:$0xff]
    %v3412 = vld [vmem:[%s4 + $0x78] sm:$0xff]
    %s3413 = scalar_lea.vmem %s7, 2
    %v3414 = vld [vmem:[%s3413] sm:$0x1]
    %v3416 = vlaneseq
    %v3417 = vshrl.u32 %v3416, 7
    %v3418 = vsub.s32 0, %v3417
    %v3419 = vrot.slane %v3414, %v3418
    %vm3421 = vcmask 523264
    %v3423 = vsel %vm3421, %v3403, 0
    %v3426 = vsel %vm3421, %v3404, 0
    %3428 = vmatprep.subr.mxu0 0.0
    %3429 = vmatpush1.msra.mxu0 %v3405
    %3430 = vmatprep.subr.mxu0 0.0
    %3431 = vmatpush1.msra.mxu0 %v3406
    %3432 = vmatprep.subr.mxu0 0.0
    %3433 = vmatpush1.msra.mxu0 %v3407
    %3434 = vmatprep.subr.mxu0 0.0
    %3435 = vmatpush1.msra.mxu0 %v3408
    %3436 = vmatprep.subr.mxu0 0.0
    %3437 = vmatpush1.msra.mxu0 %v3409
    %3438 = vmatprep.subr.mxu0 0.0
    %3439 = vmatpush1.msra.mxu0 %v3410
    %3440 = vmatprep.subr.mxu0 0.0
    %3441 = vmatpush1.msra.mxu0 %v3411
    %3442 = vmatprep.subr.mxu0 0.0
    %3443 = vmatpush1.msra.mxu0 %v3412
    %3444 = vmatprep.subr.mxu0 0.0
    %3445 = vmatpush1.msra.mxu0 0.0
    %3446 = vmatprep.subr.mxu0 0.0
    %3447 = vmatpush1.msra.mxu0 0.0
    %3448 = vmatprep.subr.mxu0 0.0
    %3449 = vmatpush1.msra.mxu0 0.0
    %3450 = vmatprep.subr.mxu0 0.0
    %3451 = vmatpush1.msra.mxu0 0.0
    %3452 = vmatprep.subr.mxu0 0.0
    %3453 = vmatpush1.msra.mxu0 0.0
    %3454 = vmatprep.subr.mxu0 0.0
    %3455 = vmatpush1.msra.mxu0 0.0
    %3456 = vmatprep.subr.mxu0 0.0
    %3457 = vmatpush1.msra.mxu0 0.0
    %3458 = vmatprep.subr.mxu0 0.0
    %3459 = vmatpush1.msra.mxu0 0.0
    %3460 = vmatprep.subr.mxu0 0.0
    %3461 = vmatpush1.msra.mxu0 0.0
    %3462 = vmatprep.subr.mxu0 0.0
    %3463 = vmatpush1.msra.mxu0 0.0
    %3464 = vmatprep.subr.mxu0 0.0
    %3465 = vmatpush1.msra.mxu0 0.0
    %3466 = vmatprep.subr.mxu0 0.0
    %3467 = vmatpush1.msra.mxu0 0.0
    %3468 = vmatprep.subr.mxu0 0.0
    %3469 = vmatpush1.msra.mxu0 0.0
    %3470 = vmatprep.subr.mxu0 0.0
    %3471 = vmatpush1.msra.mxu0 0.0
    %3472 = vmatprep.subr.mxu0 0.0
    %3473 = vmatpush1.msra.mxu0 0.0
    %3474 = vmatprep.subr.mxu0 0.0
    %3475 = vmatpush1.msra.mxu0 0.0
    %3476 = vmatprep.subr.mxu0 0.0
    %3477 = vmatpush1.msra.mxu0 0.0
    %3478 = vmatprep.subr.mxu0 0.0
    %3479 = vmatpush1.msra.mxu0 0.0
    %3480 = vmatprep.subr.mxu0 0.0
    %3481 = vmatpush1.msra.mxu0 0.0
    %3482 = vmatprep.subr.mxu0 0.0
    %3483 = vmatpush1.msra.mxu0 0.0
    %3484 = vmatprep.subr.mxu0 0.0
    %3485 = vmatpush1.msra.mxu0 0.0
    %3486 = vmatprep.subr.mxu0 0.0
    %3487 = vmatpush1.msra.mxu0 0.0
    %3488 = vmatprep.subr.mxu0 0.0
    %3489 = vmatpush1.msra.mxu0 0.0
    %3490 = vmatprep.subr.mxu0 0.0
    %3491 = vmatpush1.msra.mxu0 0.0
    %3492 = vmatprep.mubr.f32.mxu0 0.0
    %3493 = vmatmul.mubr.f32.gmra.mrb[0].mxu0 %v3423
    %v3494 = vpop.f32.mrb[0].mxu0
    %v3495 = vadd.f32 %v3419, %v3494
    %v3496 = vpop.f32.mrb[0].mxu0
    %3497 = vmatprep.mubr.f32.mxu0 0.0
    %3498 = vmatmul.mubr.f32.gmra.mrb[0].mxu0 %v3426
    %v3499 = vpop.f32.mrb[0].mxu0
    %v3500 = vadd.f32 %v3419, %v3499
    %v3501 = vpop.f32.mrb[0].mxu0
    %3502 = vdwg.mxu0
    %v3503 = vadd.f32 %v3309, %v3495
    %v3504 = vadd.f32 %v3310, %v3500
    %s3505 = scalar_lea.vmem %s7, 7
    %v3506 = vld [vmem:[%s3505] sm:$0x1]
    %s3507 = scalar_lea.vmem %s7, 8
    %v3508 = vld [vmem:[%s3507] sm:$0x1]
    %v3509 = vsel %vm53, %v3503, 0.0
    %3510 = vadd.xlane.f32.xlu0 %v3509
    %v3511 = vpop.xlane.xlu0 %3510
    %v3512 = vsel %vm53, %v3504, 0.0
    %3513 = vadd.xlane.f32.xlu0 %v3512
    %v3514 = vpop.xlane.xlu0 %3513
    %v3515 = vmul.f32 %v3511, %v1590
    %v3516 = vmul.f32 %v3514, %v1590
    %v3517 = vsub.f32 %v3503, %v3515
    %v3518 = vsub.f32 %v3504, %v3516
    %v3519 = vmul.f32 %v3517, %v3517
    %v3520 = vmul.f32 %v3518, %v3518
    %v3521 = vsel %vm53, %v3519, 0.0
    %3522 = vadd.xlane.f32.xlu0 %v3521
    %v3523 = vpop.xlane.xlu0 %3522
    %v3524 = vsel %vm53, %v3520, 0.0
    %3525 = vadd.xlane.f32.xlu0 %v3524
    %v3526 = vpop.xlane.xlu0 %3525
    %v3527 = vmul.f32 %v3523, %v1590
    %v3528 = vmul.f32 %v3526, %v1590
    %v3529 = vadd.f32 %v3527, 1e-05
    %v3530 = vadd.f32 %v3528, 1e-05
    %v3531 = vrsqrt.pop %v3529
    %v3532 = vrsqrt.pop %v3530
    %v3533 = vmul.f32 %v3517, %v3531
    %v3534 = vmul.f32 %v3518, %v3532
    %v3536 = vlaneseq
    %v3537 = vshrl.u32 %v3536, 7
    %v3538 = vsub.s32 0, %v3537
    %v3539 = vrot.slane %v3506, %v3538
    %v3541 = vmul.f32 %v3533, %v3539
    %v3542 = vmul.f32 %v3534, %v3539
    %v3544 = vlaneseq
    %v3545 = vshrl.u32 %v3544, 7
    %v3546 = vsub.s32 0, %v3545
    %v3547 = vrot.slane %v3508, %v3546
    %v3549 = vadd.f32 %v3541, %v3547
    %v3550 = vadd.f32 %v3542, %v3547
    %3551 = vst.msk [vmem:[%s8] sm:$0xff] %vm53, %v3549
    %3552 = vst.msk [vmem:[%s8 + $0x8] sm:$0xff] %vm53, %v3550
    // Predicated region
    $region34: #{transformer_decoder_layer_forward.1} parent=1 // pred_check
      _
    $region35: #{transformer_decoder_layer_forward.1} parent=1 // pred_check_branch
      %3554 = sbr.rel (0) target = $region37
    $region36: #{transformer_decoder_layer_forward.1} parent=1 // pred_region
      _
    $region37: #{transformer_decoder_layer_forward.1} parent=1 // pred_fallthru
      _
    // Predicated region
    $region38: #{transformer_decoder_layer_forward.1} parent=1 // pred_check
      _
    $region39: #{transformer_decoder_layer_forward.1} parent=1 // pred_check_branch
      %3556 = sbr.rel (0) target = $region41
    $region40: #{transformer_decoder_layer_forward.1} parent=1 // pred_region
      %s3558 = ssub.s32 256, 256
      %3559 = vsyncadd [#allocation3], %s3558
      %s3560 = sshll.u32 [#allocation2], 4
      %s3561 = int_to_ptr.vmem [resolvable:$true] %s3560
      %3566 = dma.vmem_to_hbm [thread:$0]  %s3561, 256, %s9, [#allocation3], 128, 128, 8
    $region41: #{transformer_decoder_layer_forward.1} parent=1 // pred_fallthru
      _
    // Predicated region
    $region42: #{transformer_decoder_layer_forward.1} parent=1 // pred_check
      _
    $region43: #{transformer_decoder_layer_forward.1} parent=1 // pred_check_branch
      %3568 = sbr.rel (0) target = $region45
    $region44: #{transformer_decoder_layer_forward.1} parent=1 // pred_region
      _
    $region45: #{transformer_decoder_layer_forward.1} parent=1 // pred_fallthru
      _
    // Predicated region
    $region46: #{transformer_decoder_layer_forward.1} parent=1 // pred_check
      _
    $region47: #{transformer_decoder_layer_forward.1} parent=1 // pred_check_branch
      %3570 = sbr.rel (0) target = $region49
    $region48: #{transformer_decoder_layer_forward.1} parent=1 // pred_region
      %3571 = dma.done [#allocation3], 256
    $region49: #{transformer_decoder_layer_forward.1} parent=1 // pred_fallthru
      _
    %3572 = vsyncpa [#allocation3], 1

</llo_original>
